<compile_context>
chip_gen: v7x
topology: tpu7x:2x2x1
jax: 0.10.0
libtpu: 0.0.40
codegen_flags: <defaults>
</compile_context>

<pallas_src>
import jax
import jax.numpy as jnp
from jax.experimental import pallas as pl
from jax.experimental.pallas import tpu as pltpu

LATENT_DIM = 100
PAD_LATENT = 128           # latent padded to a full lane group
IMG_DIM = 28 * 28          # 784
PAD_OUT = 896              # 7 * 128, lane-dense output width
LRELU_SLOPE = 0.2
BN_EPS = 0.8               # BatchNorm1d(dim, 0.8) -> eps = 0.8
H0, H1, H2, H3 = 128, 256, 512, 1024


# ---------------------------------------------------------------------------
# Fused Pallas kernel: Linear(+LReLU) -> 3x [Linear+BN+LReLU] -> Linear+Tanh
# ---------------------------------------------------------------------------
def _generator_fused_kernel(
    z_ref,
    w0_ref, b0_ref,
    w1_ref, b1_ref, g1_ref, be1_ref,
    w2_ref, b2_ref, g2_ref, be2_ref,
    w3_hbm, b3_ref, g3_ref, be3_ref,
    w4_hbm, b4_ref,
    o_ref,
    zpad_ref, w3_vmem, w4_vmem, dma_sem,
):
    # Kick off the big-weight DMAs immediately so they overlap with the
    # layer-0..2 compute (W3 first: it is needed earlier).
    w3_copy = pltpu.make_async_copy(w3_hbm, w3_vmem, dma_sem.at[0])
    w4_copy = pltpu.make_async_copy(w4_hbm, w4_vmem, dma_sem.at[1])
    w3_copy.start()
    w4_copy.start()

    def dense(h, w, b_ref):
        # bf16 x bf16 on the MXU, f32 accumulation; epilogue math stays f32.
        y = jnp.dot(h.astype(jnp.bfloat16), w,
                    preferred_element_type=jnp.float32)
        return y + b_ref[...]          # (1, Dout) broadcasts over batch

    def lrelu(y):
        return jnp.maximum(y, LRELU_SLOPE * y)

    def batchnorm(y, g_ref, be_ref):
        # Training-mode BatchNorm1d: biased batch statistics, eps = 0.8.
        # var = E[y^2] - mean^2: two independent reductions (shorter chain).
        mean = jnp.mean(y, axis=0, keepdims=True)
        mean_sq = jnp.mean(y * y, axis=0, keepdims=True)
        var = mean_sq - mean * mean
        y_hat = (y - mean) * jax.lax.rsqrt(var + BN_EPS)
        return g_ref[...] * y_hat + be_ref[...]

    # In-kernel latent padding 100 -> 128: lanes 100..127 hit zero rows of W0
    # so their value is irrelevant (just must be finite) — zero-fill, then
    # masked-store the 100 real lanes.
    zpad_ref[...] = jnp.zeros_like(zpad_ref)
    zpad_ref[:, :LATENT_DIM] = z_ref[...]

    h = lrelu(dense(zpad_ref[...], w0_ref[...], b0_ref))                    # (B, 128)
    h = lrelu(batchnorm(dense(h, w1_ref[...], b1_ref), g1_ref, be1_ref))    # (B, 256)
    h = lrelu(batchnorm(dense(h, w2_ref[...], b2_ref), g2_ref, be2_ref))    # (B, 512)
    w3_copy.wait()
    h = lrelu(batchnorm(dense(h, w3_vmem[...], b3_ref), g3_ref, be3_ref))   # (B, 1024)
    w4_copy.wait()
    o_ref[...] = jnp.tanh(dense(h, w4_vmem[...], b4_ref))                   # (B, 896)


# ---------------------------------------------------------------------------
# Wrapper
# ---------------------------------------------------------------------------
def generator_forward(params, z):
    B = z.shape[0]

    vmem = pl.BlockSpec(memory_space=pltpu.MemorySpace.VMEM)
    hbm = pl.BlockSpec(memory_space=pl.ANY)    # manual DMA inside the kernel

    inputs, in_specs = [z], [vmem]
    for i, p in enumerate(params):
        inputs.append(p["w"])
        in_specs.append(hbm if i >= 3 else vmem)     # W3, W4 prefetched manually
        inputs.append(p["b"])
        in_specs.append(vmem)
        if "gamma" in p:
            inputs.append(p["gamma"])
            in_specs.append(vmem)
            inputs.append(p["beta"])
            in_specs.append(vmem)

    w_elems = PAD_LATENT * H0 + H0 * H1 + H1 * H2 + H2 * H3 + H3 * PAD_OUT
    flops = 2 * B * w_elems
    bytes_accessed = (
        2 * w_elems                                   # bf16 weights
        + 4 * (H0 + H1 + H2 + H3 + PAD_OUT)           # f32 biases
        + 4 * 2 * (H1 + H2 + H3)                      # f32 BN gamma/beta
        + 4 * B * LATENT_DIM + 4 * B * PAD_OUT        # z in / img out
    )
    transcendentals = B * PAD_OUT + 3 * (H1 + H2 + H3)  # tanh + rsqrt

    out = pl.pallas_call(
        _generator_fused_kernel,
        out_shape=jax.ShapeDtypeStruct((B, PAD_OUT), jnp.float32),
        in_specs=in_specs,
        out_specs=vmem,
        scratch_shapes=[
            pltpu.VMEM((B, PAD_LATENT), jnp.float32),     # padded latent
            pltpu.VMEM((H2, H3), jnp.bfloat16),           # W3 landing buffer
            pltpu.VMEM((H3, PAD_OUT), jnp.bfloat16),      # W4 landing buffer
            pltpu.SemaphoreType.DMA((2,)),
        ],
        cost_estimate=pl.CostEstimate(
            flops=flops,
            transcendentals=transcendentals,
            bytes_accessed=bytes_accessed,
        ),
    )(*inputs)

    # Drop the zero-padded columns and reshape to NCHW, matching img.view().
    img = out[:, :IMG_DIM]
    return img.reshape(B, 1, 28, 28)


# ---------------------------------------------------------------------------
# Parameter init (PyTorch-like uniform init; weights stored (in, out), bf16,
# pre-padded to the kernel's lane-dense shapes).
# ---------------------------------------------------------------------------
def init_generator_params(key):
    dims = [(LATENT_DIM, H0), (H0, H1), (H1, H2), (H2, H3), (H3, IMG_DIM)]
    params = []
    for i, (din, dout) in enumerate(dims):
        key, kw, kb = jax.random.split(key, 3)
        bound = 1.0 / jnp.sqrt(jnp.float32(din))
        w = jax.random.uniform(kw, (din, dout), jnp.float32, -bound, bound)
        b = jax.random.uniform(kb, (dout,), jnp.float32, -bound, bound)
        if i == 0:   # pad latent rows 100 -> 128 with zeros
            w = jnp.pad(w, ((0, PAD_LATENT - LATENT_DIM), (0, 0)))
        if i == 4:   # pad output cols 784 -> 896 with zeros
            w = jnp.pad(w, ((0, 0), (0, PAD_OUT - IMG_DIM)))
            b = jnp.pad(b, (0, PAD_OUT - IMG_DIM))
        layer = {"w": w.astype(jnp.bfloat16), "b": b.reshape(1, -1)}
        if i in (1, 2, 3):   # BatchNorm1d default affine init
            layer["gamma"] = jnp.ones((1, dout), jnp.float32)
            layer["beta"] = jnp.zeros((1, dout), jnp.float32)
        params.append(layer)
    return params


# ---------------------------------------------------------------------------
# Pure-JAX reference (same stored params) for a correctness check.
# ---------------------------------------------------------------------------
def generator_reference(params, z):
    z_pad = jnp.pad(z, ((0, 0), (0, PAD_LATENT - LATENT_DIM)))

    def dense(h, p):
        return h @ p["w"].astype(jnp.float32) + p["b"]

    def lrelu(y):
        return jnp.where(y > 0, y, LRELU_SLOPE * y)

    def bn(y, p):
        mean = jnp.mean(y, axis=0, keepdims=True)
        var = jnp.mean(jnp.square(y - mean), axis=0, keepdims=True)
        return p["gamma"] * (y - mean) * jax.lax.rsqrt(var + BN_EPS) + p["beta"]

    h = lrelu(dense(z_pad, params[0]))
    for i in (1, 2, 3):
        h = lrelu(bn(dense(h, params[i]), params[i]))
    y = jnp.tanh(dense(h, params[4]))
    return y[:, :IMG_DIM].reshape(z.shape[0], 1, 28, 28)


if __name__ == "__main__":
    key = jax.random.PRNGKey(0)
    kz, kp = jax.random.split(key)
    batch = 8
    z = jax.random.normal(kz, (batch, LATENT_DIM), dtype=jnp.float32)
    params = init_generator_params(kp)

    img = jax.jit(generator_forward)(params, z)
    img = jax.block_until_ready(img)

    assert img.shape == (batch, 1, 28, 28), img.shape
    assert img.dtype == jnp.float32
    assert bool(jnp.all(jnp.isfinite(img)))
    assert bool(jnp.all(jnp.abs(img) <= 1.0 + 1e-6))  # tanh output range

    # Loose tolerance: kernel feeds bf16 activations into the MXU, ref is f32.
    ref = generator_reference(params, z)
    max_diff = float(jnp.max(jnp.abs(img - ref)))
    assert max_diff < 1e-1, max_diff

    print("KERNEL_OK")
</pallas_src>

<mosaic_0001>
module attributes {stable_mosaic.version = 11 : i64} {
  func.func @_generator_fused_kernel(%arg0: memref<8x100xf32, #tpu.memory_space<vmem>>, %arg1: memref<128x128xbf16, #tpu.memory_space<vmem>>, %arg2: memref<1x128xf32, #tpu.memory_space<vmem>>, %arg3: memref<128x256xbf16, #tpu.memory_space<vmem>>, %arg4: memref<1x256xf32, #tpu.memory_space<vmem>>, %arg5: memref<1x256xf32, #tpu.memory_space<vmem>>, %arg6: memref<1x256xf32, #tpu.memory_space<vmem>>, %arg7: memref<256x512xbf16, #tpu.memory_space<vmem>>, %arg8: memref<1x512xf32, #tpu.memory_space<vmem>>, %arg9: memref<1x512xf32, #tpu.memory_space<vmem>>, %arg10: memref<1x512xf32, #tpu.memory_space<vmem>>, %arg11: memref<512x1024xbf16, #tpu.memory_space<any>>, %arg12: memref<1x1024xf32, #tpu.memory_space<vmem>>, %arg13: memref<1x1024xf32, #tpu.memory_space<vmem>>, %arg14: memref<1x1024xf32, #tpu.memory_space<vmem>>, %arg15: memref<1024x896xbf16, #tpu.memory_space<any>>, %arg16: memref<1x896xf32, #tpu.memory_space<vmem>>, %arg17: memref<8x896xf32, #tpu.memory_space<vmem>>, %arg18: memref<8x128xf32, #tpu.memory_space<vmem>>, %arg19: memref<512x1024xbf16, #tpu.memory_space<vmem>>, %arg20: memref<1024x896xbf16, #tpu.memory_space<vmem>>, %arg21: memref<2x!tpu.dma_semaphore, #tpu.memory_space<semaphore_mem>>) attributes {dimension_semantics = [], scalar_prefetch = 0 : i64, scratch_operands = 4 : i64, tpu.core_type = #tpu.core_type<tc>} {
    %c0_i32 = arith.constant 0 : i32
    %0 = tpu.memref_slice %arg21[%c0_i32] : memref<2x!tpu.dma_semaphore, #tpu.memory_space<semaphore_mem>> -> memref<1x!tpu.dma_semaphore, #tpu.memory_space<semaphore_mem>>
    %1 = tpu.memref_squeeze %0 : memref<1x!tpu.dma_semaphore, #tpu.memory_space<semaphore_mem>> -> memref<!tpu.dma_semaphore, #tpu.memory_space<semaphore_mem>>
    tpu.enqueue_dma source(%arg11 : memref<512x1024xbf16, #tpu.memory_space<any>>) target(%arg19 : memref<512x1024xbf16, #tpu.memory_space<vmem>>) target_semaphore(%1 : memref<!tpu.dma_semaphore, #tpu.memory_space<semaphore_mem>>)
    %c1_i32 = arith.constant 1 : i32
    %2 = tpu.memref_slice %arg21[%c1_i32] : memref<2x!tpu.dma_semaphore, #tpu.memory_space<semaphore_mem>> -> memref<1x!tpu.dma_semaphore, #tpu.memory_space<semaphore_mem>>
    %3 = tpu.memref_squeeze %2 : memref<1x!tpu.dma_semaphore, #tpu.memory_space<semaphore_mem>> -> memref<!tpu.dma_semaphore, #tpu.memory_space<semaphore_mem>>
    tpu.enqueue_dma source(%arg15 : memref<1024x896xbf16, #tpu.memory_space<any>>) target(%arg20 : memref<1024x896xbf16, #tpu.memory_space<vmem>>) target_semaphore(%3 : memref<!tpu.dma_semaphore, #tpu.memory_space<semaphore_mem>>)
    %cst = arith.constant 0.000000e+00 : f32
    %4 = vector.broadcast %cst : f32 to vector<8x128xf32>
    %c0 = arith.constant 0 : index
    %c0_0 = arith.constant 0 : index
    %5 = vector.load %arg18[%c0, %c0_0] : memref<8x128xf32, #tpu.memory_space<vmem>>, vector<8x128xf32>
    tpu.vector_store %arg18[%c0, %c0_0], %4 {strides = array<i32>} : memref<8x128xf32, #tpu.memory_space<vmem>>, vector<8x128xf32>,
    %c0_1 = arith.constant 0 : index
    %c0_2 = arith.constant 0 : index
    %6 = vector.load %arg0[%c0_1, %c0_2] : memref<8x100xf32, #tpu.memory_space<vmem>>, vector<8x100xf32>
    %c0_3 = arith.constant 0 : index
    %c0_4 = arith.constant 0 : index
    %7 = vector.load %arg18[%c0_3, %c0_4] : memref<8x128xf32, #tpu.memory_space<vmem>>, vector<8x100xf32>
    tpu.vector_store %arg18[%c0_3, %c0_4], %6 {strides = array<i32>} : memref<8x128xf32, #tpu.memory_space<vmem>>, vector<8x100xf32>,
    %c0_5 = arith.constant 0 : index
    %c0_6 = arith.constant 0 : index
    %8 = vector.load %arg18[%c0_5, %c0_6] : memref<8x128xf32, #tpu.memory_space<vmem>>, vector<8x128xf32>
    %c0_7 = arith.constant 0 : index
    %c0_8 = arith.constant 0 : index
    %9 = vector.load %arg1[%c0_7, %c0_8] : memref<128x128xbf16, #tpu.memory_space<vmem>>, vector<128x128xbf16>
    %10 = arith.truncf %8 : vector<8x128xf32> to vector<8x128xbf16>
    %cst_9 = arith.constant dense<0.000000e+00> : vector<8x128xf32>
    %11 = tpu.matmul %10, %9, %cst_9 {dimension_numbers = #tpu.dot_dimension_numbers<[1], [0], [0], [1], [0, 0, 1, 1], [], []>} : vector<8x128xbf16>, vector<128x128xbf16>, vector<8x128xf32> -> vector<8x128xf32>
    %c0_10 = arith.constant 0 : index
    %c0_11 = arith.constant 0 : index
    %12 = vector.load %arg2[%c0_10, %c0_11] : memref<1x128xf32, #tpu.memory_space<vmem>>, vector<1x128xf32>
    %13 = vector.broadcast %12 : vector<1x128xf32> to vector<8x128xf32>
    %14 = arith.addf %11, %13 : vector<8x128xf32>
    %cst_12 = arith.constant 2.000000e-01 : f32
    %15 = vector.broadcast %cst_12 : f32 to vector<8x128xf32>
    %16 = arith.mulf %15, %14 : vector<8x128xf32>
    %17 = arith.maximumf %14, %16 : vector<8x128xf32>
    %c0_13 = arith.constant 0 : index
    %c0_14 = arith.constant 0 : index
    %18 = vector.load %arg3[%c0_13, %c0_14] : memref<128x256xbf16, #tpu.memory_space<vmem>>, vector<128x256xbf16>
    %19 = arith.truncf %17 : vector<8x128xf32> to vector<8x128xbf16>
    %cst_15 = arith.constant dense<0.000000e+00> : vector<8x256xf32>
    %20 = tpu.matmul %19, %18, %cst_15 {dimension_numbers = #tpu.dot_dimension_numbers<[1], [0], [0], [1], [0, 0, 1, 1], [], []>} : vector<8x128xbf16>, vector<128x256xbf16>, vector<8x256xf32> -> vector<8x256xf32>
    %c0_16 = arith.constant 0 : index
    %c0_17 = arith.constant 0 : index
    %21 = vector.load %arg4[%c0_16, %c0_17] : memref<1x256xf32, #tpu.memory_space<vmem>>, vector<1x256xf32>
    %22 = vector.broadcast %21 : vector<1x256xf32> to vector<8x256xf32>
    %23 = arith.addf %20, %22 : vector<8x256xf32>
    %cst_18 = arith.constant dense<0.000000e+00> : vector<256xf32>
    %24 = vector.multi_reduction <add>, %23, %cst_18 [0] : vector<8x256xf32> to vector<256xf32>
    %25 = vector.shape_cast %24 : vector<256xf32> to vector<1x256xf32>
    %cst_19 = arith.constant 8.000000e+00 : f32
    %26 = vector.broadcast %cst_19 : f32 to vector<1x256xf32>
    %27 = arith.divf %25, %26 : vector<1x256xf32>
    %28 = arith.mulf %23, %23 : vector<8x256xf32>
    %cst_20 = arith.constant dense<0.000000e+00> : vector<256xf32>
    %29 = vector.multi_reduction <add>, %28, %cst_20 [0] : vector<8x256xf32> to vector<256xf32>
    %30 = vector.shape_cast %29 : vector<256xf32> to vector<1x256xf32>
    %cst_21 = arith.constant 8.000000e+00 : f32
    %31 = vector.broadcast %cst_21 : f32 to vector<1x256xf32>
    %32 = arith.divf %30, %31 : vector<1x256xf32>
    %33 = arith.mulf %27, %27 : vector<1x256xf32>
    %34 = arith.subf %32, %33 : vector<1x256xf32>
    %35 = vector.broadcast %27 : vector<1x256xf32> to vector<8x256xf32>
    %36 = arith.subf %23, %35 : vector<8x256xf32>
    %cst_22 = arith.constant 8.000000e-01 : f32
    %37 = vector.broadcast %cst_22 : f32 to vector<1x256xf32>
    %38 = arith.addf %34, %37 : vector<1x256xf32>
    %39 = math.rsqrt %38 : vector<1x256xf32>
    %40 = vector.broadcast %39 : vector<1x256xf32> to vector<8x256xf32>
    %41 = arith.mulf %36, %40 : vector<8x256xf32>
    %c0_23 = arith.constant 0 : index
    %c0_24 = arith.constant 0 : index
    %42 = vector.load %arg5[%c0_23, %c0_24] : memref<1x256xf32, #tpu.memory_space<vmem>>, vector<1x256xf32>
    %43 = vector.broadcast %42 : vector<1x256xf32> to vector<8x256xf32>
    %44 = arith.mulf %43, %41 : vector<8x256xf32>
    %c0_25 = arith.constant 0 : index
    %c0_26 = arith.constant 0 : index
    %45 = vector.load %arg6[%c0_25, %c0_26] : memref<1x256xf32, #tpu.memory_space<vmem>>, vector<1x256xf32>
    %46 = vector.broadcast %45 : vector<1x256xf32> to vector<8x256xf32>
    %47 = arith.addf %44, %46 : vector<8x256xf32>
    %cst_27 = arith.constant 2.000000e-01 : f32
    %48 = vector.broadcast %cst_27 : f32 to vector<8x256xf32>
    %49 = arith.mulf %48, %47 : vector<8x256xf32>
    %50 = arith.maximumf %47, %49 : vector<8x256xf32>
    %c0_28 = arith.constant 0 : index
    %c0_29 = arith.constant 0 : index
    %51 = vector.load %arg7[%c0_28, %c0_29] : memref<256x512xbf16, #tpu.memory_space<vmem>>, vector<256x512xbf16>
    %52 = arith.truncf %50 : vector<8x256xf32> to vector<8x256xbf16>
    %cst_30 = arith.constant dense<0.000000e+00> : vector<8x512xf32>
    %53 = tpu.matmul %52, %51, %cst_30 {dimension_numbers = #tpu.dot_dimension_numbers<[1], [0], [0], [1], [0, 0, 1, 1], [], []>} : vector<8x256xbf16>, vector<256x512xbf16>, vector<8x512xf32> -> vector<8x512xf32>
    %c0_31 = arith.constant 0 : index
    %c0_32 = arith.constant 0 : index
    %54 = vector.load %arg8[%c0_31, %c0_32] : memref<1x512xf32, #tpu.memory_space<vmem>>, vector<1x512xf32>
    %55 = vector.broadcast %54 : vector<1x512xf32> to vector<8x512xf32>
    %56 = arith.addf %53, %55 : vector<8x512xf32>
    %cst_33 = arith.constant dense<0.000000e+00> : vector<512xf32>
    %57 = vector.multi_reduction <add>, %56, %cst_33 [0] : vector<8x512xf32> to vector<512xf32>
    %58 = vector.shape_cast %57 : vector<512xf32> to vector<1x512xf32>
    %cst_34 = arith.constant 8.000000e+00 : f32
    %59 = vector.broadcast %cst_34 : f32 to vector<1x512xf32>
    %60 = arith.divf %58, %59 : vector<1x512xf32>
    %61 = arith.mulf %56, %56 : vector<8x512xf32>
    %cst_35 = arith.constant dense<0.000000e+00> : vector<512xf32>
    %62 = vector.multi_reduction <add>, %61, %cst_35 [0] : vector<8x512xf32> to vector<512xf32>
    %63 = vector.shape_cast %62 : vector<512xf32> to vector<1x512xf32>
    %cst_36 = arith.constant 8.000000e+00 : f32
    %64 = vector.broadcast %cst_36 : f32 to vector<1x512xf32>
    %65 = arith.divf %63, %64 : vector<1x512xf32>
    %66 = arith.mulf %60, %60 : vector<1x512xf32>
    %67 = arith.subf %65, %66 : vector<1x512xf32>
    %68 = vector.broadcast %60 : vector<1x512xf32> to vector<8x512xf32>
    %69 = arith.subf %56, %68 : vector<8x512xf32>
    %cst_37 = arith.constant 8.000000e-01 : f32
    %70 = vector.broadcast %cst_37 : f32 to vector<1x512xf32>
    %71 = arith.addf %67, %70 : vector<1x512xf32>
    %72 = math.rsqrt %71 : vector<1x512xf32>
    %73 = vector.broadcast %72 : vector<1x512xf32> to vector<8x512xf32>
    %74 = arith.mulf %69, %73 : vector<8x512xf32>
    %c0_38 = arith.constant 0 : index
    %c0_39 = arith.constant 0 : index
    %75 = vector.load %arg9[%c0_38, %c0_39] : memref<1x512xf32, #tpu.memory_space<vmem>>, vector<1x512xf32>
    %76 = vector.broadcast %75 : vector<1x512xf32> to vector<8x512xf32>
    %77 = arith.mulf %76, %74 : vector<8x512xf32>
    %c0_40 = arith.constant 0 : index
    %c0_41 = arith.constant 0 : index
    %78 = vector.load %arg10[%c0_40, %c0_41] : memref<1x512xf32, #tpu.memory_space<vmem>>, vector<1x512xf32>
    %79 = vector.broadcast %78 : vector<1x512xf32> to vector<8x512xf32>
    %80 = arith.addf %77, %79 : vector<8x512xf32>
    %cst_42 = arith.constant 2.000000e-01 : f32
    %81 = vector.broadcast %cst_42 : f32 to vector<8x512xf32>
    %82 = arith.mulf %81, %80 : vector<8x512xf32>
    %83 = arith.maximumf %80, %82 : vector<8x512xf32>
    %c0_i32_43 = arith.constant 0 : i32
    %84 = tpu.memref_slice %arg21[%c0_i32_43] : memref<2x!tpu.dma_semaphore, #tpu.memory_space<semaphore_mem>> -> memref<1x!tpu.dma_semaphore, #tpu.memory_space<semaphore_mem>>
    %85 = tpu.memref_squeeze %84 : memref<1x!tpu.dma_semaphore, #tpu.memory_space<semaphore_mem>> -> memref<!tpu.dma_semaphore, #tpu.memory_space<semaphore_mem>>
    tpu.wait_dma2 semaphore(%85 : memref<!tpu.dma_semaphore, #tpu.memory_space<semaphore_mem>>) src(%arg11 : memref<512x1024xbf16, #tpu.memory_space<any>>) dst(%arg19 : memref<512x1024xbf16, #tpu.memory_space<vmem>>)
    %c0_44 = arith.constant 0 : index
    %c0_45 = arith.constant 0 : index
    %86 = vector.load %arg19[%c0_44, %c0_45] : memref<512x1024xbf16, #tpu.memory_space<vmem>>, vector<512x1024xbf16>
    %87 = arith.truncf %83 : vector<8x512xf32> to vector<8x512xbf16>
    %cst_46 = arith.constant dense<0.000000e+00> : vector<8x1024xf32>
    %88 = tpu.matmul %87, %86, %cst_46 {dimension_numbers = #tpu.dot_dimension_numbers<[1], [0], [0], [1], [0, 0, 1, 1], [], []>} : vector<8x512xbf16>, vector<512x1024xbf16>, vector<8x1024xf32> -> vector<8x1024xf32>
    %c0_47 = arith.constant 0 : index
    %c0_48 = arith.constant 0 : index
    %89 = vector.load %arg12[%c0_47, %c0_48] : memref<1x1024xf32, #tpu.memory_space<vmem>>, vector<1x1024xf32>
    %90 = vector.broadcast %89 : vector<1x1024xf32> to vector<8x1024xf32>
    %91 = arith.addf %88, %90 : vector<8x1024xf32>
    %cst_49 = arith.constant dense<0.000000e+00> : vector<1024xf32>
    %92 = vector.multi_reduction <add>, %91, %cst_49 [0] : vector<8x1024xf32> to vector<1024xf32>
    %93 = vector.shape_cast %92 : vector<1024xf32> to vector<1x1024xf32>
    %cst_50 = arith.constant 8.000000e+00 : f32
    %94 = vector.broadcast %cst_50 : f32 to vector<1x1024xf32>
    %95 = arith.divf %93, %94 : vector<1x1024xf32>
    %96 = arith.mulf %91, %91 : vector<8x1024xf32>
    %cst_51 = arith.constant dense<0.000000e+00> : vector<1024xf32>
    %97 = vector.multi_reduction <add>, %96, %cst_51 [0] : vector<8x1024xf32> to vector<1024xf32>
    %98 = vector.shape_cast %97 : vector<1024xf32> to vector<1x1024xf32>
    %cst_52 = arith.constant 8.000000e+00 : f32
    %99 = vector.broadcast %cst_52 : f32 to vector<1x1024xf32>
    %100 = arith.divf %98, %99 : vector<1x1024xf32>
    %101 = arith.mulf %95, %95 : vector<1x1024xf32>
    %102 = arith.subf %100, %101 : vector<1x1024xf32>
    %103 = vector.broadcast %95 : vector<1x1024xf32> to vector<8x1024xf32>
    %104 = arith.subf %91, %103 : vector<8x1024xf32>
    %cst_53 = arith.constant 8.000000e-01 : f32
    %105 = vector.broadcast %cst_53 : f32 to vector<1x1024xf32>
    %106 = arith.addf %102, %105 : vector<1x1024xf32>
    %107 = math.rsqrt %106 : vector<1x1024xf32>
    %108 = vector.broadcast %107 : vector<1x1024xf32> to vector<8x1024xf32>
    %109 = arith.mulf %104, %108 : vector<8x1024xf32>
    %c0_54 = arith.constant 0 : index
    %c0_55 = arith.constant 0 : index
    %110 = vector.load %arg13[%c0_54, %c0_55] : memref<1x1024xf32, #tpu.memory_space<vmem>>, vector<1x1024xf32>
    %111 = vector.broadcast %110 : vector<1x1024xf32> to vector<8x1024xf32>
    %112 = arith.mulf %111, %109 : vector<8x1024xf32>
    %c0_56 = arith.constant 0 : index
    %c0_57 = arith.constant 0 : index
    %113 = vector.load %arg14[%c0_56, %c0_57] : memref<1x1024xf32, #tpu.memory_space<vmem>>, vector<1x1024xf32>
    %114 = vector.broadcast %113 : vector<1x1024xf32> to vector<8x1024xf32>
    %115 = arith.addf %112, %114 : vector<8x1024xf32>
    %cst_58 = arith.constant 2.000000e-01 : f32
    %116 = vector.broadcast %cst_58 : f32 to vector<8x1024xf32>
    %117 = arith.mulf %116, %115 : vector<8x1024xf32>
    %118 = arith.maximumf %115, %117 : vector<8x1024xf32>
    %c1_i32_59 = arith.constant 1 : i32
    %119 = tpu.memref_slice %arg21[%c1_i32_59] : memref<2x!tpu.dma_semaphore, #tpu.memory_space<semaphore_mem>> -> memref<1x!tpu.dma_semaphore, #tpu.memory_space<semaphore_mem>>
    %120 = tpu.memref_squeeze %119 : memref<1x!tpu.dma_semaphore, #tpu.memory_space<semaphore_mem>> -> memref<!tpu.dma_semaphore, #tpu.memory_space<semaphore_mem>>
    tpu.wait_dma2 semaphore(%120 : memref<!tpu.dma_semaphore, #tpu.memory_space<semaphore_mem>>) src(%arg15 : memref<1024x896xbf16, #tpu.memory_space<any>>) dst(%arg20 : memref<1024x896xbf16, #tpu.memory_space<vmem>>)
    %c0_60 = arith.constant 0 : index
    %c0_61 = arith.constant 0 : index
    %121 = vector.load %arg20[%c0_60, %c0_61] : memref<1024x896xbf16, #tpu.memory_space<vmem>>, vector<1024x896xbf16>
    %122 = arith.truncf %118 : vector<8x1024xf32> to vector<8x1024xbf16>
    %cst_62 = arith.constant dense<0.000000e+00> : vector<8x896xf32>
    %123 = tpu.matmul %122, %121, %cst_62 {dimension_numbers = #tpu.dot_dimension_numbers<[1], [0], [0], [1], [0, 0, 1, 1], [], []>} : vector<8x1024xbf16>, vector<1024x896xbf16>, vector<8x896xf32> -> vector<8x896xf32>
    %c0_63 = arith.constant 0 : index
    %c0_64 = arith.constant 0 : index
    %124 = vector.load %arg16[%c0_63, %c0_64] : memref<1x896xf32, #tpu.memory_space<vmem>>, vector<1x896xf32>
    %125 = vector.broadcast %124 : vector<1x896xf32> to vector<8x896xf32>
    %126 = arith.addf %123, %125 : vector<8x896xf32>
    %127 = math.tanh %126 : vector<8x896xf32>
    %c0_65 = arith.constant 0 : index
    %c0_66 = arith.constant 0 : index
    %128 = vector.load %arg17[%c0_65, %c0_66] : memref<8x896xf32, #tpu.memory_space<vmem>>, vector<8x896xf32>
    tpu.vector_store %arg17[%c0_65, %c0_66], %127 {strides = array<i32>} : memref<8x896xf32, #tpu.memory_space<vmem>>, vector<8x896xf32>,
    return
  }
}

</mosaic_0001>

<llo_original>
// kernel: generator_forward.1
$region0: #{generator_forward.1}
  #allocation0 [shape = 'u32[]', space=smem, size = 0x4, offset = 0x4, fixed_abs, tag = 'smem constant byte address 0x4 - core index']
  #allocation1 [shape = 'u32[144,128]{1,0:T(1,128)}', space=vmem, size = 0x12000, scoped, tag = 'internal scratch']
  #allocation2 [shape = 'f32[8,128]{1,0:T(8,128)}', space=vmem, size = 0x1000, scoped, tag = 'scratch operand']
  #allocation3 [shape = 'bf16[512,1024]{1,0:T(16,128)(2,1)}', space=vmem, size = 0x100000, scoped, tag = 'scratch operand']
  #allocation4 [shape = 'bf16[1024,896]{1,0:T(16,128)(2,1)}', space=vmem, size = 0x1c0000, scoped, tag = 'scratch operand']
  #allocation5 [shape = 's32[2]{0}', space=sflag, size = 0x8, scoped, tag = 'scratch operand']
  #allocation29 [shape = 's32[]', space=sflag, size = 0x4, offset = 0, fixed_abs, tag = 'sflag constant byte address 0x0 - dummy sync flag']
  #allocation31 [shape = 's32[]', space=sflag, size = 0x4, offset = 0, fixed_abs, tag = 'sflag constant byte address 0x0 - dummy sync flag']
  %s0 = inlined_call_operand.hbm [shape: f32[8,100], index: 0, kind: input, shape index: {}]
  %s1 = inlined_call_operand.hbm [shape: bf16[128,128], index: 1, kind: input, shape index: {}]
  %s2 = inlined_call_operand.hbm [shape: f32[1,128], index: 2, kind: input, shape index: {}]
  %s3 = inlined_call_operand.hbm [shape: bf16[128,256], index: 3, kind: input, shape index: {}]
  %s4 = inlined_call_operand.hbm [shape: f32[1,256], index: 4, kind: input, shape index: {}]
  %s5 = inlined_call_operand.hbm [shape: f32[1,256], index: 5, kind: input, shape index: {}]
  %s6 = inlined_call_operand.hbm [shape: f32[1,256], index: 6, kind: input, shape index: {}]
  %s7 = inlined_call_operand.hbm [shape: bf16[256,512], index: 7, kind: input, shape index: {}]
  %s8 = inlined_call_operand.hbm [shape: f32[1,512], index: 8, kind: input, shape index: {}]
  %s9 = inlined_call_operand.hbm [shape: f32[1,512], index: 9, kind: input, shape index: {}]
  %s10 = inlined_call_operand.hbm [shape: f32[1,512], index: 10, kind: input, shape index: {}]
  %s11 = inlined_call_operand.hbm [shape: bf16[512,1024], index: 11, kind: input, shape index: {}]
  %s12 = inlined_call_operand.hbm [shape: f32[1,1024], index: 12, kind: input, shape index: {}]
  %s13 = inlined_call_operand.hbm [shape: f32[1,1024], index: 13, kind: input, shape index: {}]
  %s14 = inlined_call_operand.hbm [shape: f32[1,1024], index: 14, kind: input, shape index: {}]
  %s15 = inlined_call_operand.hbm [shape: bf16[1024,896], index: 15, kind: input, shape index: {}]
  %s16 = inlined_call_operand.hbm [shape: f32[1,896], index: 16, kind: input, shape index: {}]
  %s17 = inlined_call_operand.vmem [shape: f32[8,896], index: 17, kind: output, shape index: {}]
  %s18 = sld [smem:[#allocation0]]
  $region130: #{generator_forward.1} parent=0
    _
  %s20 = ssub.s32 1, %s18
  %s21 = scalar_select 0, %s20, %s18
  $region1: #{generator_forward.1} parent=0
    #allocation6 [shape = 'u8[4096]{0}', space=vmem, size = 0x1000, scoped, tag = 'input window, operand 0, single buffered']
    #allocation7 [shape = 's32[1]{0}', space=sflag, size = 0x4, scoped, tag = 'scoped memory for generator_forward.1']
    #allocation8 [shape = 'u8[32768]{0}', space=vmem, size = 0x8000, scoped, tag = 'input window, operand 1, single buffered']
    #allocation9 [shape = 's32[1]{0}', space=sflag, size = 0x4, scoped, tag = 'scoped memory for generator_forward.1']
    #allocation10 [shape = 'u8[512]{0}', space=vmem, size = 0x400, scoped, tag = 'input window, operand 2, single buffered']
    #allocation11 [shape = 'u8[65536]{0}', space=vmem, size = 0x10000, scoped, tag = 'input window, operand 3, single buffered']
    #allocation12 [shape = 's32[1]{0}', space=sflag, size = 0x4, scoped, tag = 'scoped memory for generator_forward.1']
    #allocation13 [shape = 'u8[1024]{0}', space=vmem, size = 0x400, scoped, tag = 'input window, operand 4, single buffered']
    #allocation14 [shape = 'u8[1024]{0}', space=vmem, size = 0x400, scoped, tag = 'input window, operand 5, single buffered']
    #allocation15 [shape = 's32[1]{0}', space=sflag, size = 0x4, scoped, tag = 'scoped memory for generator_forward.1']
    #allocation16 [shape = 'u8[1024]{0}', space=vmem, size = 0x400, scoped, tag = 'input window, operand 6, single buffered']
    #allocation17 [shape = 'u8[262144]{0}', space=vmem, size = 0x40000, scoped, tag = 'input window, operand 7, single buffered']
    #allocation18 [shape = 's32[1]{0}', space=sflag, size = 0x4, scoped, tag = 'scoped memory for generator_forward.1']
    #allocation19 [shape = 'u8[2048]{0}', space=vmem, size = 0x800, scoped, tag = 'input window, operand 8, single buffered']
    #allocation20 [shape = 'u8[2048]{0}', space=vmem, size = 0x800, scoped, tag = 'input window, operand 9, single buffered']
    #allocation21 [shape = 's32[1]{0}', space=sflag, size = 0x4, scoped, tag = 'scoped memory for generator_forward.1']
    #allocation22 [shape = 'u8[2048]{0}', space=vmem, size = 0x800, scoped, tag = 'input window, operand 10, single buffered']
    #allocation23 [shape = 'u8[4096]{0}', space=vmem, size = 0x1000, scoped, tag = 'input window, operand 12, single buffered']
    #allocation24 [shape = 's32[1]{0}', space=sflag, size = 0x4, scoped, tag = 'scoped memory for generator_forward.1']
    #allocation25 [shape = 'u8[4096]{0}', space=vmem, size = 0x1000, scoped, tag = 'input window, operand 13, single buffered']
    #allocation26 [shape = 'u8[4096]{0}', space=vmem, size = 0x1000, scoped, tag = 'input window, operand 14, single buffered']
    #allocation27 [shape = 's32[1]{0}', space=sflag, size = 0x4, scoped, tag = 'scoped memory for generator_forward.1']
    #allocation28 [shape = 'u8[3584]{0}', space=vmem, size = 0x1000, scoped, tag = 'input window, operand 16, single buffered']
    #allocation30 [shape = 'u32[9]{0}', space=smem, size = 0x24, scoped, tag = 'DMA stride descriptor']
    #allocation32 [shape = 'u32[9]{0}', space=smem, size = 0x24, scoped, tag = 'DMA stride descriptor']
    %22 = vsyncpa [#allocation7], 0
    %23 = vsyncpa [#allocation9], 0
    %24 = vsyncpa [#allocation12], 0
    %25 = vsyncpa [#allocation15], 0
    %26 = vsyncpa [#allocation18], 0
    %27 = vsyncpa [#allocation21], 0
    %28 = vsyncpa [#allocation24], 0
    %29 = vsyncpa [#allocation27], 0
    // Predicated region
    $region2: #{generator_forward.1} parent=1 // pred_check
      _
    $region3: #{generator_forward.1} parent=1 // pred_check_branch
      %31 = sbr.rel (0) target = $region5
    $region4: #{generator_forward.1} parent=1 // pred_region
      %s33 = ssub.s32 128, 128
      %34 = vsyncadd [#allocation7], %s33
      %s36 = sshll.u32 [#allocation6], 4
      %s37 = int_to_ptr.vmem [resolvable:$true] %s36
      %39 = dma.hbm_to_vmem [thread:$0]  %s0, 128, %s37, [#allocation7]
    $region5: #{generator_forward.1} parent=1 // pred_fallthru
      _
    // Predicated region
    $region6: #{generator_forward.1} parent=1 // pred_check
      _
    $region7: #{generator_forward.1} parent=1 // pred_check_branch
      %41 = sbr.rel (0) target = $region9
    $region8: #{generator_forward.1} parent=1 // pred_region
      %s43 = ssub.s32 1024, 1024
      %44 = vsyncadd [#allocation9], %s43
      %s45 = sshll.u32 [#allocation8], 4
      %s46 = int_to_ptr.vmem [resolvable:$true] %s45
      %51 = dma.hbm_to_vmem [thread:$0]  %s1, 1024, %s46, [#allocation9], 64, 64, 4
    $region9: #{generator_forward.1} parent=1 // pred_fallthru
      _
    // Predicated region
    $region10: #{generator_forward.1} parent=1 // pred_check
      _
    $region11: #{generator_forward.1} parent=1 // pred_check_branch
      %53 = sbr.rel (0) target = $region13
    $region12: #{generator_forward.1} parent=1 // pred_region
      %s55 = ssub.s32 16, 16
      %56 = vsyncadd [#allocation9], %s55
      %s58 = sshll.u32 [#allocation10], 4
      %s59 = int_to_ptr.vmem [resolvable:$true] %s58
      %61 = dma.hbm_to_vmem [thread:$0]  %s2, 16, %s59, [#allocation9]
    $region13: #{generator_forward.1} parent=1 // pred_fallthru
      _
    // Predicated region
    $region14: #{generator_forward.1} parent=1 // pred_check
      _
    $region15: #{generator_forward.1} parent=1 // pred_check_branch
      %63 = sbr.rel (0) target = $region17
    $region16: #{generator_forward.1} parent=1 // pred_region
      %s65 = ssub.s32 2048, 2048
      %66 = vsyncadd [#allocation12], %s65
      %s67 = sshll.u32 [#allocation11], 4
      %s68 = int_to_ptr.vmem [resolvable:$true] %s67
      %73 = dma.hbm_to_vmem [thread:$0]  %s3, 2048, %s68, [#allocation12], 128, 128, 8
    $region17: #{generator_forward.1} parent=1 // pred_fallthru
      _
    // Predicated region
    $region18: #{generator_forward.1} parent=1 // pred_check
      _
    $region19: #{generator_forward.1} parent=1 // pred_check_branch
      %75 = sbr.rel (0) target = $region21
    $region20: #{generator_forward.1} parent=1 // pred_region
      %s77 = ssub.s32 32, 32
      %78 = vsyncadd [#allocation12], %s77
      %s80 = sshll.u32 [#allocation13], 4
      %s81 = int_to_ptr.vmem [resolvable:$true] %s80
      %83 = dma.hbm_to_vmem [thread:$0]  %s4, 32, %s81, [#allocation12]
    $region21: #{generator_forward.1} parent=1 // pred_fallthru
      _
    // Predicated region
    $region22: #{generator_forward.1} parent=1 // pred_check
      _
    $region23: #{generator_forward.1} parent=1 // pred_check_branch
      %85 = sbr.rel (0) target = $region25
    $region24: #{generator_forward.1} parent=1 // pred_region
      %s87 = ssub.s32 32, 32
      %88 = vsyncadd [#allocation15], %s87
      %s90 = sshll.u32 [#allocation14], 4
      %s91 = int_to_ptr.vmem [resolvable:$true] %s90
      %93 = dma.hbm_to_vmem [thread:$0]  %s5, 32, %s91, [#allocation15]
    $region25: #{generator_forward.1} parent=1 // pred_fallthru
      _
    // Predicated region
    $region26: #{generator_forward.1} parent=1 // pred_check
      _
    $region27: #{generator_forward.1} parent=1 // pred_check_branch
      %95 = sbr.rel (0) target = $region29
    $region28: #{generator_forward.1} parent=1 // pred_region
      %s97 = ssub.s32 32, 32
      %98 = vsyncadd [#allocation15], %s97
      %s100 = sshll.u32 [#allocation16], 4
      %s101 = int_to_ptr.vmem [resolvable:$true] %s100
      %103 = dma.hbm_to_vmem [thread:$0]  %s6, 32, %s101, [#allocation15]
    $region29: #{generator_forward.1} parent=1 // pred_fallthru
      _
    // Predicated region
    $region30: #{generator_forward.1} parent=1 // pred_check
      _
    $region31: #{generator_forward.1} parent=1 // pred_check_branch
      %105 = sbr.rel (0) target = $region33
    $region32: #{generator_forward.1} parent=1 // pred_region
      %s107 = ssub.s32 8192, 8192
      %108 = vsyncadd [#allocation18], %s107
      %s109 = sshll.u32 [#allocation17], 4
      %s110 = int_to_ptr.vmem [resolvable:$true] %s109
      %115 = dma.hbm_to_vmem [thread:$0]  %s7, 8192, %s110, [#allocation18], 256, 256, 16
    $region33: #{generator_forward.1} parent=1 // pred_fallthru
      _
    // Predicated region
    $region34: #{generator_forward.1} parent=1 // pred_check
      _
    $region35: #{generator_forward.1} parent=1 // pred_check_branch
      %117 = sbr.rel (0) target = $region37
    $region36: #{generator_forward.1} parent=1 // pred_region
      %s119 = ssub.s32 64, 64
      %120 = vsyncadd [#allocation18], %s119
      %s122 = sshll.u32 [#allocation19], 4
      %s123 = int_to_ptr.vmem [resolvable:$true] %s122
      %125 = dma.hbm_to_vmem [thread:$0]  %s8, 64, %s123, [#allocation18]
    $region37: #{generator_forward.1} parent=1 // pred_fallthru
      _
    // Predicated region
    $region38: #{generator_forward.1} parent=1 // pred_check
      _
    $region39: #{generator_forward.1} parent=1 // pred_check_branch
      %127 = sbr.rel (0) target = $region41
    $region40: #{generator_forward.1} parent=1 // pred_region
      %s129 = ssub.s32 64, 64
      %130 = vsyncadd [#allocation21], %s129
      %s132 = sshll.u32 [#allocation20], 4
      %s133 = int_to_ptr.vmem [resolvable:$true] %s132
      %135 = dma.hbm_to_vmem [thread:$0]  %s9, 64, %s133, [#allocation21]
    $region41: #{generator_forward.1} parent=1 // pred_fallthru
      _
    // Predicated region
    $region42: #{generator_forward.1} parent=1 // pred_check
      _
    $region43: #{generator_forward.1} parent=1 // pred_check_branch
      %137 = sbr.rel (0) target = $region45
    $region44: #{generator_forward.1} parent=1 // pred_region
      %s139 = ssub.s32 64, 64
      %140 = vsyncadd [#allocation21], %s139
      %s142 = sshll.u32 [#allocation22], 4
      %s143 = int_to_ptr.vmem [resolvable:$true] %s142
      %145 = dma.hbm_to_vmem [thread:$0]  %s10, 64, %s143, [#allocation21]
    $region45: #{generator_forward.1} parent=1 // pred_fallthru
      _
    // Predicated region
    $region46: #{generator_forward.1} parent=1 // pred_check
      _
    $region47: #{generator_forward.1} parent=1 // pred_check_branch
      %147 = sbr.rel (0) target = $region49
    $region48: #{generator_forward.1} parent=1 // pred_region
      %s149 = ssub.s32 128, 128
      %150 = vsyncadd [#allocation24], %s149
      %s152 = sshll.u32 [#allocation23], 4
      %s153 = int_to_ptr.vmem [resolvable:$true] %s152
      %155 = dma.hbm_to_vmem [thread:$0]  %s12, 128, %s153, [#allocation24]
    $region49: #{generator_forward.1} parent=1 // pred_fallthru
      _
    // Predicated region
    $region50: #{generator_forward.1} parent=1 // pred_check
      _
    $region51: #{generator_forward.1} parent=1 // pred_check_branch
      %157 = sbr.rel (0) target = $region53
    $region52: #{generator_forward.1} parent=1 // pred_region
      %s159 = ssub.s32 128, 128
      %160 = vsyncadd [#allocation24], %s159
      %s162 = sshll.u32 [#allocation25], 4
      %s163 = int_to_ptr.vmem [resolvable:$true] %s162
      %165 = dma.hbm_to_vmem [thread:$0]  %s13, 128, %s163, [#allocation24]
    $region53: #{generator_forward.1} parent=1 // pred_fallthru
      _
    // Predicated region
    $region54: #{generator_forward.1} parent=1 // pred_check
      _
    $region55: #{generator_forward.1} parent=1 // pred_check_branch
      %167 = sbr.rel (0) target = $region57
    $region56: #{generator_forward.1} parent=1 // pred_region
      %s169 = ssub.s32 128, 128
      %170 = vsyncadd [#allocation27], %s169
      %s172 = sshll.u32 [#allocation26], 4
      %s173 = int_to_ptr.vmem [resolvable:$true] %s172
      %175 = dma.hbm_to_vmem [thread:$0]  %s14, 128, %s173, [#allocation27]
    $region57: #{generator_forward.1} parent=1 // pred_fallthru
      _
    // Predicated region
    $region58: #{generator_forward.1} parent=1 // pred_check
      _
    $region59: #{generator_forward.1} parent=1 // pred_check_branch
      %177 = sbr.rel (0) target = $region61
    $region60: #{generator_forward.1} parent=1 // pred_region
      %s179 = ssub.s32 112, 112
      %180 = vsyncadd [#allocation27], %s179
      %s182 = sshll.u32 [#allocation28], 4
      %s183 = int_to_ptr.vmem [resolvable:$true] %s182
      %185 = dma.hbm_to_vmem [thread:$0]  %s16, 112, %s183, [#allocation27]
    $region61: #{generator_forward.1} parent=1 // pred_fallthru
      _
    // Predicated region
    $region62: #{generator_forward.1} parent=1 // pred_check
      _
    $region63: #{generator_forward.1} parent=1 // pred_check_branch
      %187 = sbr.rel (0) target = $region65
    $region64: #{generator_forward.1} parent=1 // pred_region
      %188 = dma.done [#allocation7], 128
    $region65: #{generator_forward.1} parent=1 // pred_fallthru
      _
    // Predicated region
    $region66: #{generator_forward.1} parent=1 // pred_check
      _
    $region67: #{generator_forward.1} parent=1 // pred_check_branch
      %190 = sbr.rel (0) target = $region69
    $region68: #{generator_forward.1} parent=1 // pred_region
      %191 = dma.done [#allocation9], 1024
    $region69: #{generator_forward.1} parent=1 // pred_fallthru
      _
    // Predicated region
    $region70: #{generator_forward.1} parent=1 // pred_check
      _
    $region71: #{generator_forward.1} parent=1 // pred_check_branch
      %193 = sbr.rel (0) target = $region73
    $region72: #{generator_forward.1} parent=1 // pred_region
      %194 = dma.done [#allocation9], 16
    $region73: #{generator_forward.1} parent=1 // pred_fallthru
      _
    // Predicated region
    $region74: #{generator_forward.1} parent=1 // pred_check
      _
    $region75: #{generator_forward.1} parent=1 // pred_check_branch
      %196 = sbr.rel (0) target = $region77
    $region76: #{generator_forward.1} parent=1 // pred_region
      %197 = dma.done [#allocation12], 2048
    $region77: #{generator_forward.1} parent=1 // pred_fallthru
      _
    // Predicated region
    $region78: #{generator_forward.1} parent=1 // pred_check
      _
    $region79: #{generator_forward.1} parent=1 // pred_check_branch
      %199 = sbr.rel (0) target = $region81
    $region80: #{generator_forward.1} parent=1 // pred_region
      %200 = dma.done [#allocation12], 32
    $region81: #{generator_forward.1} parent=1 // pred_fallthru
      _
    // Predicated region
    $region82: #{generator_forward.1} parent=1 // pred_check
      _
    $region83: #{generator_forward.1} parent=1 // pred_check_branch
      %202 = sbr.rel (0) target = $region85
    $region84: #{generator_forward.1} parent=1 // pred_region
      %203 = dma.done [#allocation15], 32
    $region85: #{generator_forward.1} parent=1 // pred_fallthru
      _
    // Predicated region
    $region86: #{generator_forward.1} parent=1 // pred_check
      _
    $region87: #{generator_forward.1} parent=1 // pred_check_branch
      %205 = sbr.rel (0) target = $region89
    $region88: #{generator_forward.1} parent=1 // pred_region
      %206 = dma.done [#allocation15], 32
    $region89: #{generator_forward.1} parent=1 // pred_fallthru
      _
    // Predicated region
    $region90: #{generator_forward.1} parent=1 // pred_check
      _
    $region91: #{generator_forward.1} parent=1 // pred_check_branch
      %208 = sbr.rel (0) target = $region93
    $region92: #{generator_forward.1} parent=1 // pred_region
      %209 = dma.done [#allocation18], 8192
    $region93: #{generator_forward.1} parent=1 // pred_fallthru
      _
    // Predicated region
    $region94: #{generator_forward.1} parent=1 // pred_check
      _
    $region95: #{generator_forward.1} parent=1 // pred_check_branch
      %211 = sbr.rel (0) target = $region97
    $region96: #{generator_forward.1} parent=1 // pred_region
      %212 = dma.done [#allocation18], 64
    $region97: #{generator_forward.1} parent=1 // pred_fallthru
      _
    // Predicated region
    $region98: #{generator_forward.1} parent=1 // pred_check
      _
    $region99: #{generator_forward.1} parent=1 // pred_check_branch
      %214 = sbr.rel (0) target = $region101
    $region100: #{generator_forward.1} parent=1 // pred_region
      %215 = dma.done [#allocation21], 64
    $region101: #{generator_forward.1} parent=1 // pred_fallthru
      _
    // Predicated region
    $region102: #{generator_forward.1} parent=1 // pred_check
      _
    $region103: #{generator_forward.1} parent=1 // pred_check_branch
      %217 = sbr.rel (0) target = $region105
    $region104: #{generator_forward.1} parent=1 // pred_region
      %218 = dma.done [#allocation21], 64
    $region105: #{generator_forward.1} parent=1 // pred_fallthru
      _
    // Predicated region
    $region106: #{generator_forward.1} parent=1 // pred_check
      _
    $region107: #{generator_forward.1} parent=1 // pred_check_branch
      %220 = sbr.rel (0) target = $region109
    $region108: #{generator_forward.1} parent=1 // pred_region
      %221 = dma.done [#allocation24], 128
    $region109: #{generator_forward.1} parent=1 // pred_fallthru
      _
    // Predicated region
    $region110: #{generator_forward.1} parent=1 // pred_check
      _
    $region111: #{generator_forward.1} parent=1 // pred_check_branch
      %223 = sbr.rel (0) target = $region113
    $region112: #{generator_forward.1} parent=1 // pred_region
      %224 = dma.done [#allocation24], 128
    $region113: #{generator_forward.1} parent=1 // pred_fallthru
      _
    // Predicated region
    $region114: #{generator_forward.1} parent=1 // pred_check
      _
    $region115: #{generator_forward.1} parent=1 // pred_check_branch
      %226 = sbr.rel (0) target = $region117
    $region116: #{generator_forward.1} parent=1 // pred_region
      %227 = dma.done [#allocation27], 128
    $region117: #{generator_forward.1} parent=1 // pred_fallthru
      _
    // Predicated region
    $region118: #{generator_forward.1} parent=1 // pred_check
      _
    $region119: #{generator_forward.1} parent=1 // pred_check_branch
      %229 = sbr.rel (0) target = $region121
    $region120: #{generator_forward.1} parent=1 // pred_region
      %230 = dma.done [#allocation27], 112
    $region121: #{generator_forward.1} parent=1 // pred_fallthru
      _
    %s233 = sshll.u32 1, 14
    %s234 = sxor.u32 4294967295, %s233
    %s236 = sld [smem:[#allocation0]]
    %s237 = sadd.s32 2, %s236
    %s239 = sshll.u32 7, 26
    %s240 = sxor.u32 4294967295, %s239
    %s241 = sand.u32 0, %s240
    %s242 = sshll.u32 %s237, 26
    %s243 = sor.u32 %s241, %s242
    %s244 = sshll.u32 [#allocation3], 4
    %s245 = int_to_ptr.vmem [resolvable:$true] %s244
    %248 = sst [smem:[#allocation30]] 1024
    %s249 = scalar_lea.smem [#allocation30], 1
    %250 = sst [smem:[%s249]] 1024
    %s251 = scalar_lea.smem [#allocation30], 2
    %252 = sst [smem:[%s251]] 8
    %s253 = scalar_lea.smem [#allocation30], 3
    %254 = sst [smem:[%s253]] 64
    %s255 = scalar_lea.smem [#allocation30], 4
    %256 = sst [smem:[%s255]] 128
    %s257 = scalar_lea.smem [#allocation30], 5
    %258 = sst [smem:[%s257]] 2
    %s259 = scalar_lea.smem [#allocation30], 6
    %260 = sst [smem:[%s259]] 512
    %s261 = scalar_lea.smem [#allocation30], 7
    %262 = sst [smem:[%s261]] 64
    %s263 = scalar_lea.smem [#allocation30], 8
    %264 = sst [smem:[%s263]] 4
    %266 = dma.general %s11, 32768, %s245, [#allocation5], [#allocation29], [#allocation30], %s243, 0
    %s267 = scalar_lea.sflag [#allocation5], 1
    %s269 = sshll.u32 1, 14
    %s270 = sxor.u32 4294967295, %s269
    %s272 = sadd.s32 2, %s236
    %s274 = sshll.u32 7, 26
    %s275 = sxor.u32 4294967295, %s274
    %s276 = sand.u32 0, %s275
    %s277 = sshll.u32 %s272, 26
    %s278 = sor.u32 %s276, %s277
    %s279 = sshll.u32 [#allocation4], 4
    %s280 = int_to_ptr.vmem [resolvable:$true] %s279
    %283 = sst [smem:[#allocation32]] 896
    %s284 = scalar_lea.smem [#allocation32], 1
    %285 = sst [smem:[%s284]] 896
    %s286 = scalar_lea.smem [#allocation32], 2
    %287 = sst [smem:[%s286]] 7
    %s288 = scalar_lea.smem [#allocation32], 3
    %289 = sst [smem:[%s288]] 64
    %s290 = scalar_lea.smem [#allocation32], 4
    %291 = sst [smem:[%s290]] 128
    %s292 = scalar_lea.smem [#allocation32], 5
    %293 = sst [smem:[%s292]] 2
    %s294 = scalar_lea.smem [#allocation32], 6
    %295 = sst [smem:[%s294]] 448
    %s296 = scalar_lea.smem [#allocation32], 7
    %297 = sst [smem:[%s296]] 64
    %s298 = scalar_lea.smem [#allocation32], 8
    %299 = sst [smem:[%s298]] 4
    %301 = dma.general %s15, 57344, %s280, %s267, [#allocation31], [#allocation32], %s278, 0
    %302 = vst [vmem:[#allocation2] sm:$0xff] 0.0
    %v303 = vld [vmem:[#allocation6] sm:$0xff]
    %vm304 = vcmask 818176
    %305 = vst.msk [vmem:[#allocation2] sm:$0xff] %vm304, %v303
    %v306 = vld [vmem:[#allocation2] sm:$0xff]
    %v307 = vld [vmem:[#allocation8] sm:$0xf]
    %v308 = vld [vmem:[#allocation8 + $0x4] sm:$0xf]
    %v309 = vld [vmem:[#allocation8 + $0x8] sm:$0xf]
    %v310 = vld [vmem:[#allocation8 + $0xc] sm:$0xf]
    %v311 = vld [vmem:[#allocation8 + $0x10] sm:$0xf]
    %v312 = vld [vmem:[#allocation8 + $0x14] sm:$0xf]
    %v313 = vld [vmem:[#allocation8 + $0x18] sm:$0xf]
    %v314 = vld [vmem:[#allocation8 + $0x1c] sm:$0xf]
    %v315 = vld [vmem:[#allocation8 + $0x20] sm:$0xf]
    %v316 = vld [vmem:[#allocation8 + $0x24] sm:$0xf]
    %v317 = vld [vmem:[#allocation8 + $0x28] sm:$0xf]
    %v318 = vld [vmem:[#allocation8 + $0x2c] sm:$0xf]
    %v319 = vld [vmem:[#allocation8 + $0x30] sm:$0xf]
    %v320 = vld [vmem:[#allocation8 + $0x34] sm:$0xf]
    %v321 = vld [vmem:[#allocation8 + $0x38] sm:$0xf]
    %v322 = vld [vmem:[#allocation8 + $0x3c] sm:$0xf]
    %v323 = vpack.c.bf16 %v306, %v306
    %v324 = vld [vmem:[#allocation10] sm:$0x1]
    %v326 = vlaneseq
    %v327 = vshrl.u32 %v326, 7
    %v328 = vsub.s32 0, %v327
    %v329 = vrot.slane %v324, %v328
    %v347 = vunpack.c.l.b16 %v307
    %v348 = vunpack.c.l.b16 %v308
    %v349 = vunpack.c.l.b16 %v309
    %v350 = vunpack.c.l.b16 %v310
    %v351 = vunpack.c.l.b16 %v311
    %v352 = vunpack.c.l.b16 %v312
    %v353 = vunpack.c.l.b16 %v313
    %v354 = vunpack.c.l.b16 %v314
    %v355 = vunpack.c.l.b16 %v315
    %v356 = vunpack.c.l.b16 %v316
    %v357 = vunpack.c.l.b16 %v317
    %v358 = vunpack.c.l.b16 %v318
    %v359 = vunpack.c.l.b16 %v319
    %v360 = vunpack.c.l.b16 %v320
    %v361 = vunpack.c.l.b16 %v321
    %v362 = vunpack.c.l.b16 %v322
    %v363 = vpack.c.b16 %v348, %v347
    %v364 = vpack.c.b16 %v350, %v349
    %v365 = vpack.c.b16 %v352, %v351
    %v366 = vpack.c.b16 %v354, %v353
    %v367 = vpack.c.b16 %v356, %v355
    %v368 = vpack.c.b16 %v358, %v357
    %v369 = vpack.c.b16 %v360, %v359
    %v370 = vpack.c.b16 %v362, %v361
    %379 = vmatprep.subr.bf16.mxu0 0
    %380 = vmatpush1.bf16.msra.mxu0 %v363
    %381 = vmatprep.subr.bf16.mxu0 0
    %382 = vmatpush1.bf16.msra.mxu0 %v364
    %383 = vmatprep.subr.bf16.mxu0 0
    %384 = vmatpush1.bf16.msra.mxu0 %v365
    %385 = vmatprep.subr.bf16.mxu0 0
    %386 = vmatpush1.bf16.msra.mxu0 %v366
    %387 = vmatprep.subr.bf16.mxu0 0
    %388 = vmatpush1.bf16.msra.mxu0 %v367
    %389 = vmatprep.subr.bf16.mxu0 0
    %390 = vmatpush1.bf16.msra.mxu0 %v368
    %391 = vmatprep.subr.bf16.mxu0 0
    %392 = vmatpush1.bf16.msra.mxu0 %v369
    %393 = vmatprep.subr.bf16.mxu0 0
    %394 = vmatpush1.bf16.msra.mxu0 %v370
    %395 = vmatprep.subr.bf16.mxu0 0
    %396 = vmatpush1.bf16.msra.mxu0 0
    %397 = vmatprep.subr.bf16.mxu0 0
    %398 = vmatpush1.bf16.msra.mxu0 0
    %399 = vmatprep.subr.bf16.mxu0 0
    %400 = vmatpush1.bf16.msra.mxu0 0
    %401 = vmatprep.subr.bf16.mxu0 0
    %402 = vmatpush1.bf16.msra.mxu0 0
    %403 = vmatprep.subr.bf16.mxu0 0
    %404 = vmatpush1.bf16.msra.mxu0 0
    %405 = vmatprep.subr.bf16.mxu0 0
    %406 = vmatpush1.bf16.msra.mxu0 0
    %407 = vmatprep.subr.bf16.mxu0 0
    %408 = vmatpush1.bf16.msra.mxu0 0
    %409 = vmatprep.subr.bf16.mxu0 0
    %410 = vmatpush1.bf16.msra.mxu0 0
    %411 = vmatprep.mubr.bf16.mxu0 0
    %412 = vmatmul.mubr.bf16.gmra.mrb[0].mxu0 %v323
    %v413 = vpop.f32.mrb[0].mxu0
    %v414 = vadd.f32 %v329, %v413
    %v415 = vpop.f32.mrb[0].mxu0
    %v416 = vpop.f32.mrb[0].mxu0
    %v417 = vpop.f32.mrb[0].mxu0
    %418 = vdwg.mxu0
    %v419 = vmul.f32 %v414, 0.2
    %v420 = vmax.f32 %v414, %v419
    %v421 = vld [vmem:[#allocation11] sm:$0xff]
    %v422 = vld [vmem:[#allocation11 + $0x8] sm:$0xff]
    %v423 = vld [vmem:[#allocation11 + $0x10] sm:$0xff]
    %v424 = vld [vmem:[#allocation11 + $0x18] sm:$0xff]
    %v425 = vld [vmem:[#allocation11 + $0x20] sm:$0xff]
    %v426 = vld [vmem:[#allocation11 + $0x28] sm:$0xff]
    %v427 = vld [vmem:[#allocation11 + $0x30] sm:$0xff]
    %v428 = vld [vmem:[#allocation11 + $0x38] sm:$0xff]
    %v429 = vld [vmem:[#allocation11 + $0x40] sm:$0xff]
    %v430 = vld [vmem:[#allocation11 + $0x48] sm:$0xff]
    %v431 = vld [vmem:[#allocation11 + $0x50] sm:$0xff]
    %v432 = vld [vmem:[#allocation11 + $0x58] sm:$0xff]
    %v433 = vld [vmem:[#allocation11 + $0x60] sm:$0xff]
    %v434 = vld [vmem:[#allocation11 + $0x68] sm:$0xff]
    %v435 = vld [vmem:[#allocation11 + $0x70] sm:$0xff]
    %v436 = vld [vmem:[#allocation11 + $0x78] sm:$0xff]
    %v437 = vpack.c.bf16 %v420, %v420
    %v438 = vld [vmem:[#allocation13] sm:$0x3]
    %v440 = vlaneseq
    %v441 = vshrl.u32 %v440, 7
    %v442 = vsub.s32 0, %v441
    %v443 = vrot.slane %v438, %v442
    %v444 = vlaneseq
    %v445 = vshrl.u32 %v444, 7
    %v446 = vsub.s32 1, %v445
    %v447 = vrot.slane %v438, %v446
    %v466 = vunpack.c.l.b16 %v421
    %v467 = vunpack.c.h.b16 %v421
    %v468 = vunpack.c.l.b16 %v422
    %v469 = vunpack.c.h.b16 %v422
    %v470 = vunpack.c.l.b16 %v423
    %v471 = vunpack.c.h.b16 %v423
    %v472 = vunpack.c.l.b16 %v424
    %v473 = vunpack.c.h.b16 %v424
    %v474 = vunpack.c.l.b16 %v425
    %v475 = vunpack.c.h.b16 %v425
    %v476 = vunpack.c.l.b16 %v426
    %v477 = vunpack.c.h.b16 %v426
    %v478 = vunpack.c.l.b16 %v427
    %v479 = vunpack.c.h.b16 %v427
    %v480 = vunpack.c.l.b16 %v428
    %v481 = vunpack.c.h.b16 %v428
    %v482 = vunpack.c.l.b16 %v429
    %v483 = vunpack.c.h.b16 %v429
    %v484 = vunpack.c.l.b16 %v430
    %v485 = vunpack.c.h.b16 %v430
    %v486 = vunpack.c.l.b16 %v431
    %v487 = vunpack.c.h.b16 %v431
    %v488 = vunpack.c.l.b16 %v432
    %v489 = vunpack.c.h.b16 %v432
    %v490 = vunpack.c.l.b16 %v433
    %v491 = vunpack.c.h.b16 %v433
    %v492 = vunpack.c.l.b16 %v434
    %v493 = vunpack.c.h.b16 %v434
    %v494 = vunpack.c.l.b16 %v435
    %v495 = vunpack.c.h.b16 %v435
    %v496 = vunpack.c.l.b16 %v436
    %v497 = vunpack.c.h.b16 %v436
    %v498 = vpack.c.b16 %v468, %v466
    %v499 = vpack.c.b16 %v469, %v467
    %v500 = vpack.c.b16 %v472, %v470
    %v501 = vpack.c.b16 %v473, %v471
    %v502 = vpack.c.b16 %v476, %v474
    %v503 = vpack.c.b16 %v477, %v475
    %v504 = vpack.c.b16 %v480, %v478
    %v505 = vpack.c.b16 %v481, %v479
    %v506 = vpack.c.b16 %v484, %v482
    %v507 = vpack.c.b16 %v485, %v483
    %v508 = vpack.c.b16 %v488, %v486
    %v509 = vpack.c.b16 %v489, %v487
    %v510 = vpack.c.b16 %v492, %v490
    %v511 = vpack.c.b16 %v493, %v491
    %v512 = vpack.c.b16 %v496, %v494
    %v513 = vpack.c.b16 %v497, %v495
    %530 = vmatprep.subr.bf16.mxu0 %v499
    %531 = vmatpush1.bf16.msra.mxu0 %v498
    %532 = vmatprep.subr.bf16.mxu0 %v501
    %533 = vmatpush1.bf16.msra.mxu0 %v500
    %534 = vmatprep.subr.bf16.mxu0 %v503
    %535 = vmatpush1.bf16.msra.mxu0 %v502
    %536 = vmatprep.subr.bf16.mxu0 %v505
    %537 = vmatpush1.bf16.msra.mxu0 %v504
    %538 = vmatprep.subr.bf16.mxu0 %v507
    %539 = vmatpush1.bf16.msra.mxu0 %v506
    %540 = vmatprep.subr.bf16.mxu0 %v509
    %541 = vmatpush1.bf16.msra.mxu0 %v508
    %542 = vmatprep.subr.bf16.mxu0 %v511
    %543 = vmatpush1.bf16.msra.mxu0 %v510
    %544 = vmatprep.subr.bf16.mxu0 %v513
    %545 = vmatpush1.bf16.msra.mxu0 %v512
    %546 = vmatprep.subr.bf16.mxu0 0
    %547 = vmatpush1.bf16.msra.mxu0 0
    %548 = vmatprep.subr.bf16.mxu0 0
    %549 = vmatpush1.bf16.msra.mxu0 0
    %550 = vmatprep.subr.bf16.mxu0 0
    %551 = vmatpush1.bf16.msra.mxu0 0
    %552 = vmatprep.subr.bf16.mxu0 0
    %553 = vmatpush1.bf16.msra.mxu0 0
    %554 = vmatprep.subr.bf16.mxu0 0
    %555 = vmatpush1.bf16.msra.mxu0 0
    %556 = vmatprep.subr.bf16.mxu0 0
    %557 = vmatpush1.bf16.msra.mxu0 0
    %558 = vmatprep.subr.bf16.mxu0 0
    %559 = vmatpush1.bf16.msra.mxu0 0
    %560 = vmatprep.subr.bf16.mxu0 0
    %561 = vmatpush1.bf16.msra.mxu0 0
    %562 = vmatprep.mubr.bf16.mxu0 0
    %563 = vmatmul.mubr.bf16.gmra.mrb[0].mxu0 %v437
    %v564 = vpop.f32.mrb[0].mxu0
    %v565 = vadd.f32 %v443, %v564
    %v566 = vpop.f32.mrb[0].mxu0
    %v567 = vadd.f32 %v447, %v566
    %v568 = vpop.f32.mrb[0].mxu0
    %v569 = vpop.f32.mrb[0].mxu0
    %570 = vdwg.mxu0
    %v571 = vrot.slane %v565, 4
    %v572 = vadd.f32 %v565, %v571
    %v573 = vrot.slane %v572, 2
    %v574 = vadd.f32 %v572, %v573
    %v575 = vrot.slane %v574, 1
    %v576 = vadd.f32 %v574, %v575
    %v577 = vrot.slane %v567, 4
    %v578 = vadd.f32 %v567, %v577
    %v579 = vrot.slane %v578, 2
    %v580 = vadd.f32 %v578, %v579
    %v581 = vrot.slane %v580, 1
    %v582 = vadd.f32 %v580, %v581
    %v583 = vrcp.pop 8.0
    %v584 = vmul.f32 %v576, %v583
    %v585 = vmul.f32 %v582, %v583
    %v586 = vmul.f32 %v565, %v565
    %v587 = vmul.f32 %v567, %v567
    %v588 = vrot.slane %v586, 4
    %v589 = vadd.f32 %v586, %v588
    %v590 = vrot.slane %v589, 2
    %v591 = vadd.f32 %v589, %v590
    %v592 = vrot.slane %v591, 1
    %v593 = vadd.f32 %v591, %v592
    %v594 = vrot.slane %v587, 4
    %v595 = vadd.f32 %v587, %v594
    %v596 = vrot.slane %v595, 2
    %v597 = vadd.f32 %v595, %v596
    %v598 = vrot.slane %v597, 1
    %v599 = vadd.f32 %v597, %v598
    %v600 = vmul.f32 %v593, %v583
    %v601 = vmul.f32 %v599, %v583
    %v602 = vmul.f32 %v584, %v584
    %v603 = vmul.f32 %v585, %v585
    %v604 = vsub.f32 %v600, %v602
    %v605 = vsub.f32 %v601, %v603
    %v606 = vsub.f32 %v565, %v584
    %v607 = vsub.f32 %v567, %v585
    %v608 = vadd.f32 %v604, 0.8
    %v609 = vadd.f32 %v605, 0.8
    %v610 = vrsqrt.pop %v608
    %v611 = vrsqrt.pop %v609
    %v612 = vmul.f32 %v606, %v610
    %v613 = vmul.f32 %v607, %v611
    %v614 = vld [vmem:[#allocation14] sm:$0x3]
    %v616 = vlaneseq
    %v617 = vshrl.u32 %v616, 7
    %v618 = vsub.s32 0, %v617
    %v619 = vrot.slane %v614, %v618
    %v620 = vlaneseq
    %v621 = vshrl.u32 %v620, 7
    %v622 = vsub.s32 1, %v621
    %v623 = vrot.slane %v614, %v622
    %v626 = vmul.f32 %v619, %v612
    %v627 = vmul.f32 %v623, %v613
    %v628 = vld [vmem:[#allocation16] sm:$0x3]
    %v630 = vlaneseq
    %v631 = vshrl.u32 %v630, 7
    %v632 = vsub.s32 0, %v631
    %v633 = vrot.slane %v628, %v632
    %v634 = vlaneseq
    %v635 = vshrl.u32 %v634, 7
    %v636 = vsub.s32 1, %v635
    %v637 = vrot.slane %v628, %v636
    %v640 = vadd.f32 %v626, %v633
    %v641 = vadd.f32 %v627, %v637
    %v642 = vmul.f32 %v640, 0.2
    %v643 = vmul.f32 %v641, 0.2
    %v644 = vmax.f32 %v640, %v642
    %v645 = vmax.f32 %v641, %v643
    %v646 = vld [vmem:[#allocation17] sm:$0xff]
    %v647 = vld [vmem:[#allocation17 + $0x8] sm:$0xff]
    %v648 = vld [vmem:[#allocation17 + $0x10] sm:$0xff]
    %v649 = vld [vmem:[#allocation17 + $0x18] sm:$0xff]
    %v650 = vld [vmem:[#allocation17 + $0x20] sm:$0xff]
    %v651 = vld [vmem:[#allocation17 + $0x28] sm:$0xff]
    %v652 = vld [vmem:[#allocation17 + $0x30] sm:$0xff]
    %v653 = vld [vmem:[#allocation17 + $0x38] sm:$0xff]
    %v654 = vld [vmem:[#allocation17 + $0x40] sm:$0xff]
    %v655 = vld [vmem:[#allocation17 + $0x48] sm:$0xff]
    %v656 = vld [vmem:[#allocation17 + $0x50] sm:$0xff]
    %v657 = vld [vmem:[#allocation17 + $0x58] sm:$0xff]
    %v658 = vld [vmem:[#allocation17 + $0x60] sm:$0xff]
    %v659 = vld [vmem:[#allocation17 + $0x68] sm:$0xff]
    %v660 = vld [vmem:[#allocation17 + $0x70] sm:$0xff]
    %v661 = vld [vmem:[#allocation17 + $0x78] sm:$0xff]
    %v662 = vld [vmem:[#allocation17 + $0x80] sm:$0xff]
    %v663 = vld [vmem:[#allocation17 + $0x88] sm:$0xff]
    %v664 = vld [vmem:[#allocation17 + $0x90] sm:$0xff]
    %v665 = vld [vmem:[#allocation17 + $0x98] sm:$0xff]
    %v666 = vld [vmem:[#allocation17 + $0xa0] sm:$0xff]
    %v667 = vld [vmem:[#allocation17 + $0xa8] sm:$0xff]
    %v668 = vld [vmem:[#allocation17 + $0xb0] sm:$0xff]
    %v669 = vld [vmem:[#allocation17 + $0xb8] sm:$0xff]
    %v670 = vld [vmem:[#allocation17 + $0xc0] sm:$0xff]
    %v671 = vld [vmem:[#allocation17 + $0xc8] sm:$0xff]
    %v672 = vld [vmem:[#allocation17 + $0xd0] sm:$0xff]
    %v673 = vld [vmem:[#allocation17 + $0xd8] sm:$0xff]
    %v674 = vld [vmem:[#allocation17 + $0xe0] sm:$0xff]
    %v675 = vld [vmem:[#allocation17 + $0xe8] sm:$0xff]
    %v676 = vld [vmem:[#allocation17 + $0xf0] sm:$0xff]
    %v677 = vld [vmem:[#allocation17 + $0xf8] sm:$0xff]
    %v678 = vld [vmem:[#allocation17 + $0x100] sm:$0xff]
    %v679 = vld [vmem:[#allocation17 + $0x108] sm:$0xff]
    %v680 = vld [vmem:[#allocation17 + $0x110] sm:$0xff]
    %v681 = vld [vmem:[#allocation17 + $0x118] sm:$0xff]
    %v682 = vld [vmem:[#allocation17 + $0x120] sm:$0xff]
    %v683 = vld [vmem:[#allocation17 + $0x128] sm:$0xff]
    %v684 = vld [vmem:[#allocation17 + $0x130] sm:$0xff]
    %v685 = vld [vmem:[#allocation17 + $0x138] sm:$0xff]
    %v686 = vld [vmem:[#allocation17 + $0x140] sm:$0xff]
    %v687 = vld [vmem:[#allocation17 + $0x148] sm:$0xff]
    %v688 = vld [vmem:[#allocation17 + $0x150] sm:$0xff]
    %v689 = vld [vmem:[#allocation17 + $0x158] sm:$0xff]
    %v690 = vld [vmem:[#allocation17 + $0x160] sm:$0xff]
    %v691 = vld [vmem:[#allocation17 + $0x168] sm:$0xff]
    %v692 = vld [vmem:[#allocation17 + $0x170] sm:$0xff]
    %v693 = vld [vmem:[#allocation17 + $0x178] sm:$0xff]
    %v694 = vld [vmem:[#allocation17 + $0x180] sm:$0xff]
    %v695 = vld [vmem:[#allocation17 + $0x188] sm:$0xff]
    %v696 = vld [vmem:[#allocation17 + $0x190] sm:$0xff]
    %v697 = vld [vmem:[#allocation17 + $0x198] sm:$0xff]
    %v698 = vld [vmem:[#allocation17 + $0x1a0] sm:$0xff]
    %v699 = vld [vmem:[#allocation17 + $0x1a8] sm:$0xff]
    %v700 = vld [vmem:[#allocation17 + $0x1b0] sm:$0xff]
    %v701 = vld [vmem:[#allocation17 + $0x1b8] sm:$0xff]
    %v702 = vld [vmem:[#allocation17 + $0x1c0] sm:$0xff]
    %v703 = vld [vmem:[#allocation17 + $0x1c8] sm:$0xff]
    %v704 = vld [vmem:[#allocation17 + $0x1d0] sm:$0xff]
    %v705 = vld [vmem:[#allocation17 + $0x1d8] sm:$0xff]
    %v706 = vld [vmem:[#allocation17 + $0x1e0] sm:$0xff]
    %v707 = vld [vmem:[#allocation17 + $0x1e8] sm:$0xff]
    %v708 = vld [vmem:[#allocation17 + $0x1f0] sm:$0xff]
    %v709 = vld [vmem:[#allocation17 + $0x1f8] sm:$0xff]
    %v710 = vpack.c.bf16 %v644, %v644
    %v711 = vpack.c.bf16 %v645, %v645
    %v712 = vld [vmem:[#allocation19] sm:$0xf]
    %v714 = vlaneseq
    %v715 = vshrl.u32 %v714, 7
    %v716 = vsub.s32 0, %v715
    %v717 = vrot.slane %v712, %v716
    %v718 = vlaneseq
    %v719 = vshrl.u32 %v718, 7
    %v720 = vsub.s32 1, %v719
    %v721 = vrot.slane %v712, %v720
    %v722 = vlaneseq
    %v723 = vshrl.u32 %v722, 7
    %v724 = vsub.s32 2, %v723
    %v725 = vrot.slane %v712, %v724
    %v726 = vlaneseq
    %v727 = vshrl.u32 %v726, 7
    %v728 = vsub.s32 3, %v727
    %v729 = vrot.slane %v712, %v728
    %v798 = vunpack.c.l.b16 %v646
    %v799 = vunpack.c.h.b16 %v646
    %v800 = vunpack.c.l.b16 %v647
    %v801 = vunpack.c.h.b16 %v647
    %v802 = vunpack.c.l.b16 %v648
    %v803 = vunpack.c.h.b16 %v648
    %v804 = vunpack.c.l.b16 %v649
    %v805 = vunpack.c.h.b16 %v649
    %v806 = vunpack.c.l.b16 %v650
    %v807 = vunpack.c.h.b16 %v650
    %v808 = vunpack.c.l.b16 %v651
    %v809 = vunpack.c.h.b16 %v651
    %v810 = vunpack.c.l.b16 %v652
    %v811 = vunpack.c.h.b16 %v652
    %v812 = vunpack.c.l.b16 %v653
    %v813 = vunpack.c.h.b16 %v653
    %v814 = vunpack.c.l.b16 %v654
    %v815 = vunpack.c.h.b16 %v654
    %v816 = vunpack.c.l.b16 %v655
    %v817 = vunpack.c.h.b16 %v655
    %v818 = vunpack.c.l.b16 %v656
    %v819 = vunpack.c.h.b16 %v656
    %v820 = vunpack.c.l.b16 %v657
    %v821 = vunpack.c.h.b16 %v657
    %v822 = vunpack.c.l.b16 %v658
    %v823 = vunpack.c.h.b16 %v658
    %v824 = vunpack.c.l.b16 %v659
    %v825 = vunpack.c.h.b16 %v659
    %v826 = vunpack.c.l.b16 %v660
    %v827 = vunpack.c.h.b16 %v660
    %v828 = vunpack.c.l.b16 %v661
    %v829 = vunpack.c.h.b16 %v661
    %v830 = vunpack.c.l.b16 %v662
    %v831 = vunpack.c.h.b16 %v662
    %v832 = vunpack.c.l.b16 %v663
    %v833 = vunpack.c.h.b16 %v663
    %v834 = vunpack.c.l.b16 %v664
    %v835 = vunpack.c.h.b16 %v664
    %v836 = vunpack.c.l.b16 %v665
    %v837 = vunpack.c.h.b16 %v665
    %v838 = vunpack.c.l.b16 %v666
    %v839 = vunpack.c.h.b16 %v666
    %v840 = vunpack.c.l.b16 %v667
    %v841 = vunpack.c.h.b16 %v667
    %v842 = vunpack.c.l.b16 %v668
    %v843 = vunpack.c.h.b16 %v668
    %v844 = vunpack.c.l.b16 %v669
    %v845 = vunpack.c.h.b16 %v669
    %v846 = vunpack.c.l.b16 %v670
    %v847 = vunpack.c.h.b16 %v670
    %v848 = vunpack.c.l.b16 %v671
    %v849 = vunpack.c.h.b16 %v671
    %v850 = vunpack.c.l.b16 %v672
    %v851 = vunpack.c.h.b16 %v672
    %v852 = vunpack.c.l.b16 %v673
    %v853 = vunpack.c.h.b16 %v673
    %v854 = vunpack.c.l.b16 %v674
    %v855 = vunpack.c.h.b16 %v674
    %v856 = vunpack.c.l.b16 %v675
    %v857 = vunpack.c.h.b16 %v675
    %v858 = vunpack.c.l.b16 %v676
    %v859 = vunpack.c.h.b16 %v676
    %v860 = vunpack.c.l.b16 %v677
    %v861 = vunpack.c.h.b16 %v677
    %v862 = vunpack.c.l.b16 %v678
    %v863 = vunpack.c.h.b16 %v678
    %v864 = vunpack.c.l.b16 %v679
    %v865 = vunpack.c.h.b16 %v679
    %v866 = vunpack.c.l.b16 %v680
    %v867 = vunpack.c.h.b16 %v680
    %v868 = vunpack.c.l.b16 %v681
    %v869 = vunpack.c.h.b16 %v681
    %v870 = vunpack.c.l.b16 %v682
    %v871 = vunpack.c.h.b16 %v682
    %v872 = vunpack.c.l.b16 %v683
    %v873 = vunpack.c.h.b16 %v683
    %v874 = vunpack.c.l.b16 %v684
    %v875 = vunpack.c.h.b16 %v684
    %v876 = vunpack.c.l.b16 %v685
    %v877 = vunpack.c.h.b16 %v685
    %v878 = vunpack.c.l.b16 %v686
    %v879 = vunpack.c.h.b16 %v686
    %v880 = vunpack.c.l.b16 %v687
    %v881 = vunpack.c.h.b16 %v687
    %v882 = vunpack.c.l.b16 %v688
    %v883 = vunpack.c.h.b16 %v688
    %v884 = vunpack.c.l.b16 %v689
    %v885 = vunpack.c.h.b16 %v689
    %v886 = vunpack.c.l.b16 %v690
    %v887 = vunpack.c.h.b16 %v690
    %v888 = vunpack.c.l.b16 %v691
    %v889 = vunpack.c.h.b16 %v691
    %v890 = vunpack.c.l.b16 %v692
    %v891 = vunpack.c.h.b16 %v692
    %v892 = vunpack.c.l.b16 %v693
    %v893 = vunpack.c.h.b16 %v693
    %v894 = vunpack.c.l.b16 %v694
    %v895 = vunpack.c.h.b16 %v694
    %v896 = vunpack.c.l.b16 %v695
    %v897 = vunpack.c.h.b16 %v695
    %v898 = vunpack.c.l.b16 %v696
    %v899 = vunpack.c.h.b16 %v696
    %v900 = vunpack.c.l.b16 %v697
    %v901 = vunpack.c.h.b16 %v697
    %v902 = vunpack.c.l.b16 %v698
    %v903 = vunpack.c.h.b16 %v698
    %v904 = vunpack.c.l.b16 %v699
    %v905 = vunpack.c.h.b16 %v699
    %v906 = vunpack.c.l.b16 %v700
    %v907 = vunpack.c.h.b16 %v700
    %v908 = vunpack.c.l.b16 %v701
    %v909 = vunpack.c.h.b16 %v701
    %v910 = vunpack.c.l.b16 %v702
    %v911 = vunpack.c.h.b16 %v702
    %v912 = vunpack.c.l.b16 %v703
    %v913 = vunpack.c.h.b16 %v703
    %v914 = vunpack.c.l.b16 %v704
    %v915 = vunpack.c.h.b16 %v704
    %v916 = vunpack.c.l.b16 %v705
    %v917 = vunpack.c.h.b16 %v705
    %v918 = vunpack.c.l.b16 %v706
    %v919 = vunpack.c.h.b16 %v706
    %v920 = vunpack.c.l.b16 %v707
    %v921 = vunpack.c.h.b16 %v707
    %v922 = vunpack.c.l.b16 %v708
    %v923 = vunpack.c.h.b16 %v708
    %v924 = vunpack.c.l.b16 %v709
    %v925 = vunpack.c.h.b16 %v709
    %v926 = vpack.c.b16 %v802, %v798
    %v927 = vpack.c.b16 %v803, %v799
    %v928 = vpack.c.b16 %v804, %v800
    %v929 = vpack.c.b16 %v805, %v801
    %v930 = vpack.c.b16 %v810, %v806
    %v931 = vpack.c.b16 %v811, %v807
    %v932 = vpack.c.b16 %v812, %v808
    %v933 = vpack.c.b16 %v813, %v809
    %v934 = vpack.c.b16 %v818, %v814
    %v935 = vpack.c.b16 %v819, %v815
    %v936 = vpack.c.b16 %v820, %v816
    %v937 = vpack.c.b16 %v821, %v817
    %v938 = vpack.c.b16 %v826, %v822
    %v939 = vpack.c.b16 %v827, %v823
    %v940 = vpack.c.b16 %v828, %v824
    %v941 = vpack.c.b16 %v829, %v825
    %v942 = vpack.c.b16 %v834, %v830
    %v943 = vpack.c.b16 %v835, %v831
    %v944 = vpack.c.b16 %v836, %v832
    %v945 = vpack.c.b16 %v837, %v833
    %v946 = vpack.c.b16 %v842, %v838
    %v947 = vpack.c.b16 %v843, %v839
    %v948 = vpack.c.b16 %v844, %v840
    %v949 = vpack.c.b16 %v845, %v841
    %v950 = vpack.c.b16 %v850, %v846
    %v951 = vpack.c.b16 %v851, %v847
    %v952 = vpack.c.b16 %v852, %v848
    %v953 = vpack.c.b16 %v853, %v849
    %v954 = vpack.c.b16 %v858, %v854
    %v955 = vpack.c.b16 %v859, %v855
    %v956 = vpack.c.b16 %v860, %v856
    %v957 = vpack.c.b16 %v861, %v857
    %v958 = vpack.c.b16 %v866, %v862
    %v959 = vpack.c.b16 %v867, %v863
    %v960 = vpack.c.b16 %v868, %v864
    %v961 = vpack.c.b16 %v869, %v865
    %v962 = vpack.c.b16 %v874, %v870
    %v963 = vpack.c.b16 %v875, %v871
    %v964 = vpack.c.b16 %v876, %v872
    %v965 = vpack.c.b16 %v877, %v873
    %v966 = vpack.c.b16 %v882, %v878
    %v967 = vpack.c.b16 %v883, %v879
    %v968 = vpack.c.b16 %v884, %v880
    %v969 = vpack.c.b16 %v885, %v881
    %v970 = vpack.c.b16 %v890, %v886
    %v971 = vpack.c.b16 %v891, %v887
    %v972 = vpack.c.b16 %v892, %v888
    %v973 = vpack.c.b16 %v893, %v889
    %v974 = vpack.c.b16 %v898, %v894
    %v975 = vpack.c.b16 %v899, %v895
    %v976 = vpack.c.b16 %v900, %v896
    %v977 = vpack.c.b16 %v901, %v897
    %v978 = vpack.c.b16 %v906, %v902
    %v979 = vpack.c.b16 %v907, %v903
    %v980 = vpack.c.b16 %v908, %v904
    %v981 = vpack.c.b16 %v909, %v905
    %v982 = vpack.c.b16 %v914, %v910
    %v983 = vpack.c.b16 %v915, %v911
    %v984 = vpack.c.b16 %v916, %v912
    %v985 = vpack.c.b16 %v917, %v913
    %v986 = vpack.c.b16 %v922, %v918
    %v987 = vpack.c.b16 %v923, %v919
    %v988 = vpack.c.b16 %v924, %v920
    %v989 = vpack.c.b16 %v925, %v921
    %1054 = vmatprep.subr.bf16.mxu0 %v927
    %1055 = vmatpush1.bf16.msra.mxu0 %v926
    %1056 = vmatprep.subr.bf16.mxu0 %v931
    %1057 = vmatpush1.bf16.msra.mxu0 %v930
    %1058 = vmatprep.subr.bf16.mxu0 %v935
    %1059 = vmatpush1.bf16.msra.mxu0 %v934
    %1060 = vmatprep.subr.bf16.mxu0 %v939
    %1061 = vmatpush1.bf16.msra.mxu0 %v938
    %1062 = vmatprep.subr.bf16.mxu0 %v943
    %1063 = vmatpush1.bf16.msra.mxu0 %v942
    %1064 = vmatprep.subr.bf16.mxu0 %v947
    %1065 = vmatpush1.bf16.msra.mxu0 %v946
    %1066 = vmatprep.subr.bf16.mxu0 %v951
    %1067 = vmatpush1.bf16.msra.mxu0 %v950
    %1068 = vmatprep.subr.bf16.mxu0 %v955
    %1069 = vmatpush1.bf16.msra.mxu0 %v954
    %1070 = vmatprep.subr.bf16.mxu0 %v959
    %1071 = vmatpush1.bf16.msra.mxu0 %v958
    %1072 = vmatprep.subr.bf16.mxu0 %v963
    %1073 = vmatpush1.bf16.msra.mxu0 %v962
    %1074 = vmatprep.subr.bf16.mxu0 %v967
    %1075 = vmatpush1.bf16.msra.mxu0 %v966
    %1076 = vmatprep.subr.bf16.mxu0 %v971
    %1077 = vmatpush1.bf16.msra.mxu0 %v970
    %1078 = vmatprep.subr.bf16.mxu0 %v975
    %1079 = vmatpush1.bf16.msra.mxu0 %v974
    %1080 = vmatprep.subr.bf16.mxu0 %v979
    %1081 = vmatpush1.bf16.msra.mxu0 %v978
    %1082 = vmatprep.subr.bf16.mxu0 %v983
    %1083 = vmatpush1.bf16.msra.mxu0 %v982
    %1084 = vmatprep.subr.bf16.mxu0 %v987
    %1085 = vmatpush1.bf16.msra.mxu0 %v986
    %1086 = vmatprep.mubr.bf16.mxu0 %v711
    %1087 = vmatmul.mubr.bf16.gmra.mrb[0].mxu0 %v710
    %v1088 = vpop.f32.mrb[0].mxu0
    %v1089 = vadd.f32 %v717, %v1088
    %v1090 = vpop.f32.mrb[0].mxu0
    %v1091 = vadd.f32 %v721, %v1090
    %v1092 = vpop.f32.mrb[0].mxu0
    %v1093 = vpop.f32.mrb[0].mxu0
    %1094 = vdwg.mxu0
    %1095 = vmatprep.subr.bf16.mxu0 %v929
    %1096 = vmatpush1.bf16.msra.mxu0 %v928
    %1097 = vmatprep.subr.bf16.mxu0 %v933
    %1098 = vmatpush1.bf16.msra.mxu0 %v932
    %1099 = vmatprep.subr.bf16.mxu0 %v937
    %1100 = vmatpush1.bf16.msra.mxu0 %v936
    %1101 = vmatprep.subr.bf16.mxu0 %v941
    %1102 = vmatpush1.bf16.msra.mxu0 %v940
    %1103 = vmatprep.subr.bf16.mxu0 %v945
    %1104 = vmatpush1.bf16.msra.mxu0 %v944
    %1105 = vmatprep.subr.bf16.mxu0 %v949
    %1106 = vmatpush1.bf16.msra.mxu0 %v948
    %1107 = vmatprep.subr.bf16.mxu0 %v953
    %1108 = vmatpush1.bf16.msra.mxu0 %v952
    %1109 = vmatprep.subr.bf16.mxu0 %v957
    %1110 = vmatpush1.bf16.msra.mxu0 %v956
    %1111 = vmatprep.subr.bf16.mxu0 %v961
    %1112 = vmatpush1.bf16.msra.mxu0 %v960
    %1113 = vmatprep.subr.bf16.mxu0 %v965
    %1114 = vmatpush1.bf16.msra.mxu0 %v964
    %1115 = vmatprep.subr.bf16.mxu0 %v969
    %1116 = vmatpush1.bf16.msra.mxu0 %v968
    %1117 = vmatprep.subr.bf16.mxu0 %v973
    %1118 = vmatpush1.bf16.msra.mxu0 %v972
    %1119 = vmatprep.subr.bf16.mxu0 %v977
    %1120 = vmatpush1.bf16.msra.mxu0 %v976
    %1121 = vmatprep.subr.bf16.mxu0 %v981
    %1122 = vmatpush1.bf16.msra.mxu0 %v980
    %1123 = vmatprep.subr.bf16.mxu0 %v985
    %1124 = vmatpush1.bf16.msra.mxu0 %v984
    %1125 = vmatprep.subr.bf16.mxu0 %v989
    %1126 = vmatpush1.bf16.msra.mxu0 %v988
    %1127 = vmatprep.mubr.bf16.mxu0 %v711
    %1128 = vmatmul.mubr.bf16.gmra.mrb[0].mxu0 %v710
    %v1129 = vpop.f32.mrb[0].mxu0
    %v1130 = vadd.f32 %v725, %v1129
    %v1131 = vpop.f32.mrb[0].mxu0
    %v1132 = vadd.f32 %v729, %v1131
    %v1133 = vpop.f32.mrb[0].mxu0
    %v1134 = vpop.f32.mrb[0].mxu0
    %1135 = vdwg.mxu0
    %v1136 = vrot.slane %v1089, 4
    %v1137 = vadd.f32 %v1089, %v1136
    %v1138 = vrot.slane %v1137, 2
    %v1139 = vadd.f32 %v1137, %v1138
    %v1140 = vrot.slane %v1139, 1
    %v1141 = vadd.f32 %v1139, %v1140
    %v1142 = vrot.slane %v1091, 4
    %v1143 = vadd.f32 %v1091, %v1142
    %v1144 = vrot.slane %v1143, 2
    %v1145 = vadd.f32 %v1143, %v1144
    %v1146 = vrot.slane %v1145, 1
    %v1147 = vadd.f32 %v1145, %v1146
    %v1148 = vrot.slane %v1130, 4
    %v1149 = vadd.f32 %v1130, %v1148
    %v1150 = vrot.slane %v1149, 2
    %v1151 = vadd.f32 %v1149, %v1150
    %v1152 = vrot.slane %v1151, 1
    %v1153 = vadd.f32 %v1151, %v1152
    %v1154 = vrot.slane %v1132, 4
    %v1155 = vadd.f32 %v1132, %v1154
    %v1156 = vrot.slane %v1155, 2
    %v1157 = vadd.f32 %v1155, %v1156
    %v1158 = vrot.slane %v1157, 1
    %v1159 = vadd.f32 %v1157, %v1158
    %v1160 = vmul.f32 %v1141, %v583
    %v1161 = vmul.f32 %v1147, %v583
    %v1162 = vmul.f32 %v1153, %v583
    %v1163 = vmul.f32 %v1159, %v583
    %v1164 = vmul.f32 %v1089, %v1089
    %v1165 = vmul.f32 %v1091, %v1091
    %v1166 = vmul.f32 %v1130, %v1130
    %v1167 = vmul.f32 %v1132, %v1132
    %v1168 = vrot.slane %v1164, 4
    %v1169 = vadd.f32 %v1164, %v1168
    %v1170 = vrot.slane %v1169, 2
    %v1171 = vadd.f32 %v1169, %v1170
    %v1172 = vrot.slane %v1171, 1
    %v1173 = vadd.f32 %v1171, %v1172
    %v1174 = vrot.slane %v1165, 4
    %v1175 = vadd.f32 %v1165, %v1174
    %v1176 = vrot.slane %v1175, 2
    %v1177 = vadd.f32 %v1175, %v1176
    %v1178 = vrot.slane %v1177, 1
    %v1179 = vadd.f32 %v1177, %v1178
    %v1180 = vrot.slane %v1166, 4
    %v1181 = vadd.f32 %v1166, %v1180
    %v1182 = vrot.slane %v1181, 2
    %v1183 = vadd.f32 %v1181, %v1182
    %v1184 = vrot.slane %v1183, 1
    %v1185 = vadd.f32 %v1183, %v1184
    %v1186 = vrot.slane %v1167, 4
    %v1187 = vadd.f32 %v1167, %v1186
    %v1188 = vrot.slane %v1187, 2
    %v1189 = vadd.f32 %v1187, %v1188
    %v1190 = vrot.slane %v1189, 1
    %v1191 = vadd.f32 %v1189, %v1190
    %v1192 = vmul.f32 %v1173, %v583
    %v1193 = vmul.f32 %v1179, %v583
    %v1194 = vmul.f32 %v1185, %v583
    %v1195 = vmul.f32 %v1191, %v583
    %v1196 = vmul.f32 %v1160, %v1160
    %v1197 = vmul.f32 %v1161, %v1161
    %v1198 = vmul.f32 %v1162, %v1162
    %v1199 = vmul.f32 %v1163, %v1163
    %v1200 = vsub.f32 %v1192, %v1196
    %v1201 = vsub.f32 %v1193, %v1197
    %v1202 = vsub.f32 %v1194, %v1198
    %v1203 = vsub.f32 %v1195, %v1199
    %v1204 = vsub.f32 %v1089, %v1160
    %v1205 = vsub.f32 %v1091, %v1161
    %v1206 = vsub.f32 %v1130, %v1162
    %v1207 = vsub.f32 %v1132, %v1163
    %v1208 = vadd.f32 %v1200, 0.8
    %v1209 = vadd.f32 %v1201, 0.8
    %v1210 = vadd.f32 %v1202, 0.8
    %v1211 = vadd.f32 %v1203, 0.8
    %v1212 = vrsqrt.pop %v1208
    %v1213 = vrsqrt.pop %v1209
    %v1214 = vrsqrt.pop %v1210
    %v1215 = vrsqrt.pop %v1211
    %v1216 = vmul.f32 %v1204, %v1212
    %v1217 = vmul.f32 %v1205, %v1213
    %v1218 = vmul.f32 %v1206, %v1214
    %v1219 = vmul.f32 %v1207, %v1215
    %v1220 = vld [vmem:[#allocation20] sm:$0xf]
    %v1222 = vlaneseq
    %v1223 = vshrl.u32 %v1222, 7
    %v1224 = vsub.s32 0, %v1223
    %v1225 = vrot.slane %v1220, %v1224
    %v1226 = vlaneseq
    %v1227 = vshrl.u32 %v1226, 7
    %v1228 = vsub.s32 1, %v1227
    %v1229 = vrot.slane %v1220, %v1228
    %v1230 = vlaneseq
    %v1231 = vshrl.u32 %v1230, 7
    %v1232 = vsub.s32 2, %v1231
    %v1233 = vrot.slane %v1220, %v1232
    %v1234 = vlaneseq
    %v1235 = vshrl.u32 %v1234, 7
    %v1236 = vsub.s32 3, %v1235
    %v1237 = vrot.slane %v1220, %v1236
    %v1242 = vmul.f32 %v1225, %v1216
    %v1243 = vmul.f32 %v1229, %v1217
    %v1244 = vmul.f32 %v1233, %v1218
    %v1245 = vmul.f32 %v1237, %v1219
    %v1246 = vld [vmem:[#allocation22] sm:$0xf]
    %v1248 = vlaneseq
    %v1249 = vshrl.u32 %v1248, 7
    %v1250 = vsub.s32 0, %v1249
    %v1251 = vrot.slane %v1246, %v1250
    %v1252 = vlaneseq
    %v1253 = vshrl.u32 %v1252, 7
    %v1254 = vsub.s32 1, %v1253
    %v1255 = vrot.slane %v1246, %v1254
    %v1256 = vlaneseq
    %v1257 = vshrl.u32 %v1256, 7
    %v1258 = vsub.s32 2, %v1257
    %v1259 = vrot.slane %v1246, %v1258
    %v1260 = vlaneseq
    %v1261 = vshrl.u32 %v1260, 7
    %v1262 = vsub.s32 3, %v1261
    %v1263 = vrot.slane %v1246, %v1262
    %v1268 = vadd.f32 %v1242, %v1251
    %v1269 = vadd.f32 %v1243, %v1255
    %v1270 = vadd.f32 %v1244, %v1259
    %v1271 = vadd.f32 %v1245, %v1263
    %v1272 = vmul.f32 %v1268, 0.2
    %v1273 = vmul.f32 %v1269, 0.2
    %v1274 = vmul.f32 %v1270, 0.2
    %v1275 = vmul.f32 %v1271, 0.2
    %v1276 = vmax.f32 %v1268, %v1272
    %v1277 = vmax.f32 %v1269, %v1273
    %v1278 = vmax.f32 %v1270, %v1274
    %v1279 = vmax.f32 %v1271, %v1275
    %s1280 = smul.u32 4, 64
    %s1281 = smul.u32 %s1280, 8
    %s1282 = sshll.u32 %s1281, 4
    %1283 = dma.done [#allocation5], %s1282
    %v1284 = vld [vmem:[#allocation3] sm:$0xff]
    %v1285 = vld [vmem:[#allocation3 + $0x8] sm:$0xff]
    %v1286 = vld [vmem:[#allocation3 + $0x10] sm:$0xff]
    %v1287 = vld [vmem:[#allocation3 + $0x18] sm:$0xff]
    %v1288 = vld [vmem:[#allocation3 + $0x20] sm:$0xff]
    %v1289 = vld [vmem:[#allocation3 + $0x28] sm:$0xff]
    %v1290 = vld [vmem:[#allocation3 + $0x30] sm:$0xff]
    %v1291 = vld [vmem:[#allocation3 + $0x38] sm:$0xff]
    %v1292 = vld [vmem:[#allocation3 + $0x40] sm:$0xff]
    %v1293 = vld [vmem:[#allocation3 + $0x48] sm:$0xff]
    %v1294 = vld [vmem:[#allocation3 + $0x50] sm:$0xff]
    %v1295 = vld [vmem:[#allocation3 + $0x58] sm:$0xff]
    %v1296 = vld [vmem:[#allocation3 + $0x60] sm:$0xff]
    %v1297 = vld [vmem:[#allocation3 + $0x68] sm:$0xff]
    %v1298 = vld [vmem:[#allocation3 + $0x70] sm:$0xff]
    %v1299 = vld [vmem:[#allocation3 + $0x78] sm:$0xff]
    %v1300 = vld [vmem:[#allocation3 + $0x80] sm:$0xff]
    %v1301 = vld [vmem:[#allocation3 + $0x88] sm:$0xff]
    %v1302 = vld [vmem:[#allocation3 + $0x90] sm:$0xff]
    %v1303 = vld [vmem:[#allocation3 + $0x98] sm:$0xff]
    %v1304 = vld [vmem:[#allocation3 + $0xa0] sm:$0xff]
    %v1305 = vld [vmem:[#allocation3 + $0xa8] sm:$0xff]
    %v1306 = vld [vmem:[#allocation3 + $0xb0] sm:$0xff]
    %v1307 = vld [vmem:[#allocation3 + $0xb8] sm:$0xff]
    %v1308 = vld [vmem:[#allocation3 + $0xc0] sm:$0xff]
    %v1309 = vld [vmem:[#allocation3 + $0xc8] sm:$0xff]
    %v1310 = vld [vmem:[#allocation3 + $0xd0] sm:$0xff]
    %v1311 = vld [vmem:[#allocation3 + $0xd8] sm:$0xff]
    %v1312 = vld [vmem:[#allocation3 + $0xe0] sm:$0xff]
    %v1313 = vld [vmem:[#allocation3 + $0xe8] sm:$0xff]
    %v1314 = vld [vmem:[#allocation3 + $0xf0] sm:$0xff]
    %v1315 = vld [vmem:[#allocation3 + $0xf8] sm:$0xff]
    %v1316 = vld [vmem:[#allocation3 + $0x100] sm:$0xff]
    %v1317 = vld [vmem:[#allocation3 + $0x108] sm:$0xff]
    %v1318 = vld [vmem:[#allocation3 + $0x110] sm:$0xff]
    %v1319 = vld [vmem:[#allocation3 + $0x118] sm:$0xff]
    %v1320 = vld [vmem:[#allocation3 + $0x120] sm:$0xff]
    %v1321 = vld [vmem:[#allocation3 + $0x128] sm:$0xff]
    %v1322 = vld [vmem:[#allocation3 + $0x130] sm:$0xff]
    %v1323 = vld [vmem:[#allocation3 + $0x138] sm:$0xff]
    %v1324 = vld [vmem:[#allocation3 + $0x140] sm:$0xff]
    %v1325 = vld [vmem:[#allocation3 + $0x148] sm:$0xff]
    %v1326 = vld [vmem:[#allocation3 + $0x150] sm:$0xff]
    %v1327 = vld [vmem:[#allocation3 + $0x158] sm:$0xff]
    %v1328 = vld [vmem:[#allocation3 + $0x160] sm:$0xff]
    %v1329 = vld [vmem:[#allocation3 + $0x168] sm:$0xff]
    %v1330 = vld [vmem:[#allocation3 + $0x170] sm:$0xff]
    %v1331 = vld [vmem:[#allocation3 + $0x178] sm:$0xff]
    %v1332 = vld [vmem:[#allocation3 + $0x180] sm:$0xff]
    %v1333 = vld [vmem:[#allocation3 + $0x188] sm:$0xff]
    %v1334 = vld [vmem:[#allocation3 + $0x190] sm:$0xff]
    %v1335 = vld [vmem:[#allocation3 + $0x198] sm:$0xff]
    %v1336 = vld [vmem:[#allocation3 + $0x1a0] sm:$0xff]
    %v1337 = vld [vmem:[#allocation3 + $0x1a8] sm:$0xff]
    %v1338 = vld [vmem:[#allocation3 + $0x1b0] sm:$0xff]
    %v1339 = vld [vmem:[#allocation3 + $0x1b8] sm:$0xff]
    %v1340 = vld [vmem:[#allocation3 + $0x1c0] sm:$0xff]
    %v1341 = vld [vmem:[#allocation3 + $0x1c8] sm:$0xff]
    %v1342 = vld [vmem:[#allocation3 + $0x1d0] sm:$0xff]
    %v1343 = vld [vmem:[#allocation3 + $0x1d8] sm:$0xff]
    %v1344 = vld [vmem:[#allocation3 + $0x1e0] sm:$0xff]
    %v1345 = vld [vmem:[#allocation3 + $0x1e8] sm:$0xff]
    %v1346 = vld [vmem:[#allocation3 + $0x1f0] sm:$0xff]
    %v1347 = vld [vmem:[#allocation3 + $0x1f8] sm:$0xff]
    %v1348 = vld [vmem:[#allocation3 + $0x200] sm:$0xff]
    %v1349 = vld [vmem:[#allocation3 + $0x208] sm:$0xff]
    %v1350 = vld [vmem:[#allocation3 + $0x210] sm:$0xff]
    %v1351 = vld [vmem:[#allocation3 + $0x218] sm:$0xff]
    %v1352 = vld [vmem:[#allocation3 + $0x220] sm:$0xff]
    %v1353 = vld [vmem:[#allocation3 + $0x228] sm:$0xff]
    %v1354 = vld [vmem:[#allocation3 + $0x230] sm:$0xff]
    %v1355 = vld [vmem:[#allocation3 + $0x238] sm:$0xff]
    %v1356 = vld [vmem:[#allocation3 + $0x240] sm:$0xff]
    %v1357 = vld [vmem:[#allocation3 + $0x248] sm:$0xff]
    %v1358 = vld [vmem:[#allocation3 + $0x250] sm:$0xff]
    %v1359 = vld [vmem:[#allocation3 + $0x258] sm:$0xff]
    %v1360 = vld [vmem:[#allocation3 + $0x260] sm:$0xff]
    %v1361 = vld [vmem:[#allocation3 + $0x268] sm:$0xff]
    %v1362 = vld [vmem:[#allocation3 + $0x270] sm:$0xff]
    %v1363 = vld [vmem:[#allocation3 + $0x278] sm:$0xff]
    %v1364 = vld [vmem:[#allocation3 + $0x280] sm:$0xff]
    %v1365 = vld [vmem:[#allocation3 + $0x288] sm:$0xff]
    %v1366 = vld [vmem:[#allocation3 + $0x290] sm:$0xff]
    %v1367 = vld [vmem:[#allocation3 + $0x298] sm:$0xff]
    %v1368 = vld [vmem:[#allocation3 + $0x2a0] sm:$0xff]
    %v1369 = vld [vmem:[#allocation3 + $0x2a8] sm:$0xff]
    %v1370 = vld [vmem:[#allocation3 + $0x2b0] sm:$0xff]
    %v1371 = vld [vmem:[#allocation3 + $0x2b8] sm:$0xff]
    %v1372 = vld [vmem:[#allocation3 + $0x2c0] sm:$0xff]
    %v1373 = vld [vmem:[#allocation3 + $0x2c8] sm:$0xff]
    %v1374 = vld [vmem:[#allocation3 + $0x2d0] sm:$0xff]
    %v1375 = vld [vmem:[#allocation3 + $0x2d8] sm:$0xff]
    %v1376 = vld [vmem:[#allocation3 + $0x2e0] sm:$0xff]
    %v1377 = vld [vmem:[#allocation3 + $0x2e8] sm:$0xff]
    %v1378 = vld [vmem:[#allocation3 + $0x2f0] sm:$0xff]
    %v1379 = vld [vmem:[#allocation3 + $0x2f8] sm:$0xff]
    %v1380 = vld [vmem:[#allocation3 + $0x300] sm:$0xff]
    %v1381 = vld [vmem:[#allocation3 + $0x308] sm:$0xff]
    %v1382 = vld [vmem:[#allocation3 + $0x310] sm:$0xff]
    %v1383 = vld [vmem:[#allocation3 + $0x318] sm:$0xff]
    %v1384 = vld [vmem:[#allocation3 + $0x320] sm:$0xff]
    %v1385 = vld [vmem:[#allocation3 + $0x328] sm:$0xff]
    %v1386 = vld [vmem:[#allocation3 + $0x330] sm:$0xff]
    %v1387 = vld [vmem:[#allocation3 + $0x338] sm:$0xff]
    %v1388 = vld [vmem:[#allocation3 + $0x340] sm:$0xff]
    %v1389 = vld [vmem:[#allocation3 + $0x348] sm:$0xff]
    %v1390 = vld [vmem:[#allocation3 + $0x350] sm:$0xff]
    %v1391 = vld [vmem:[#allocation3 + $0x358] sm:$0xff]
    %v1392 = vld [vmem:[#allocation3 + $0x360] sm:$0xff]
    %v1393 = vld [vmem:[#allocation3 + $0x368] sm:$0xff]
    %v1394 = vld [vmem:[#allocation3 + $0x370] sm:$0xff]
    %v1395 = vld [vmem:[#allocation3 + $0x378] sm:$0xff]
    %v1396 = vld [vmem:[#allocation3 + $0x380] sm:$0xff]
    %v1397 = vld [vmem:[#allocation3 + $0x388] sm:$0xff]
    %v1398 = vld [vmem:[#allocation3 + $0x390] sm:$0xff]
    %v1399 = vld [vmem:[#allocation3 + $0x398] sm:$0xff]
    %v1400 = vld [vmem:[#allocation3 + $0x3a0] sm:$0xff]
    %v1401 = vld [vmem:[#allocation3 + $0x3a8] sm:$0xff]
    %v1402 = vld [vmem:[#allocation3 + $0x3b0] sm:$0xff]
    %v1403 = vld [vmem:[#allocation3 + $0x3b8] sm:$0xff]
    %v1404 = vld [vmem:[#allocation3 + $0x3c0] sm:$0xff]
    %v1405 = vld [vmem:[#allocation3 + $0x3c8] sm:$0xff]
    %v1406 = vld [vmem:[#allocation3 + $0x3d0] sm:$0xff]
    %v1407 = vld [vmem:[#allocation3 + $0x3d8] sm:$0xff]
    %v1408 = vld [vmem:[#allocation3 + $0x3e0] sm:$0xff]
    %v1409 = vld [vmem:[#allocation3 + $0x3e8] sm:$0xff]
    %v1410 = vld [vmem:[#allocation3 + $0x3f0] sm:$0xff]
    %v1411 = vld [vmem:[#allocation3 + $0x3f8] sm:$0xff]
    %v1412 = vld [vmem:[#allocation3 + $0x400] sm:$0xff]
    %v1413 = vld [vmem:[#allocation3 + $0x408] sm:$0xff]
    %v1414 = vld [vmem:[#allocation3 + $0x410] sm:$0xff]
    %v1415 = vld [vmem:[#allocation3 + $0x418] sm:$0xff]
    %v1416 = vld [vmem:[#allocation3 + $0x420] sm:$0xff]
    %v1417 = vld [vmem:[#allocation3 + $0x428] sm:$0xff]
    %v1418 = vld [vmem:[#allocation3 + $0x430] sm:$0xff]
    %v1419 = vld [vmem:[#allocation3 + $0x438] sm:$0xff]
    %v1420 = vld [vmem:[#allocation3 + $0x440] sm:$0xff]
    %v1421 = vld [vmem:[#allocation3 + $0x448] sm:$0xff]
    %v1422 = vld [vmem:[#allocation3 + $0x450] sm:$0xff]
    %v1423 = vld [vmem:[#allocation3 + $0x458] sm:$0xff]
    %v1424 = vld [vmem:[#allocation3 + $0x460] sm:$0xff]
    %v1425 = vld [vmem:[#allocation3 + $0x468] sm:$0xff]
    %v1426 = vld [vmem:[#allocation3 + $0x470] sm:$0xff]
    %v1427 = vld [vmem:[#allocation3 + $0x478] sm:$0xff]
    %v1428 = vld [vmem:[#allocation3 + $0x480] sm:$0xff]
    %v1429 = vld [vmem:[#allocation3 + $0x488] sm:$0xff]
    %v1430 = vld [vmem:[#allocation3 + $0x490] sm:$0xff]
    %v1431 = vld [vmem:[#allocation3 + $0x498] sm:$0xff]
    %v1432 = vld [vmem:[#allocation3 + $0x4a0] sm:$0xff]
    %v1433 = vld [vmem:[#allocation3 + $0x4a8] sm:$0xff]
    %v1434 = vld [vmem:[#allocation3 + $0x4b0] sm:$0xff]
    %v1435 = vld [vmem:[#allocation3 + $0x4b8] sm:$0xff]
    %v1436 = vld [vmem:[#allocation3 + $0x4c0] sm:$0xff]
    %v1437 = vld [vmem:[#allocation3 + $0x4c8] sm:$0xff]
    %v1438 = vld [vmem:[#allocation3 + $0x4d0] sm:$0xff]
    %v1439 = vld [vmem:[#allocation3 + $0x4d8] sm:$0xff]
    %v1440 = vld [vmem:[#allocation3 + $0x4e0] sm:$0xff]
    %v1441 = vld [vmem:[#allocation3 + $0x4e8] sm:$0xff]
    %v1442 = vld [vmem:[#allocation3 + $0x4f0] sm:$0xff]
    %v1443 = vld [vmem:[#allocation3 + $0x4f8] sm:$0xff]
    %v1444 = vld [vmem:[#allocation3 + $0x500] sm:$0xff]
    %v1445 = vld [vmem:[#allocation3 + $0x508] sm:$0xff]
    %v1446 = vld [vmem:[#allocation3 + $0x510] sm:$0xff]
    %v1447 = vld [vmem:[#allocation3 + $0x518] sm:$0xff]
    %v1448 = vld [vmem:[#allocation3 + $0x520] sm:$0xff]
    %v1449 = vld [vmem:[#allocation3 + $0x528] sm:$0xff]
    %v1450 = vld [vmem:[#allocation3 + $0x530] sm:$0xff]
    %v1451 = vld [vmem:[#allocation3 + $0x538] sm:$0xff]
    %v1452 = vld [vmem:[#allocation3 + $0x540] sm:$0xff]
    %v1453 = vld [vmem:[#allocation3 + $0x548] sm:$0xff]
    %v1454 = vld [vmem:[#allocation3 + $0x550] sm:$0xff]
    %v1455 = vld [vmem:[#allocation3 + $0x558] sm:$0xff]
    %v1456 = vld [vmem:[#allocation3 + $0x560] sm:$0xff]
    %v1457 = vld [vmem:[#allocation3 + $0x568] sm:$0xff]
    %v1458 = vld [vmem:[#allocation3 + $0x570] sm:$0xff]
    %v1459 = vld [vmem:[#allocation3 + $0x578] sm:$0xff]
    %v1460 = vld [vmem:[#allocation3 + $0x580] sm:$0xff]
    %v1461 = vld [vmem:[#allocation3 + $0x588] sm:$0xff]
    %v1462 = vld [vmem:[#allocation3 + $0x590] sm:$0xff]
    %v1463 = vld [vmem:[#allocation3 + $0x598] sm:$0xff]
    %v1464 = vld [vmem:[#allocation3 + $0x5a0] sm:$0xff]
    %v1465 = vld [vmem:[#allocation3 + $0x5a8] sm:$0xff]
    %v1466 = vld [vmem:[#allocation3 + $0x5b0] sm:$0xff]
    %v1467 = vld [vmem:[#allocation3 + $0x5b8] sm:$0xff]
    %v1468 = vld [vmem:[#allocation3 + $0x5c0] sm:$0xff]
    %v1469 = vld [vmem:[#allocation3 + $0x5c8] sm:$0xff]
    %v1470 = vld [vmem:[#allocation3 + $0x5d0] sm:$0xff]
    %v1471 = vld [vmem:[#allocation3 + $0x5d8] sm:$0xff]
    %v1472 = vld [vmem:[#allocation3 + $0x5e0] sm:$0xff]
    %v1473 = vld [vmem:[#allocation3 + $0x5e8] sm:$0xff]
    %v1474 = vld [vmem:[#allocation3 + $0x5f0] sm:$0xff]
    %v1475 = vld [vmem:[#allocation3 + $0x5f8] sm:$0xff]
    %v1476 = vld [vmem:[#allocation3 + $0x600] sm:$0xff]
    %v1477 = vld [vmem:[#allocation3 + $0x608] sm:$0xff]
    %v1478 = vld [vmem:[#allocation3 + $0x610] sm:$0xff]
    %v1479 = vld [vmem:[#allocation3 + $0x618] sm:$0xff]
    %v1480 = vld [vmem:[#allocation3 + $0x620] sm:$0xff]
    %v1481 = vld [vmem:[#allocation3 + $0x628] sm:$0xff]
    %v1482 = vld [vmem:[#allocation3 + $0x630] sm:$0xff]
    %v1483 = vld [vmem:[#allocation3 + $0x638] sm:$0xff]
    %v1484 = vld [vmem:[#allocation3 + $0x640] sm:$0xff]
    %v1485 = vld [vmem:[#allocation3 + $0x648] sm:$0xff]
    %v1486 = vld [vmem:[#allocation3 + $0x650] sm:$0xff]
    %v1487 = vld [vmem:[#allocation3 + $0x658] sm:$0xff]
    %v1488 = vld [vmem:[#allocation3 + $0x660] sm:$0xff]
    %v1489 = vld [vmem:[#allocation3 + $0x668] sm:$0xff]
    %v1490 = vld [vmem:[#allocation3 + $0x670] sm:$0xff]
    %v1491 = vld [vmem:[#allocation3 + $0x678] sm:$0xff]
    %v1492 = vld [vmem:[#allocation3 + $0x680] sm:$0xff]
    %v1493 = vld [vmem:[#allocation3 + $0x688] sm:$0xff]
    %v1494 = vld [vmem:[#allocation3 + $0x690] sm:$0xff]
    %v1495 = vld [vmem:[#allocation3 + $0x698] sm:$0xff]
    %v1496 = vld [vmem:[#allocation3 + $0x6a0] sm:$0xff]
    %v1497 = vld [vmem:[#allocation3 + $0x6a8] sm:$0xff]
    %v1498 = vld [vmem:[#allocation3 + $0x6b0] sm:$0xff]
    %v1499 = vld [vmem:[#allocation3 + $0x6b8] sm:$0xff]
    %v1500 = vld [vmem:[#allocation3 + $0x6c0] sm:$0xff]
    %v1501 = vld [vmem:[#allocation3 + $0x6c8] sm:$0xff]
    %v1502 = vld [vmem:[#allocation3 + $0x6d0] sm:$0xff]
    %v1503 = vld [vmem:[#allocation3 + $0x6d8] sm:$0xff]
    %v1504 = vld [vmem:[#allocation3 + $0x6e0] sm:$0xff]
    %v1505 = vld [vmem:[#allocation3 + $0x6e8] sm:$0xff]
    %v1506 = vld [vmem:[#allocation3 + $0x6f0] sm:$0xff]
    %v1507 = vld [vmem:[#allocation3 + $0x6f8] sm:$0xff]
    %v1508 = vld [vmem:[#allocation3 + $0x700] sm:$0xff]
    %v1509 = vld [vmem:[#allocation3 + $0x708] sm:$0xff]
    %v1510 = vld [vmem:[#allocation3 + $0x710] sm:$0xff]
    %v1511 = vld [vmem:[#allocation3 + $0x718] sm:$0xff]
    %v1512 = vld [vmem:[#allocation3 + $0x720] sm:$0xff]
    %v1513 = vld [vmem:[#allocation3 + $0x728] sm:$0xff]
    %v1514 = vld [vmem:[#allocation3 + $0x730] sm:$0xff]
    %v1515 = vld [vmem:[#allocation3 + $0x738] sm:$0xff]
    %v1516 = vld [vmem:[#allocation3 + $0x740] sm:$0xff]
    %v1517 = vld [vmem:[#allocation3 + $0x748] sm:$0xff]
    %v1518 = vld [vmem:[#allocation3 + $0x750] sm:$0xff]
    %v1519 = vld [vmem:[#allocation3 + $0x758] sm:$0xff]
    %v1520 = vld [vmem:[#allocation3 + $0x760] sm:$0xff]
    %v1521 = vld [vmem:[#allocation3 + $0x768] sm:$0xff]
    %v1522 = vld [vmem:[#allocation3 + $0x770] sm:$0xff]
    %v1523 = vld [vmem:[#allocation3 + $0x778] sm:$0xff]
    %v1524 = vld [vmem:[#allocation3 + $0x780] sm:$0xff]
    %v1525 = vld [vmem:[#allocation3 + $0x788] sm:$0xff]
    %v1526 = vld [vmem:[#allocation3 + $0x790] sm:$0xff]
    %v1527 = vld [vmem:[#allocation3 + $0x798] sm:$0xff]
    %v1528 = vld [vmem:[#allocation3 + $0x7a0] sm:$0xff]
    %v1529 = vld [vmem:[#allocation3 + $0x7a8] sm:$0xff]
    %v1530 = vld [vmem:[#allocation3 + $0x7b0] sm:$0xff]
    %v1531 = vld [vmem:[#allocation3 + $0x7b8] sm:$0xff]
    %v1532 = vld [vmem:[#allocation3 + $0x7c0] sm:$0xff]
    %v1533 = vld [vmem:[#allocation3 + $0x7c8] sm:$0xff]
    %v1534 = vld [vmem:[#allocation3 + $0x7d0] sm:$0xff]
    %v1535 = vld [vmem:[#allocation3 + $0x7d8] sm:$0xff]
    %v1536 = vld [vmem:[#allocation3 + $0x7e0] sm:$0xff]
    %v1537 = vld [vmem:[#allocation3 + $0x7e8] sm:$0xff]
    %v1538 = vld [vmem:[#allocation3 + $0x7f0] sm:$0xff]
    %v1539 = vld [vmem:[#allocation3 + $0x7f8] sm:$0xff]
    %v1540 = vpack.c.bf16 %v1276, %v1276
    %v1541 = vpack.c.bf16 %v1277, %v1277
    %v1542 = vpack.c.bf16 %v1278, %v1278
    %v1543 = vpack.c.bf16 %v1279, %v1279
    %v1544 = vld [vmem:[#allocation23] sm:$0xff]
    %v1546 = vlaneseq
    %v1547 = vshrl.u32 %v1546, 7
    %v1548 = vsub.s32 0, %v1547
    %v1549 = vrot.slane %v1544, %v1548
    %v1550 = vlaneseq
    %v1551 = vshrl.u32 %v1550, 7
    %v1552 = vsub.s32 1, %v1551
    %v1553 = vrot.slane %v1544, %v1552
    %v1554 = vlaneseq
    %v1555 = vshrl.u32 %v1554, 7
    %v1556 = vsub.s32 2, %v1555
    %v1557 = vrot.slane %v1544, %v1556
    %v1558 = vlaneseq
    %v1559 = vshrl.u32 %v1558, 7
    %v1560 = vsub.s32 3, %v1559
    %v1561 = vrot.slane %v1544, %v1560
    %v1562 = vlaneseq
    %v1563 = vshrl.u32 %v1562, 7
    %v1564 = vsub.s32 4, %v1563
    %v1565 = vrot.slane %v1544, %v1564
    %v1566 = vlaneseq
    %v1567 = vshrl.u32 %v1566, 7
    %v1568 = vsub.s32 5, %v1567
    %v1569 = vrot.slane %v1544, %v1568
    %v1570 = vlaneseq
    %v1571 = vshrl.u32 %v1570, 7
    %v1572 = vsub.s32 6, %v1571
    %v1573 = vrot.slane %v1544, %v1572
    %v1574 = vlaneseq
    %v1575 = vshrl.u32 %v1574, 7
    %v1576 = vsub.s32 7, %v1575
    %v1577 = vrot.slane %v1544, %v1576
    %1586 = vmatprep.subr.bf16.mxu0 %v1285
    %1587 = vmatpush1.bf16.msra.mxu0 %v1284
    %1588 = vmatprep.subr.bf16.mxu0 %v1293
    %1589 = vmatpush1.bf16.msra.mxu0 %v1292
    %1590 = vmatprep.subr.bf16.mxu0 %v1301
    %1591 = vmatpush1.bf16.msra.mxu0 %v1300
    %1592 = vmatprep.subr.bf16.mxu0 %v1309
    %1593 = vmatpush1.bf16.msra.mxu0 %v1308
    %1594 = vmatprep.subr.bf16.mxu0 %v1317
    %1595 = vmatpush1.bf16.msra.mxu0 %v1316
    %1596 = vmatprep.subr.bf16.mxu0 %v1325
    %1597 = vmatpush1.bf16.msra.mxu0 %v1324
    %1598 = vmatprep.subr.bf16.mxu0 %v1333
    %1599 = vmatpush1.bf16.msra.mxu0 %v1332
    %1600 = vmatprep.subr.bf16.mxu0 %v1341
    %1601 = vmatpush1.bf16.msra.mxu0 %v1340
    %1602 = vmatprep.subr.bf16.mxu0 %v1349
    %1603 = vmatpush1.bf16.msra.mxu0 %v1348
    %1604 = vmatprep.subr.bf16.mxu0 %v1357
    %1605 = vmatpush1.bf16.msra.mxu0 %v1356
    %1606 = vmatprep.subr.bf16.mxu0 %v1365
    %1607 = vmatpush1.bf16.msra.mxu0 %v1364
    %1608 = vmatprep.subr.bf16.mxu0 %v1373
    %1609 = vmatpush1.bf16.msra.mxu0 %v1372
    %1610 = vmatprep.subr.bf16.mxu0 %v1381
    %1611 = vmatpush1.bf16.msra.mxu0 %v1380
    %1612 = vmatprep.subr.bf16.mxu0 %v1389
    %1613 = vmatpush1.bf16.msra.mxu0 %v1388
    %1614 = vmatprep.subr.bf16.mxu0 %v1397
    %1615 = vmatpush1.bf16.msra.mxu0 %v1396
    %1616 = vmatprep.subr.bf16.mxu0 %v1405
    %1617 = vmatpush1.bf16.msra.mxu0 %v1404
    %1618 = vmatprep.mubr.bf16.mxu0 %v1541
    %1619 = vmatmul.mubr.bf16.gmra.mrb[0].mxu0 %v1540
    %v1620 = vpop.f32.mrb[0].mxu0
    %v1621 = vadd.f32 %v1549, %v1620
    %v1622 = vpop.f32.mrb[0].mxu0
    %v1623 = vadd.f32 %v1553, %v1622
    %v1624 = vpop.f32.mrb[0].mxu0
    %v1625 = vpop.f32.mrb[0].mxu0
    %1626 = vdwg.mxu0
    %1627 = vmatprep.subr.bf16.mxu0 %v1413
    %1628 = vmatpush1.bf16.msra.mxu0 %v1412
    %1629 = vmatprep.subr.bf16.mxu0 %v1421
    %1630 = vmatpush1.bf16.msra.mxu0 %v1420
    %1631 = vmatprep.subr.bf16.mxu0 %v1429
    %1632 = vmatpush1.bf16.msra.mxu0 %v1428
    %1633 = vmatprep.subr.bf16.mxu0 %v1437
    %1634 = vmatpush1.bf16.msra.mxu0 %v1436
    %1635 = vmatprep.subr.bf16.mxu0 %v1445
    %1636 = vmatpush1.bf16.msra.mxu0 %v1444
    %1637 = vmatprep.subr.bf16.mxu0 %v1453
    %1638 = vmatpush1.bf16.msra.mxu0 %v1452
    %1639 = vmatprep.subr.bf16.mxu0 %v1461
    %1640 = vmatpush1.bf16.msra.mxu0 %v1460
    %1641 = vmatprep.subr.bf16.mxu0 %v1469
    %1642 = vmatpush1.bf16.msra.mxu0 %v1468
    %1643 = vmatprep.subr.bf16.mxu0 %v1477
    %1644 = vmatpush1.bf16.msra.mxu0 %v1476
    %1645 = vmatprep.subr.bf16.mxu0 %v1485
    %1646 = vmatpush1.bf16.msra.mxu0 %v1484
    %1647 = vmatprep.subr.bf16.mxu0 %v1493
    %1648 = vmatpush1.bf16.msra.mxu0 %v1492
    %1649 = vmatprep.subr.bf16.mxu0 %v1501
    %1650 = vmatpush1.bf16.msra.mxu0 %v1500
    %1651 = vmatprep.subr.bf16.mxu0 %v1509
    %1652 = vmatpush1.bf16.msra.mxu0 %v1508
    %1653 = vmatprep.subr.bf16.mxu0 %v1517
    %1654 = vmatpush1.bf16.msra.mxu0 %v1516
    %1655 = vmatprep.subr.bf16.mxu0 %v1525
    %1656 = vmatpush1.bf16.msra.mxu0 %v1524
    %1657 = vmatprep.subr.bf16.mxu0 %v1533
    %1658 = vmatpush1.bf16.msra.mxu0 %v1532
    %1659 = vmatprep.mubr.bf16.mxu0 %v1543
    %1660 = vmatmul.mubr.bf16.gmra.mrb[0].mxu0 %v1542
    %v1661 = vpop.f32.mrb[0].mxu0
    %v1662 = vadd.f32 %v1621, %v1661
    %v1663 = vpop.f32.mrb[0].mxu0
    %v1664 = vadd.f32 %v1623, %v1663
    %v1665 = vpop.f32.mrb[0].mxu0
    %v1666 = vpop.f32.mrb[0].mxu0
    %1667 = vdwg.mxu0
    %1668 = vmatprep.subr.bf16.mxu0 %v1287
    %1669 = vmatpush1.bf16.msra.mxu0 %v1286
    %1670 = vmatprep.subr.bf16.mxu0 %v1295
    %1671 = vmatpush1.bf16.msra.mxu0 %v1294
    %1672 = vmatprep.subr.bf16.mxu0 %v1303
    %1673 = vmatpush1.bf16.msra.mxu0 %v1302
    %1674 = vmatprep.subr.bf16.mxu0 %v1311
    %1675 = vmatpush1.bf16.msra.mxu0 %v1310
    %1676 = vmatprep.subr.bf16.mxu0 %v1319
    %1677 = vmatpush1.bf16.msra.mxu0 %v1318
    %1678 = vmatprep.subr.bf16.mxu0 %v1327
    %1679 = vmatpush1.bf16.msra.mxu0 %v1326
    %1680 = vmatprep.subr.bf16.mxu0 %v1335
    %1681 = vmatpush1.bf16.msra.mxu0 %v1334
    %1682 = vmatprep.subr.bf16.mxu0 %v1343
    %1683 = vmatpush1.bf16.msra.mxu0 %v1342
    %1684 = vmatprep.subr.bf16.mxu0 %v1351
    %1685 = vmatpush1.bf16.msra.mxu0 %v1350
    %1686 = vmatprep.subr.bf16.mxu0 %v1359
    %1687 = vmatpush1.bf16.msra.mxu0 %v1358
    %1688 = vmatprep.subr.bf16.mxu0 %v1367
    %1689 = vmatpush1.bf16.msra.mxu0 %v1366
    %1690 = vmatprep.subr.bf16.mxu0 %v1375
    %1691 = vmatpush1.bf16.msra.mxu0 %v1374
    %1692 = vmatprep.subr.bf16.mxu0 %v1383
    %1693 = vmatpush1.bf16.msra.mxu0 %v1382
    %1694 = vmatprep.subr.bf16.mxu0 %v1391
    %1695 = vmatpush1.bf16.msra.mxu0 %v1390
    %1696 = vmatprep.subr.bf16.mxu0 %v1399
    %1697 = vmatpush1.bf16.msra.mxu0 %v1398
    %1698 = vmatprep.subr.bf16.mxu0 %v1407
    %1699 = vmatpush1.bf16.msra.mxu0 %v1406
    %1700 = vmatprep.mubr.bf16.mxu0 %v1541
    %1701 = vmatmul.mubr.bf16.gmra.mrb[0].mxu0 %v1540
    %v1702 = vpop.f32.mrb[0].mxu0
    %v1703 = vadd.f32 %v1557, %v1702
    %v1704 = vpop.f32.mrb[0].mxu0
    %v1705 = vadd.f32 %v1561, %v1704
    %v1706 = vpop.f32.mrb[0].mxu0
    %v1707 = vpop.f32.mrb[0].mxu0
    %1708 = vdwg.mxu0
    %1709 = vmatprep.subr.bf16.mxu0 %v1415
    %1710 = vmatpush1.bf16.msra.mxu0 %v1414
    %1711 = vmatprep.subr.bf16.mxu0 %v1423
    %1712 = vmatpush1.bf16.msra.mxu0 %v1422
    %1713 = vmatprep.subr.bf16.mxu0 %v1431
    %1714 = vmatpush1.bf16.msra.mxu0 %v1430
    %1715 = vmatprep.subr.bf16.mxu0 %v1439
    %1716 = vmatpush1.bf16.msra.mxu0 %v1438
    %1717 = vmatprep.subr.bf16.mxu0 %v1447
    %1718 = vmatpush1.bf16.msra.mxu0 %v1446
    %1719 = vmatprep.subr.bf16.mxu0 %v1455
    %1720 = vmatpush1.bf16.msra.mxu0 %v1454
    %1721 = vmatprep.subr.bf16.mxu0 %v1463
    %1722 = vmatpush1.bf16.msra.mxu0 %v1462
    %1723 = vmatprep.subr.bf16.mxu0 %v1471
    %1724 = vmatpush1.bf16.msra.mxu0 %v1470
    %1725 = vmatprep.subr.bf16.mxu0 %v1479
    %1726 = vmatpush1.bf16.msra.mxu0 %v1478
    %1727 = vmatprep.subr.bf16.mxu0 %v1487
    %1728 = vmatpush1.bf16.msra.mxu0 %v1486
    %1729 = vmatprep.subr.bf16.mxu0 %v1495
    %1730 = vmatpush1.bf16.msra.mxu0 %v1494
    %1731 = vmatprep.subr.bf16.mxu0 %v1503
    %1732 = vmatpush1.bf16.msra.mxu0 %v1502
    %1733 = vmatprep.subr.bf16.mxu0 %v1511
    %1734 = vmatpush1.bf16.msra.mxu0 %v1510
    %1735 = vmatprep.subr.bf16.mxu0 %v1519
    %1736 = vmatpush1.bf16.msra.mxu0 %v1518
    %1737 = vmatprep.subr.bf16.mxu0 %v1527
    %1738 = vmatpush1.bf16.msra.mxu0 %v1526
    %1739 = vmatprep.subr.bf16.mxu0 %v1535
    %1740 = vmatpush1.bf16.msra.mxu0 %v1534
    %1741 = vmatprep.mubr.bf16.mxu0 %v1543
    %1742 = vmatmul.mubr.bf16.gmra.mrb[0].mxu0 %v1542
    %v1743 = vpop.f32.mrb[0].mxu0
    %v1744 = vadd.f32 %v1703, %v1743
    %v1745 = vpop.f32.mrb[0].mxu0
    %v1746 = vadd.f32 %v1705, %v1745
    %v1747 = vpop.f32.mrb[0].mxu0
    %v1748 = vpop.f32.mrb[0].mxu0
    %1749 = vdwg.mxu0
    %1750 = vmatprep.subr.bf16.mxu0 %v1289
    %1751 = vmatpush1.bf16.msra.mxu0 %v1288
    %1752 = vmatprep.subr.bf16.mxu0 %v1297
    %1753 = vmatpush1.bf16.msra.mxu0 %v1296
    %1754 = vmatprep.subr.bf16.mxu0 %v1305
    %1755 = vmatpush1.bf16.msra.mxu0 %v1304
    %1756 = vmatprep.subr.bf16.mxu0 %v1313
    %1757 = vmatpush1.bf16.msra.mxu0 %v1312
    %1758 = vmatprep.subr.bf16.mxu0 %v1321
    %1759 = vmatpush1.bf16.msra.mxu0 %v1320
    %1760 = vmatprep.subr.bf16.mxu0 %v1329
    %1761 = vmatpush1.bf16.msra.mxu0 %v1328
    %1762 = vmatprep.subr.bf16.mxu0 %v1337
    %1763 = vmatpush1.bf16.msra.mxu0 %v1336
    %1764 = vmatprep.subr.bf16.mxu0 %v1345
    %1765 = vmatpush1.bf16.msra.mxu0 %v1344
    %1766 = vmatprep.subr.bf16.mxu0 %v1353
    %1767 = vmatpush1.bf16.msra.mxu0 %v1352
    %1768 = vmatprep.subr.bf16.mxu0 %v1361
    %1769 = vmatpush1.bf16.msra.mxu0 %v1360
    %1770 = vmatprep.subr.bf16.mxu0 %v1369
    %1771 = vmatpush1.bf16.msra.mxu0 %v1368
    %1772 = vmatprep.subr.bf16.mxu0 %v1377
    %1773 = vmatpush1.bf16.msra.mxu0 %v1376
    %1774 = vmatprep.subr.bf16.mxu0 %v1385
    %1775 = vmatpush1.bf16.msra.mxu0 %v1384
    %1776 = vmatprep.subr.bf16.mxu0 %v1393
    %1777 = vmatpush1.bf16.msra.mxu0 %v1392
    %1778 = vmatprep.subr.bf16.mxu0 %v1401
    %1779 = vmatpush1.bf16.msra.mxu0 %v1400
    %1780 = vmatprep.subr.bf16.mxu0 %v1409
    %1781 = vmatpush1.bf16.msra.mxu0 %v1408
    %1782 = vmatprep.mubr.bf16.mxu0 %v1541
    %1783 = vmatmul.mubr.bf16.gmra.mrb[0].mxu0 %v1540
    %v1784 = vpop.f32.mrb[0].mxu0
    %v1785 = vadd.f32 %v1565, %v1784
    %v1786 = vpop.f32.mrb[0].mxu0
    %v1787 = vadd.f32 %v1569, %v1786
    %v1788 = vpop.f32.mrb[0].mxu0
    %v1789 = vpop.f32.mrb[0].mxu0
    %1790 = vdwg.mxu0
    %1791 = vmatprep.subr.bf16.mxu0 %v1417
    %1792 = vmatpush1.bf16.msra.mxu0 %v1416
    %1793 = vmatprep.subr.bf16.mxu0 %v1425
    %1794 = vmatpush1.bf16.msra.mxu0 %v1424
    %1795 = vmatprep.subr.bf16.mxu0 %v1433
    %1796 = vmatpush1.bf16.msra.mxu0 %v1432
    %1797 = vmatprep.subr.bf16.mxu0 %v1441
    %1798 = vmatpush1.bf16.msra.mxu0 %v1440
    %1799 = vmatprep.subr.bf16.mxu0 %v1449
    %1800 = vmatpush1.bf16.msra.mxu0 %v1448
    %1801 = vmatprep.subr.bf16.mxu0 %v1457
    %1802 = vmatpush1.bf16.msra.mxu0 %v1456
    %1803 = vmatprep.subr.bf16.mxu0 %v1465
    %1804 = vmatpush1.bf16.msra.mxu0 %v1464
    %1805 = vmatprep.subr.bf16.mxu0 %v1473
    %1806 = vmatpush1.bf16.msra.mxu0 %v1472
    %1807 = vmatprep.subr.bf16.mxu0 %v1481
    %1808 = vmatpush1.bf16.msra.mxu0 %v1480
    %1809 = vmatprep.subr.bf16.mxu0 %v1489
    %1810 = vmatpush1.bf16.msra.mxu0 %v1488
    %1811 = vmatprep.subr.bf16.mxu0 %v1497
    %1812 = vmatpush1.bf16.msra.mxu0 %v1496
    %1813 = vmatprep.subr.bf16.mxu0 %v1505
    %1814 = vmatpush1.bf16.msra.mxu0 %v1504
    %1815 = vmatprep.subr.bf16.mxu0 %v1513
    %1816 = vmatpush1.bf16.msra.mxu0 %v1512
    %1817 = vmatprep.subr.bf16.mxu0 %v1521
    %1818 = vmatpush1.bf16.msra.mxu0 %v1520
    %1819 = vmatprep.subr.bf16.mxu0 %v1529
    %1820 = vmatpush1.bf16.msra.mxu0 %v1528
    %1821 = vmatprep.subr.bf16.mxu0 %v1537
    %1822 = vmatpush1.bf16.msra.mxu0 %v1536
    %1823 = vmatprep.mubr.bf16.mxu0 %v1543
    %1824 = vmatmul.mubr.bf16.gmra.mrb[0].mxu0 %v1542
    %v1825 = vpop.f32.mrb[0].mxu0
    %v1826 = vadd.f32 %v1785, %v1825
    %v1827 = vpop.f32.mrb[0].mxu0
    %v1828 = vadd.f32 %v1787, %v1827
    %v1829 = vpop.f32.mrb[0].mxu0
    %v1830 = vpop.f32.mrb[0].mxu0
    %1831 = vdwg.mxu0
    %1832 = vmatprep.subr.bf16.mxu0 %v1291
    %1833 = vmatpush1.bf16.msra.mxu0 %v1290
    %1834 = vmatprep.subr.bf16.mxu0 %v1299
    %1835 = vmatpush1.bf16.msra.mxu0 %v1298
    %1836 = vmatprep.subr.bf16.mxu0 %v1307
    %1837 = vmatpush1.bf16.msra.mxu0 %v1306
    %1838 = vmatprep.subr.bf16.mxu0 %v1315
    %1839 = vmatpush1.bf16.msra.mxu0 %v1314
    %1840 = vmatprep.subr.bf16.mxu0 %v1323
    %1841 = vmatpush1.bf16.msra.mxu0 %v1322
    %1842 = vmatprep.subr.bf16.mxu0 %v1331
    %1843 = vmatpush1.bf16.msra.mxu0 %v1330
    %1844 = vmatprep.subr.bf16.mxu0 %v1339
    %1845 = vmatpush1.bf16.msra.mxu0 %v1338
    %1846 = vmatprep.subr.bf16.mxu0 %v1347
    %1847 = vmatpush1.bf16.msra.mxu0 %v1346
    %1848 = vmatprep.subr.bf16.mxu0 %v1355
    %1849 = vmatpush1.bf16.msra.mxu0 %v1354
    %1850 = vmatprep.subr.bf16.mxu0 %v1363
    %1851 = vmatpush1.bf16.msra.mxu0 %v1362
    %1852 = vmatprep.subr.bf16.mxu0 %v1371
    %1853 = vmatpush1.bf16.msra.mxu0 %v1370
    %1854 = vmatprep.subr.bf16.mxu0 %v1379
    %1855 = vmatpush1.bf16.msra.mxu0 %v1378
    %1856 = vmatprep.subr.bf16.mxu0 %v1387
    %1857 = vmatpush1.bf16.msra.mxu0 %v1386
    %1858 = vmatprep.subr.bf16.mxu0 %v1395
    %1859 = vmatpush1.bf16.msra.mxu0 %v1394
    %1860 = vmatprep.subr.bf16.mxu0 %v1403
    %1861 = vmatpush1.bf16.msra.mxu0 %v1402
    %1862 = vmatprep.subr.bf16.mxu0 %v1411
    %1863 = vmatpush1.bf16.msra.mxu0 %v1410
    %1864 = vmatprep.mubr.bf16.mxu0 %v1541
    %1865 = vmatmul.mubr.bf16.gmra.mrb[0].mxu0 %v1540
    %v1866 = vpop.f32.mrb[0].mxu0
    %v1867 = vadd.f32 %v1573, %v1866
    %v1868 = vpop.f32.mrb[0].mxu0
    %v1869 = vadd.f32 %v1577, %v1868
    %v1870 = vpop.f32.mrb[0].mxu0
    %v1871 = vpop.f32.mrb[0].mxu0
    %1872 = vdwg.mxu0
    %1873 = vmatprep.subr.bf16.mxu0 %v1419
    %1874 = vmatpush1.bf16.msra.mxu0 %v1418
    %1875 = vmatprep.subr.bf16.mxu0 %v1427
    %1876 = vmatpush1.bf16.msra.mxu0 %v1426
    %1877 = vmatprep.subr.bf16.mxu0 %v1435
    %1878 = vmatpush1.bf16.msra.mxu0 %v1434
    %1879 = vmatprep.subr.bf16.mxu0 %v1443
    %1880 = vmatpush1.bf16.msra.mxu0 %v1442
    %1881 = vmatprep.subr.bf16.mxu0 %v1451
    %1882 = vmatpush1.bf16.msra.mxu0 %v1450
    %1883 = vmatprep.subr.bf16.mxu0 %v1459
    %1884 = vmatpush1.bf16.msra.mxu0 %v1458
    %1885 = vmatprep.subr.bf16.mxu0 %v1467
    %1886 = vmatpush1.bf16.msra.mxu0 %v1466
    %1887 = vmatprep.subr.bf16.mxu0 %v1475
    %1888 = vmatpush1.bf16.msra.mxu0 %v1474
    %1889 = vmatprep.subr.bf16.mxu0 %v1483
    %1890 = vmatpush1.bf16.msra.mxu0 %v1482
    %1891 = vmatprep.subr.bf16.mxu0 %v1491
    %1892 = vmatpush1.bf16.msra.mxu0 %v1490
    %1893 = vmatprep.subr.bf16.mxu0 %v1499
    %1894 = vmatpush1.bf16.msra.mxu0 %v1498
    %1895 = vmatprep.subr.bf16.mxu0 %v1507
    %1896 = vmatpush1.bf16.msra.mxu0 %v1506
    %1897 = vmatprep.subr.bf16.mxu0 %v1515
    %1898 = vmatpush1.bf16.msra.mxu0 %v1514
    %1899 = vmatprep.subr.bf16.mxu0 %v1523
    %1900 = vmatpush1.bf16.msra.mxu0 %v1522
    %1901 = vmatprep.subr.bf16.mxu0 %v1531
    %1902 = vmatpush1.bf16.msra.mxu0 %v1530
    %1903 = vmatprep.subr.bf16.mxu0 %v1539
    %1904 = vmatpush1.bf16.msra.mxu0 %v1538
    %1905 = vmatprep.mubr.bf16.mxu0 %v1543
    %1906 = vmatmul.mubr.bf16.gmra.mrb[0].mxu0 %v1542
    %v1907 = vpop.f32.mrb[0].mxu0
    %v1908 = vadd.f32 %v1867, %v1907
    %v1909 = vpop.f32.mrb[0].mxu0
    %v1910 = vadd.f32 %v1869, %v1909
    %v1911 = vpop.f32.mrb[0].mxu0
    %v1912 = vpop.f32.mrb[0].mxu0
    %1913 = vdwg.mxu0
    %v1914 = vrot.slane %v1662, 4
    %v1915 = vadd.f32 %v1662, %v1914
    %v1916 = vrot.slane %v1915, 2
    %v1917 = vadd.f32 %v1915, %v1916
    %v1918 = vrot.slane %v1917, 1
    %v1919 = vadd.f32 %v1917, %v1918
    %v1920 = vrot.slane %v1664, 4
    %v1921 = vadd.f32 %v1664, %v1920
    %v1922 = vrot.slane %v1921, 2
    %v1923 = vadd.f32 %v1921, %v1922
    %v1924 = vrot.slane %v1923, 1
    %v1925 = vadd.f32 %v1923, %v1924
    %v1926 = vrot.slane %v1744, 4
    %v1927 = vadd.f32 %v1744, %v1926
    %v1928 = vrot.slane %v1927, 2
    %v1929 = vadd.f32 %v1927, %v1928
    %v1930 = vrot.slane %v1929, 1
    %v1931 = vadd.f32 %v1929, %v1930
    %v1932 = vrot.slane %v1746, 4
    %v1933 = vadd.f32 %v1746, %v1932
    %v1934 = vrot.slane %v1933, 2
    %v1935 = vadd.f32 %v1933, %v1934
    %v1936 = vrot.slane %v1935, 1
    %v1937 = vadd.f32 %v1935, %v1936
    %v1938 = vrot.slane %v1826, 4
    %v1939 = vadd.f32 %v1826, %v1938
    %v1940 = vrot.slane %v1939, 2
    %v1941 = vadd.f32 %v1939, %v1940
    %v1942 = vrot.slane %v1941, 1
    %v1943 = vadd.f32 %v1941, %v1942
    %v1944 = vrot.slane %v1828, 4
    %v1945 = vadd.f32 %v1828, %v1944
    %v1946 = vrot.slane %v1945, 2
    %v1947 = vadd.f32 %v1945, %v1946
    %v1948 = vrot.slane %v1947, 1
    %v1949 = vadd.f32 %v1947, %v1948
    %v1950 = vrot.slane %v1908, 4
    %v1951 = vadd.f32 %v1908, %v1950
    %v1952 = vrot.slane %v1951, 2
    %v1953 = vadd.f32 %v1951, %v1952
    %v1954 = vrot.slane %v1953, 1
    %v1955 = vadd.f32 %v1953, %v1954
    %v1956 = vrot.slane %v1910, 4
    %v1957 = vadd.f32 %v1910, %v1956
    %v1958 = vrot.slane %v1957, 2
    %v1959 = vadd.f32 %v1957, %v1958
    %v1960 = vrot.slane %v1959, 1
    %v1961 = vadd.f32 %v1959, %v1960
    %v1962 = vmul.f32 %v1919, %v583
    %v1963 = vmul.f32 %v1925, %v583
    %v1964 = vmul.f32 %v1931, %v583
    %v1965 = vmul.f32 %v1937, %v583
    %v1966 = vmul.f32 %v1943, %v583
    %v1967 = vmul.f32 %v1949, %v583
    %v1968 = vmul.f32 %v1955, %v583
    %v1969 = vmul.f32 %v1961, %v583
    %v1970 = vmul.f32 %v1662, %v1662
    %v1971 = vmul.f32 %v1664, %v1664
    %v1972 = vmul.f32 %v1744, %v1744
    %v1973 = vmul.f32 %v1746, %v1746
    %v1974 = vmul.f32 %v1826, %v1826
    %v1975 = vmul.f32 %v1828, %v1828
    %v1976 = vmul.f32 %v1908, %v1908
    %v1977 = vmul.f32 %v1910, %v1910
    %v1978 = vrot.slane %v1970, 4
    %v1979 = vadd.f32 %v1970, %v1978
    %v1980 = vrot.slane %v1979, 2
    %v1981 = vadd.f32 %v1979, %v1980
    %v1982 = vrot.slane %v1981, 1
    %v1983 = vadd.f32 %v1981, %v1982
    %v1984 = vrot.slane %v1971, 4
    %v1985 = vadd.f32 %v1971, %v1984
    %v1986 = vrot.slane %v1985, 2
    %v1987 = vadd.f32 %v1985, %v1986
    %v1988 = vrot.slane %v1987, 1
    %v1989 = vadd.f32 %v1987, %v1988
    %v1990 = vrot.slane %v1972, 4
    %v1991 = vadd.f32 %v1972, %v1990
    %v1992 = vrot.slane %v1991, 2
    %v1993 = vadd.f32 %v1991, %v1992
    %v1994 = vrot.slane %v1993, 1
    %v1995 = vadd.f32 %v1993, %v1994
    %v1996 = vrot.slane %v1973, 4
    %v1997 = vadd.f32 %v1973, %v1996
    %v1998 = vrot.slane %v1997, 2
    %v1999 = vadd.f32 %v1997, %v1998
    %v2000 = vrot.slane %v1999, 1
    %v2001 = vadd.f32 %v1999, %v2000
    %v2002 = vrot.slane %v1974, 4
    %v2003 = vadd.f32 %v1974, %v2002
    %v2004 = vrot.slane %v2003, 2
    %v2005 = vadd.f32 %v2003, %v2004
    %v2006 = vrot.slane %v2005, 1
    %v2007 = vadd.f32 %v2005, %v2006
    %v2008 = vrot.slane %v1975, 4
    %v2009 = vadd.f32 %v1975, %v2008
    %v2010 = vrot.slane %v2009, 2
    %v2011 = vadd.f32 %v2009, %v2010
    %v2012 = vrot.slane %v2011, 1
    %v2013 = vadd.f32 %v2011, %v2012
    %v2014 = vrot.slane %v1976, 4
    %v2015 = vadd.f32 %v1976, %v2014
    %v2016 = vrot.slane %v2015, 2
    %v2017 = vadd.f32 %v2015, %v2016
    %v2018 = vrot.slane %v2017, 1
    %v2019 = vadd.f32 %v2017, %v2018
    %v2020 = vrot.slane %v1977, 4
    %v2021 = vadd.f32 %v1977, %v2020
    %v2022 = vrot.slane %v2021, 2
    %v2023 = vadd.f32 %v2021, %v2022
    %v2024 = vrot.slane %v2023, 1
    %v2025 = vadd.f32 %v2023, %v2024
    %v2026 = vmul.f32 %v1983, %v583
    %v2027 = vmul.f32 %v1989, %v583
    %v2028 = vmul.f32 %v1995, %v583
    %v2029 = vmul.f32 %v2001, %v583
    %v2030 = vmul.f32 %v2007, %v583
    %v2031 = vmul.f32 %v2013, %v583
    %v2032 = vmul.f32 %v2019, %v583
    %v2033 = vmul.f32 %v2025, %v583
    %v2034 = vmul.f32 %v1962, %v1962
    %v2035 = vmul.f32 %v1963, %v1963
    %v2036 = vmul.f32 %v1964, %v1964
    %v2037 = vmul.f32 %v1965, %v1965
    %v2038 = vmul.f32 %v1966, %v1966
    %v2039 = vmul.f32 %v1967, %v1967
    %v2040 = vmul.f32 %v1968, %v1968
    %v2041 = vmul.f32 %v1969, %v1969
    %v2042 = vsub.f32 %v2026, %v2034
    %v2043 = vsub.f32 %v2027, %v2035
    %v2044 = vsub.f32 %v2028, %v2036
    %v2045 = vsub.f32 %v2029, %v2037
    %v2046 = vsub.f32 %v2030, %v2038
    %v2047 = vsub.f32 %v2031, %v2039
    %v2048 = vsub.f32 %v2032, %v2040
    %v2049 = vsub.f32 %v2033, %v2041
    %v2050 = vsub.f32 %v1662, %v1962
    %v2051 = vsub.f32 %v1664, %v1963
    %v2052 = vsub.f32 %v1744, %v1964
    %v2053 = vsub.f32 %v1746, %v1965
    %v2054 = vsub.f32 %v1826, %v1966
    %v2055 = vsub.f32 %v1828, %v1967
    %v2056 = vsub.f32 %v1908, %v1968
    %v2057 = vsub.f32 %v1910, %v1969
    %v2058 = vadd.f32 %v2042, 0.8
    %v2059 = vadd.f32 %v2043, 0.8
    %v2060 = vadd.f32 %v2044, 0.8
    %v2061 = vadd.f32 %v2045, 0.8
    %v2062 = vadd.f32 %v2046, 0.8
    %v2063 = vadd.f32 %v2047, 0.8
    %v2064 = vadd.f32 %v2048, 0.8
    %v2065 = vadd.f32 %v2049, 0.8
    %v2066 = vrsqrt.pop %v2058
    %v2067 = vrsqrt.pop %v2059
    %v2068 = vrsqrt.pop %v2060
    %v2069 = vrsqrt.pop %v2061
    %v2070 = vrsqrt.pop %v2062
    %v2071 = vrsqrt.pop %v2063
    %v2072 = vrsqrt.pop %v2064
    %v2073 = vrsqrt.pop %v2065
    %v2074 = vmul.f32 %v2050, %v2066
    %v2075 = vmul.f32 %v2051, %v2067
    %v2076 = vmul.f32 %v2052, %v2068
    %v2077 = vmul.f32 %v2053, %v2069
    %v2078 = vmul.f32 %v2054, %v2070
    %v2079 = vmul.f32 %v2055, %v2071
    %v2080 = vmul.f32 %v2056, %v2072
    %v2081 = vmul.f32 %v2057, %v2073
    %v2082 = vld [vmem:[#allocation25] sm:$0xff]
    %v2084 = vlaneseq
    %v2085 = vshrl.u32 %v2084, 7
    %v2086 = vsub.s32 0, %v2085
    %v2087 = vrot.slane %v2082, %v2086
    %v2088 = vlaneseq
    %v2089 = vshrl.u32 %v2088, 7
    %v2090 = vsub.s32 1, %v2089
    %v2091 = vrot.slane %v2082, %v2090
    %v2092 = vlaneseq
    %v2093 = vshrl.u32 %v2092, 7
    %v2094 = vsub.s32 2, %v2093
    %v2095 = vrot.slane %v2082, %v2094
    %v2096 = vlaneseq
    %v2097 = vshrl.u32 %v2096, 7
    %v2098 = vsub.s32 3, %v2097
    %v2099 = vrot.slane %v2082, %v2098
    %v2100 = vlaneseq
    %v2101 = vshrl.u32 %v2100, 7
    %v2102 = vsub.s32 4, %v2101
    %v2103 = vrot.slane %v2082, %v2102
    %v2104 = vlaneseq
    %v2105 = vshrl.u32 %v2104, 7
    %v2106 = vsub.s32 5, %v2105
    %v2107 = vrot.slane %v2082, %v2106
    %v2108 = vlaneseq
    %v2109 = vshrl.u32 %v2108, 7
    %v2110 = vsub.s32 6, %v2109
    %v2111 = vrot.slane %v2082, %v2110
    %v2112 = vlaneseq
    %v2113 = vshrl.u32 %v2112, 7
    %v2114 = vsub.s32 7, %v2113
    %v2115 = vrot.slane %v2082, %v2114
    %v2124 = vmul.f32 %v2087, %v2074
    %v2125 = vmul.f32 %v2091, %v2075
    %v2126 = vmul.f32 %v2095, %v2076
    %v2127 = vmul.f32 %v2099, %v2077
    %v2128 = vmul.f32 %v2103, %v2078
    %v2129 = vmul.f32 %v2107, %v2079
    %v2130 = vmul.f32 %v2111, %v2080
    %v2131 = vmul.f32 %v2115, %v2081
    %v2132 = vld [vmem:[#allocation26] sm:$0xff]
    %v2134 = vlaneseq
    %v2135 = vshrl.u32 %v2134, 7
    %v2136 = vsub.s32 0, %v2135
    %v2137 = vrot.slane %v2132, %v2136
    %v2138 = vlaneseq
    %v2139 = vshrl.u32 %v2138, 7
    %v2140 = vsub.s32 1, %v2139
    %v2141 = vrot.slane %v2132, %v2140
    %v2142 = vlaneseq
    %v2143 = vshrl.u32 %v2142, 7
    %v2144 = vsub.s32 2, %v2143
    %v2145 = vrot.slane %v2132, %v2144
    %v2146 = vlaneseq
    %v2147 = vshrl.u32 %v2146, 7
    %v2148 = vsub.s32 3, %v2147
    %v2149 = vrot.slane %v2132, %v2148
    %v2150 = vlaneseq
    %v2151 = vshrl.u32 %v2150, 7
    %v2152 = vsub.s32 4, %v2151
    %v2153 = vrot.slane %v2132, %v2152
    %v2154 = vlaneseq
    %v2155 = vshrl.u32 %v2154, 7
    %v2156 = vsub.s32 5, %v2155
    %v2157 = vrot.slane %v2132, %v2156
    %v2158 = vlaneseq
    %v2159 = vshrl.u32 %v2158, 7
    %v2160 = vsub.s32 6, %v2159
    %v2161 = vrot.slane %v2132, %v2160
    %v2162 = vlaneseq
    %v2163 = vshrl.u32 %v2162, 7
    %v2164 = vsub.s32 7, %v2163
    %v2165 = vrot.slane %v2132, %v2164
    %v2174 = vadd.f32 %v2124, %v2137
    %v2175 = vadd.f32 %v2125, %v2141
    %v2176 = vadd.f32 %v2126, %v2145
    %v2177 = vadd.f32 %v2127, %v2149
    %v2178 = vadd.f32 %v2128, %v2153
    %v2179 = vadd.f32 %v2129, %v2157
    %v2180 = vadd.f32 %v2130, %v2161
    %v2181 = vadd.f32 %v2131, %v2165
    %v2182 = vmul.f32 %v2174, 0.2
    %v2183 = vmul.f32 %v2175, 0.2
    %v2184 = vmul.f32 %v2176, 0.2
    %v2185 = vmul.f32 %v2177, 0.2
    %v2186 = vmul.f32 %v2178, 0.2
    %v2187 = vmul.f32 %v2179, 0.2
    %v2188 = vmul.f32 %v2180, 0.2
    %v2189 = vmul.f32 %v2181, 0.2
    %v2190 = vmax.f32 %v2174, %v2182
    %v2191 = vmax.f32 %v2175, %v2183
    %v2192 = vmax.f32 %v2176, %v2184
    %v2193 = vmax.f32 %v2177, %v2185
    %v2194 = vmax.f32 %v2178, %v2186
    %v2195 = vmax.f32 %v2179, %v2187
    %v2196 = vmax.f32 %v2180, %v2188
    %v2197 = vmax.f32 %v2181, %v2189
    %s2198 = smul.u32 4, 128
    %s2199 = smul.u32 %s2198, 7
    %s2200 = sshll.u32 %s2199, 4
    %2201 = dma.done %s267, %s2200
    %v2202 = vld [vmem:[#allocation4] sm:$0xff]
    %v2203 = vld [vmem:[#allocation4 + $0x8] sm:$0xff]
    %v2204 = vld [vmem:[#allocation4 + $0x10] sm:$0xff]
    %v2205 = vld [vmem:[#allocation4 + $0x18] sm:$0xff]
    %v2206 = vld [vmem:[#allocation4 + $0x20] sm:$0xff]
    %v2207 = vld [vmem:[#allocation4 + $0x28] sm:$0xff]
    %v2208 = vld [vmem:[#allocation4 + $0x30] sm:$0xff]
    %v2209 = vld [vmem:[#allocation4 + $0x38] sm:$0xff]
    %v2210 = vld [vmem:[#allocation4 + $0x40] sm:$0xff]
    %v2211 = vld [vmem:[#allocation4 + $0x48] sm:$0xff]
    %v2212 = vld [vmem:[#allocation4 + $0x50] sm:$0xff]
    %v2213 = vld [vmem:[#allocation4 + $0x58] sm:$0xff]
    %v2214 = vld [vmem:[#allocation4 + $0x60] sm:$0xff]
    %v2215 = vld [vmem:[#allocation4 + $0x68] sm:$0xff]
    %v2216 = vld [vmem:[#allocation4 + $0x70] sm:$0xff]
    %v2217 = vld [vmem:[#allocation4 + $0x78] sm:$0xff]
    %v2218 = vld [vmem:[#allocation4 + $0x80] sm:$0xff]
    %v2219 = vld [vmem:[#allocation4 + $0x88] sm:$0xff]
    %v2220 = vld [vmem:[#allocation4 + $0x90] sm:$0xff]
    %v2221 = vld [vmem:[#allocation4 + $0x98] sm:$0xff]
    %v2222 = vld [vmem:[#allocation4 + $0xa0] sm:$0xff]
    %v2223 = vld [vmem:[#allocation4 + $0xa8] sm:$0xff]
    %v2224 = vld [vmem:[#allocation4 + $0xb0] sm:$0xff]
    %v2225 = vld [vmem:[#allocation4 + $0xb8] sm:$0xff]
    %v2226 = vld [vmem:[#allocation4 + $0xc0] sm:$0xff]
    %v2227 = vld [vmem:[#allocation4 + $0xc8] sm:$0xff]
    %v2228 = vld [vmem:[#allocation4 + $0xd0] sm:$0xff]
    %v2229 = vld [vmem:[#allocation4 + $0xd8] sm:$0xff]
    %v2230 = vld [vmem:[#allocation4 + $0xe0] sm:$0xff]
    %v2231 = vld [vmem:[#allocation4 + $0xe8] sm:$0xff]
    %v2232 = vld [vmem:[#allocation4 + $0xf0] sm:$0xff]
    %v2233 = vld [vmem:[#allocation4 + $0xf8] sm:$0xff]
    %v2234 = vld [vmem:[#allocation4 + $0x100] sm:$0xff]
    %v2235 = vld [vmem:[#allocation4 + $0x108] sm:$0xff]
    %v2236 = vld [vmem:[#allocation4 + $0x110] sm:$0xff]
    %v2237 = vld [vmem:[#allocation4 + $0x118] sm:$0xff]
    %v2238 = vld [vmem:[#allocation4 + $0x120] sm:$0xff]
    %v2239 = vld [vmem:[#allocation4 + $0x128] sm:$0xff]
    %v2240 = vld [vmem:[#allocation4 + $0x130] sm:$0xff]
    %v2241 = vld [vmem:[#allocation4 + $0x138] sm:$0xff]
    %v2242 = vld [vmem:[#allocation4 + $0x140] sm:$0xff]
    %v2243 = vld [vmem:[#allocation4 + $0x148] sm:$0xff]
    %v2244 = vld [vmem:[#allocation4 + $0x150] sm:$0xff]
    %v2245 = vld [vmem:[#allocation4 + $0x158] sm:$0xff]
    %v2246 = vld [vmem:[#allocation4 + $0x160] sm:$0xff]
    %v2247 = vld [vmem:[#allocation4 + $0x168] sm:$0xff]
    %v2248 = vld [vmem:[#allocation4 + $0x170] sm:$0xff]
    %v2249 = vld [vmem:[#allocation4 + $0x178] sm:$0xff]
    %v2250 = vld [vmem:[#allocation4 + $0x180] sm:$0xff]
    %v2251 = vld [vmem:[#allocation4 + $0x188] sm:$0xff]
    %v2252 = vld [vmem:[#allocation4 + $0x190] sm:$0xff]
    %v2253 = vld [vmem:[#allocation4 + $0x198] sm:$0xff]
    %v2254 = vld [vmem:[#allocation4 + $0x1a0] sm:$0xff]
    %v2255 = vld [vmem:[#allocation4 + $0x1a8] sm:$0xff]
    %v2256 = vld [vmem:[#allocation4 + $0x1b0] sm:$0xff]
    %v2257 = vld [vmem:[#allocation4 + $0x1b8] sm:$0xff]
    %v2258 = vld [vmem:[#allocation4 + $0x1c0] sm:$0xff]
    %v2259 = vld [vmem:[#allocation4 + $0x1c8] sm:$0xff]
    %v2260 = vld [vmem:[#allocation4 + $0x1d0] sm:$0xff]
    %v2261 = vld [vmem:[#allocation4 + $0x1d8] sm:$0xff]
    %v2262 = vld [vmem:[#allocation4 + $0x1e0] sm:$0xff]
    %v2263 = vld [vmem:[#allocation4 + $0x1e8] sm:$0xff]
    %v2264 = vld [vmem:[#allocation4 + $0x1f0] sm:$0xff]
    %v2265 = vld [vmem:[#allocation4 + $0x1f8] sm:$0xff]
    %v2266 = vld [vmem:[#allocation4 + $0x200] sm:$0xff]
    %v2267 = vld [vmem:[#allocation4 + $0x208] sm:$0xff]
    %v2268 = vld [vmem:[#allocation4 + $0x210] sm:$0xff]
    %v2269 = vld [vmem:[#allocation4 + $0x218] sm:$0xff]
    %v2270 = vld [vmem:[#allocation4 + $0x220] sm:$0xff]
    %v2271 = vld [vmem:[#allocation4 + $0x228] sm:$0xff]
    %v2272 = vld [vmem:[#allocation4 + $0x230] sm:$0xff]
    %v2273 = vld [vmem:[#allocation4 + $0x238] sm:$0xff]
    %v2274 = vld [vmem:[#allocation4 + $0x240] sm:$0xff]
    %v2275 = vld [vmem:[#allocation4 + $0x248] sm:$0xff]
    %v2276 = vld [vmem:[#allocation4 + $0x250] sm:$0xff]
    %v2277 = vld [vmem:[#allocation4 + $0x258] sm:$0xff]
    %v2278 = vld [vmem:[#allocation4 + $0x260] sm:$0xff]
    %v2279 = vld [vmem:[#allocation4 + $0x268] sm:$0xff]
    %v2280 = vld [vmem:[#allocation4 + $0x270] sm:$0xff]
    %v2281 = vld [vmem:[#allocation4 + $0x278] sm:$0xff]
    %v2282 = vld [vmem:[#allocation4 + $0x280] sm:$0xff]
    %v2283 = vld [vmem:[#allocation4 + $0x288] sm:$0xff]
    %v2284 = vld [vmem:[#allocation4 + $0x290] sm:$0xff]
    %v2285 = vld [vmem:[#allocation4 + $0x298] sm:$0xff]
    %v2286 = vld [vmem:[#allocation4 + $0x2a0] sm:$0xff]
    %v2287 = vld [vmem:[#allocation4 + $0x2a8] sm:$0xff]
    %v2288 = vld [vmem:[#allocation4 + $0x2b0] sm:$0xff]
    %v2289 = vld [vmem:[#allocation4 + $0x2b8] sm:$0xff]
    %v2290 = vld [vmem:[#allocation4 + $0x2c0] sm:$0xff]
    %v2291 = vld [vmem:[#allocation4 + $0x2c8] sm:$0xff]
    %v2292 = vld [vmem:[#allocation4 + $0x2d0] sm:$0xff]
    %v2293 = vld [vmem:[#allocation4 + $0x2d8] sm:$0xff]
    %v2294 = vld [vmem:[#allocation4 + $0x2e0] sm:$0xff]
    %v2295 = vld [vmem:[#allocation4 + $0x2e8] sm:$0xff]
    %v2296 = vld [vmem:[#allocation4 + $0x2f0] sm:$0xff]
    %v2297 = vld [vmem:[#allocation4 + $0x2f8] sm:$0xff]
    %v2298 = vld [vmem:[#allocation4 + $0x300] sm:$0xff]
    %v2299 = vld [vmem:[#allocation4 + $0x308] sm:$0xff]
    %v2300 = vld [vmem:[#allocation4 + $0x310] sm:$0xff]
    %v2301 = vld [vmem:[#allocation4 + $0x318] sm:$0xff]
    %v2302 = vld [vmem:[#allocation4 + $0x320] sm:$0xff]
    %v2303 = vld [vmem:[#allocation4 + $0x328] sm:$0xff]
    %v2304 = vld [vmem:[#allocation4 + $0x330] sm:$0xff]
    %v2305 = vld [vmem:[#allocation4 + $0x338] sm:$0xff]
    %v2306 = vld [vmem:[#allocation4 + $0x340] sm:$0xff]
    %v2307 = vld [vmem:[#allocation4 + $0x348] sm:$0xff]
    %v2308 = vld [vmem:[#allocation4 + $0x350] sm:$0xff]
    %v2309 = vld [vmem:[#allocation4 + $0x358] sm:$0xff]
    %v2310 = vld [vmem:[#allocation4 + $0x360] sm:$0xff]
    %v2311 = vld [vmem:[#allocation4 + $0x368] sm:$0xff]
    %v2312 = vld [vmem:[#allocation4 + $0x370] sm:$0xff]
    %v2313 = vld [vmem:[#allocation4 + $0x378] sm:$0xff]
    %v2314 = vld [vmem:[#allocation4 + $0x380] sm:$0xff]
    %v2315 = vld [vmem:[#allocation4 + $0x388] sm:$0xff]
    %v2316 = vld [vmem:[#allocation4 + $0x390] sm:$0xff]
    %v2317 = vld [vmem:[#allocation4 + $0x398] sm:$0xff]
    %v2318 = vld [vmem:[#allocation4 + $0x3a0] sm:$0xff]
    %v2319 = vld [vmem:[#allocation4 + $0x3a8] sm:$0xff]
    %v2320 = vld [vmem:[#allocation4 + $0x3b0] sm:$0xff]
    %v2321 = vld [vmem:[#allocation4 + $0x3b8] sm:$0xff]
    %v2322 = vld [vmem:[#allocation4 + $0x3c0] sm:$0xff]
    %v2323 = vld [vmem:[#allocation4 + $0x3c8] sm:$0xff]
    %v2324 = vld [vmem:[#allocation4 + $0x3d0] sm:$0xff]
    %v2325 = vld [vmem:[#allocation4 + $0x3d8] sm:$0xff]
    %v2326 = vld [vmem:[#allocation4 + $0x3e0] sm:$0xff]
    %v2327 = vld [vmem:[#allocation4 + $0x3e8] sm:$0xff]
    %v2328 = vld [vmem:[#allocation4 + $0x3f0] sm:$0xff]
    %v2329 = vld [vmem:[#allocation4 + $0x3f8] sm:$0xff]
    %v2330 = vld [vmem:[#allocation4 + $0x400] sm:$0xff]
    %v2331 = vld [vmem:[#allocation4 + $0x408] sm:$0xff]
    %v2332 = vld [vmem:[#allocation4 + $0x410] sm:$0xff]
    %v2333 = vld [vmem:[#allocation4 + $0x418] sm:$0xff]
    %v2334 = vld [vmem:[#allocation4 + $0x420] sm:$0xff]
    %v2335 = vld [vmem:[#allocation4 + $0x428] sm:$0xff]
    %v2336 = vld [vmem:[#allocation4 + $0x430] sm:$0xff]
    %v2337 = vld [vmem:[#allocation4 + $0x438] sm:$0xff]
    %v2338 = vld [vmem:[#allocation4 + $0x440] sm:$0xff]
    %v2339 = vld [vmem:[#allocation4 + $0x448] sm:$0xff]
    %v2340 = vld [vmem:[#allocation4 + $0x450] sm:$0xff]
    %v2341 = vld [vmem:[#allocation4 + $0x458] sm:$0xff]
    %v2342 = vld [vmem:[#allocation4 + $0x460] sm:$0xff]
    %v2343 = vld [vmem:[#allocation4 + $0x468] sm:$0xff]
    %v2344 = vld [vmem:[#allocation4 + $0x470] sm:$0xff]
    %v2345 = vld [vmem:[#allocation4 + $0x478] sm:$0xff]
    %v2346 = vld [vmem:[#allocation4 + $0x480] sm:$0xff]
    %v2347 = vld [vmem:[#allocation4 + $0x488] sm:$0xff]
    %v2348 = vld [vmem:[#allocation4 + $0x490] sm:$0xff]
    %v2349 = vld [vmem:[#allocation4 + $0x498] sm:$0xff]
    %v2350 = vld [vmem:[#allocation4 + $0x4a0] sm:$0xff]
    %v2351 = vld [vmem:[#allocation4 + $0x4a8] sm:$0xff]
    %v2352 = vld [vmem:[#allocation4 + $0x4b0] sm:$0xff]
    %v2353 = vld [vmem:[#allocation4 + $0x4b8] sm:$0xff]
    %v2354 = vld [vmem:[#allocation4 + $0x4c0] sm:$0xff]
    %v2355 = vld [vmem:[#allocation4 + $0x4c8] sm:$0xff]
    %v2356 = vld [vmem:[#allocation4 + $0x4d0] sm:$0xff]
    %v2357 = vld [vmem:[#allocation4 + $0x4d8] sm:$0xff]
    %v2358 = vld [vmem:[#allocation4 + $0x4e0] sm:$0xff]
    %v2359 = vld [vmem:[#allocation4 + $0x4e8] sm:$0xff]
    %v2360 = vld [vmem:[#allocation4 + $0x4f0] sm:$0xff]
    %v2361 = vld [vmem:[#allocation4 + $0x4f8] sm:$0xff]
    %v2362 = vld [vmem:[#allocation4 + $0x500] sm:$0xff]
    %v2363 = vld [vmem:[#allocation4 + $0x508] sm:$0xff]
    %v2364 = vld [vmem:[#allocation4 + $0x510] sm:$0xff]
    %v2365 = vld [vmem:[#allocation4 + $0x518] sm:$0xff]
    %v2366 = vld [vmem:[#allocation4 + $0x520] sm:$0xff]
    %v2367 = vld [vmem:[#allocation4 + $0x528] sm:$0xff]
    %v2368 = vld [vmem:[#allocation4 + $0x530] sm:$0xff]
    %v2369 = vld [vmem:[#allocation4 + $0x538] sm:$0xff]
    %v2370 = vld [vmem:[#allocation4 + $0x540] sm:$0xff]
    %v2371 = vld [vmem:[#allocation4 + $0x548] sm:$0xff]
    %v2372 = vld [vmem:[#allocation4 + $0x550] sm:$0xff]
    %v2373 = vld [vmem:[#allocation4 + $0x558] sm:$0xff]
    %v2374 = vld [vmem:[#allocation4 + $0x560] sm:$0xff]
    %v2375 = vld [vmem:[#allocation4 + $0x568] sm:$0xff]
    %v2376 = vld [vmem:[#allocation4 + $0x570] sm:$0xff]
    %v2377 = vld [vmem:[#allocation4 + $0x578] sm:$0xff]
    %v2378 = vld [vmem:[#allocation4 + $0x580] sm:$0xff]
    %v2379 = vld [vmem:[#allocation4 + $0x588] sm:$0xff]
    %v2380 = vld [vmem:[#allocation4 + $0x590] sm:$0xff]
    %v2381 = vld [vmem:[#allocation4 + $0x598] sm:$0xff]
    %v2382 = vld [vmem:[#allocation4 + $0x5a0] sm:$0xff]
    %v2383 = vld [vmem:[#allocation4 + $0x5a8] sm:$0xff]
    %v2384 = vld [vmem:[#allocation4 + $0x5b0] sm:$0xff]
    %v2385 = vld [vmem:[#allocation4 + $0x5b8] sm:$0xff]
    %v2386 = vld [vmem:[#allocation4 + $0x5c0] sm:$0xff]
    %v2387 = vld [vmem:[#allocation4 + $0x5c8] sm:$0xff]
    %v2388 = vld [vmem:[#allocation4 + $0x5d0] sm:$0xff]
    %v2389 = vld [vmem:[#allocation4 + $0x5d8] sm:$0xff]
    %v2390 = vld [vmem:[#allocation4 + $0x5e0] sm:$0xff]
    %v2391 = vld [vmem:[#allocation4 + $0x5e8] sm:$0xff]
    %v2392 = vld [vmem:[#allocation4 + $0x5f0] sm:$0xff]
    %v2393 = vld [vmem:[#allocation4 + $0x5f8] sm:$0xff]
    %v2394 = vld [vmem:[#allocation4 + $0x600] sm:$0xff]
    %v2395 = vld [vmem:[#allocation4 + $0x608] sm:$0xff]
    %v2396 = vld [vmem:[#allocation4 + $0x610] sm:$0xff]
    %v2397 = vld [vmem:[#allocation4 + $0x618] sm:$0xff]
    %v2398 = vld [vmem:[#allocation4 + $0x620] sm:$0xff]
    %v2399 = vld [vmem:[#allocation4 + $0x628] sm:$0xff]
    %v2400 = vld [vmem:[#allocation4 + $0x630] sm:$0xff]
    %v2401 = vld [vmem:[#allocation4 + $0x638] sm:$0xff]
    %v2402 = vld [vmem:[#allocation4 + $0x640] sm:$0xff]
    %v2403 = vld [vmem:[#allocation4 + $0x648] sm:$0xff]
    %v2404 = vld [vmem:[#allocation4 + $0x650] sm:$0xff]
    %v2405 = vld [vmem:[#allocation4 + $0x658] sm:$0xff]
    %v2406 = vld [vmem:[#allocation4 + $0x660] sm:$0xff]
    %v2407 = vld [vmem:[#allocation4 + $0x668] sm:$0xff]
    %v2408 = vld [vmem:[#allocation4 + $0x670] sm:$0xff]
    %v2409 = vld [vmem:[#allocation4 + $0x678] sm:$0xff]
    %v2410 = vld [vmem:[#allocation4 + $0x680] sm:$0xff]
    %v2411 = vld [vmem:[#allocation4 + $0x688] sm:$0xff]
    %v2412 = vld [vmem:[#allocation4 + $0x690] sm:$0xff]
    %v2413 = vld [vmem:[#allocation4 + $0x698] sm:$0xff]
    %v2414 = vld [vmem:[#allocation4 + $0x6a0] sm:$0xff]
    %v2415 = vld [vmem:[#allocation4 + $0x6a8] sm:$0xff]
    %v2416 = vld [vmem:[#allocation4 + $0x6b0] sm:$0xff]
    %v2417 = vld [vmem:[#allocation4 + $0x6b8] sm:$0xff]
    %v2418 = vld [vmem:[#allocation4 + $0x6c0] sm:$0xff]
    %v2419 = vld [vmem:[#allocation4 + $0x6c8] sm:$0xff]
    %v2420 = vld [vmem:[#allocation4 + $0x6d0] sm:$0xff]
    %v2421 = vld [vmem:[#allocation4 + $0x6d8] sm:$0xff]
    %v2422 = vld [vmem:[#allocation4 + $0x6e0] sm:$0xff]
    %v2423 = vld [vmem:[#allocation4 + $0x6e8] sm:$0xff]
    %v2424 = vld [vmem:[#allocation4 + $0x6f0] sm:$0xff]
    %v2425 = vld [vmem:[#allocation4 + $0x6f8] sm:$0xff]
    %v2426 = vld [vmem:[#allocation4 + $0x700] sm:$0xff]
    %v2427 = vld [vmem:[#allocation4 + $0x708] sm:$0xff]
    %v2428 = vld [vmem:[#allocation4 + $0x710] sm:$0xff]
    %v2429 = vld [vmem:[#allocation4 + $0x718] sm:$0xff]
    %v2430 = vld [vmem:[#allocation4 + $0x720] sm:$0xff]
    %v2431 = vld [vmem:[#allocation4 + $0x728] sm:$0xff]
    %v2432 = vld [vmem:[#allocation4 + $0x730] sm:$0xff]
    %v2433 = vld [vmem:[#allocation4 + $0x738] sm:$0xff]
    %v2434 = vld [vmem:[#allocation4 + $0x740] sm:$0xff]
    %v2435 = vld [vmem:[#allocation4 + $0x748] sm:$0xff]
    %v2436 = vld [vmem:[#allocation4 + $0x750] sm:$0xff]
    %v2437 = vld [vmem:[#allocation4 + $0x758] sm:$0xff]
    %v2438 = vld [vmem:[#allocation4 + $0x760] sm:$0xff]
    %v2439 = vld [vmem:[#allocation4 + $0x768] sm:$0xff]
    %v2440 = vld [vmem:[#allocation4 + $0x770] sm:$0xff]
    %v2441 = vld [vmem:[#allocation4 + $0x778] sm:$0xff]
    %v2442 = vld [vmem:[#allocation4 + $0x780] sm:$0xff]
    %v2443 = vld [vmem:[#allocation4 + $0x788] sm:$0xff]
    %v2444 = vld [vmem:[#allocation4 + $0x790] sm:$0xff]
    %v2445 = vld [vmem:[#allocation4 + $0x798] sm:$0xff]
    %v2446 = vld [vmem:[#allocation4 + $0x7a0] sm:$0xff]
    %v2447 = vld [vmem:[#allocation4 + $0x7a8] sm:$0xff]
    %v2448 = vld [vmem:[#allocation4 + $0x7b0] sm:$0xff]
    %v2449 = vld [vmem:[#allocation4 + $0x7b8] sm:$0xff]
    %v2450 = vld [vmem:[#allocation4 + $0x7c0] sm:$0xff]
    %v2451 = vld [vmem:[#allocation4 + $0x7c8] sm:$0xff]
    %v2452 = vld [vmem:[#allocation4 + $0x7d0] sm:$0xff]
    %v2453 = vld [vmem:[#allocation4 + $0x7d8] sm:$0xff]
    %v2454 = vld [vmem:[#allocation4 + $0x7e0] sm:$0xff]
    %v2455 = vld [vmem:[#allocation4 + $0x7e8] sm:$0xff]
    %v2456 = vld [vmem:[#allocation4 + $0x7f0] sm:$0xff]
    %v2457 = vld [vmem:[#allocation4 + $0x7f8] sm:$0xff]
    %v2458 = vld [vmem:[#allocation4 + $0x800] sm:$0xff]
    %v2459 = vld [vmem:[#allocation4 + $0x808] sm:$0xff]
    %v2460 = vld [vmem:[#allocation4 + $0x810] sm:$0xff]
    %v2461 = vld [vmem:[#allocation4 + $0x818] sm:$0xff]
    %v2462 = vld [vmem:[#allocation4 + $0x820] sm:$0xff]
    %v2463 = vld [vmem:[#allocation4 + $0x828] sm:$0xff]
    %v2464 = vld [vmem:[#allocation4 + $0x830] sm:$0xff]
    %v2465 = vld [vmem:[#allocation4 + $0x838] sm:$0xff]
    %v2466 = vld [vmem:[#allocation4 + $0x840] sm:$0xff]
    %v2467 = vld [vmem:[#allocation4 + $0x848] sm:$0xff]
    %v2468 = vld [vmem:[#allocation4 + $0x850] sm:$0xff]
    %v2469 = vld [vmem:[#allocation4 + $0x858] sm:$0xff]
    %v2470 = vld [vmem:[#allocation4 + $0x860] sm:$0xff]
    %v2471 = vld [vmem:[#allocation4 + $0x868] sm:$0xff]
    %v2472 = vld [vmem:[#allocation4 + $0x870] sm:$0xff]
    %v2473 = vld [vmem:[#allocation4 + $0x878] sm:$0xff]
    %v2474 = vld [vmem:[#allocation4 + $0x880] sm:$0xff]
    %v2475 = vld [vmem:[#allocation4 + $0x888] sm:$0xff]
    %v2476 = vld [vmem:[#allocation4 + $0x890] sm:$0xff]
    %v2477 = vld [vmem:[#allocation4 + $0x898] sm:$0xff]
    %v2478 = vld [vmem:[#allocation4 + $0x8a0] sm:$0xff]
    %v2479 = vld [vmem:[#allocation4 + $0x8a8] sm:$0xff]
    %v2480 = vld [vmem:[#allocation4 + $0x8b0] sm:$0xff]
    %v2481 = vld [vmem:[#allocation4 + $0x8b8] sm:$0xff]
    %v2482 = vld [vmem:[#allocation4 + $0x8c0] sm:$0xff]
    %v2483 = vld [vmem:[#allocation4 + $0x8c8] sm:$0xff]
    %v2484 = vld [vmem:[#allocation4 + $0x8d0] sm:$0xff]
    %v2485 = vld [vmem:[#allocation4 + $0x8d8] sm:$0xff]
    %v2486 = vld [vmem:[#allocation4 + $0x8e0] sm:$0xff]
    %v2487 = vld [vmem:[#allocation4 + $0x8e8] sm:$0xff]
    %v2488 = vld [vmem:[#allocation4 + $0x8f0] sm:$0xff]
    %v2489 = vld [vmem:[#allocation4 + $0x8f8] sm:$0xff]
    %v2490 = vld [vmem:[#allocation4 + $0x900] sm:$0xff]
    %v2491 = vld [vmem:[#allocation4 + $0x908] sm:$0xff]
    %v2492 = vld [vmem:[#allocation4 + $0x910] sm:$0xff]
    %v2493 = vld [vmem:[#allocation4 + $0x918] sm:$0xff]
    %v2494 = vld [vmem:[#allocation4 + $0x920] sm:$0xff]
    %v2495 = vld [vmem:[#allocation4 + $0x928] sm:$0xff]
    %v2496 = vld [vmem:[#allocation4 + $0x930] sm:$0xff]
    %v2497 = vld [vmem:[#allocation4 + $0x938] sm:$0xff]
    %v2498 = vld [vmem:[#allocation4 + $0x940] sm:$0xff]
    %v2499 = vld [vmem:[#allocation4 + $0x948] sm:$0xff]
    %v2500 = vld [vmem:[#allocation4 + $0x950] sm:$0xff]
    %v2501 = vld [vmem:[#allocation4 + $0x958] sm:$0xff]
    %v2502 = vld [vmem:[#allocation4 + $0x960] sm:$0xff]
    %v2503 = vld [vmem:[#allocation4 + $0x968] sm:$0xff]
    %v2504 = vld [vmem:[#allocation4 + $0x970] sm:$0xff]
    %v2505 = vld [vmem:[#allocation4 + $0x978] sm:$0xff]
    %v2506 = vld [vmem:[#allocation4 + $0x980] sm:$0xff]
    %v2507 = vld [vmem:[#allocation4 + $0x988] sm:$0xff]
    %v2508 = vld [vmem:[#allocation4 + $0x990] sm:$0xff]
    %v2509 = vld [vmem:[#allocation4 + $0x998] sm:$0xff]
    %v2510 = vld [vmem:[#allocation4 + $0x9a0] sm:$0xff]
    %v2511 = vld [vmem:[#allocation4 + $0x9a8] sm:$0xff]
    %v2512 = vld [vmem:[#allocation4 + $0x9b0] sm:$0xff]
    %v2513 = vld [vmem:[#allocation4 + $0x9b8] sm:$0xff]
    %v2514 = vld [vmem:[#allocation4 + $0x9c0] sm:$0xff]
    %v2515 = vld [vmem:[#allocation4 + $0x9c8] sm:$0xff]
    %v2516 = vld [vmem:[#allocation4 + $0x9d0] sm:$0xff]
    %v2517 = vld [vmem:[#allocation4 + $0x9d8] sm:$0xff]
    %v2518 = vld [vmem:[#allocation4 + $0x9e0] sm:$0xff]
    %v2519 = vld [vmem:[#allocation4 + $0x9e8] sm:$0xff]
    %v2520 = vld [vmem:[#allocation4 + $0x9f0] sm:$0xff]
    %v2521 = vld [vmem:[#allocation4 + $0x9f8] sm:$0xff]
    %v2522 = vld [vmem:[#allocation4 + $0xa00] sm:$0xff]
    %v2523 = vld [vmem:[#allocation4 + $0xa08] sm:$0xff]
    %v2524 = vld [vmem:[#allocation4 + $0xa10] sm:$0xff]
    %v2525 = vld [vmem:[#allocation4 + $0xa18] sm:$0xff]
    %v2526 = vld [vmem:[#allocation4 + $0xa20] sm:$0xff]
    %v2527 = vld [vmem:[#allocation4 + $0xa28] sm:$0xff]
    %v2528 = vld [vmem:[#allocation4 + $0xa30] sm:$0xff]
    %v2529 = vld [vmem:[#allocation4 + $0xa38] sm:$0xff]
    %v2530 = vld [vmem:[#allocation4 + $0xa40] sm:$0xff]
    %v2531 = vld [vmem:[#allocation4 + $0xa48] sm:$0xff]
    %v2532 = vld [vmem:[#allocation4 + $0xa50] sm:$0xff]
    %v2533 = vld [vmem:[#allocation4 + $0xa58] sm:$0xff]
    %v2534 = vld [vmem:[#allocation4 + $0xa60] sm:$0xff]
    %v2535 = vld [vmem:[#allocation4 + $0xa68] sm:$0xff]
    %v2536 = vld [vmem:[#allocation4 + $0xa70] sm:$0xff]
    %v2537 = vld [vmem:[#allocation4 + $0xa78] sm:$0xff]
    %v2538 = vld [vmem:[#allocation4 + $0xa80] sm:$0xff]
    %v2539 = vld [vmem:[#allocation4 + $0xa88] sm:$0xff]
    %v2540 = vld [vmem:[#allocation4 + $0xa90] sm:$0xff]
    %v2541 = vld [vmem:[#allocation4 + $0xa98] sm:$0xff]
    %v2542 = vld [vmem:[#allocation4 + $0xaa0] sm:$0xff]
    %v2543 = vld [vmem:[#allocation4 + $0xaa8] sm:$0xff]
    %v2544 = vld [vmem:[#allocation4 + $0xab0] sm:$0xff]
    %v2545 = vld [vmem:[#allocation4 + $0xab8] sm:$0xff]
    %v2546 = vld [vmem:[#allocation4 + $0xac0] sm:$0xff]
    %v2547 = vld [vmem:[#allocation4 + $0xac8] sm:$0xff]
    %v2548 = vld [vmem:[#allocation4 + $0xad0] sm:$0xff]
    %v2549 = vld [vmem:[#allocation4 + $0xad8] sm:$0xff]
    %v2550 = vld [vmem:[#allocation4 + $0xae0] sm:$0xff]
    %v2551 = vld [vmem:[#allocation4 + $0xae8] sm:$0xff]
    %v2552 = vld [vmem:[#allocation4 + $0xaf0] sm:$0xff]
    %v2553 = vld [vmem:[#allocation4 + $0xaf8] sm:$0xff]
    %v2554 = vld [vmem:[#allocation4 + $0xb00] sm:$0xff]
    %v2555 = vld [vmem:[#allocation4 + $0xb08] sm:$0xff]
    %v2556 = vld [vmem:[#allocation4 + $0xb10] sm:$0xff]
    %v2557 = vld [vmem:[#allocation4 + $0xb18] sm:$0xff]
    %v2558 = vld [vmem:[#allocation4 + $0xb20] sm:$0xff]
    %v2559 = vld [vmem:[#allocation4 + $0xb28] sm:$0xff]
    %v2560 = vld [vmem:[#allocation4 + $0xb30] sm:$0xff]
    %v2561 = vld [vmem:[#allocation4 + $0xb38] sm:$0xff]
    %v2562 = vld [vmem:[#allocation4 + $0xb40] sm:$0xff]
    %v2563 = vld [vmem:[#allocation4 + $0xb48] sm:$0xff]
    %v2564 = vld [vmem:[#allocation4 + $0xb50] sm:$0xff]
    %v2565 = vld [vmem:[#allocation4 + $0xb58] sm:$0xff]
    %v2566 = vld [vmem:[#allocation4 + $0xb60] sm:$0xff]
    %v2567 = vld [vmem:[#allocation4 + $0xb68] sm:$0xff]
    %v2568 = vld [vmem:[#allocation4 + $0xb70] sm:$0xff]
    %v2569 = vld [vmem:[#allocation4 + $0xb78] sm:$0xff]
    %v2570 = vld [vmem:[#allocation4 + $0xb80] sm:$0xff]
    %v2571 = vld [vmem:[#allocation4 + $0xb88] sm:$0xff]
    %v2572 = vld [vmem:[#allocation4 + $0xb90] sm:$0xff]
    %v2573 = vld [vmem:[#allocation4 + $0xb98] sm:$0xff]
    %v2574 = vld [vmem:[#allocation4 + $0xba0] sm:$0xff]
    %v2575 = vld [vmem:[#allocation4 + $0xba8] sm:$0xff]
    %v2576 = vld [vmem:[#allocation4 + $0xbb0] sm:$0xff]
    %v2577 = vld [vmem:[#allocation4 + $0xbb8] sm:$0xff]
    %v2578 = vld [vmem:[#allocation4 + $0xbc0] sm:$0xff]
    %v2579 = vld [vmem:[#allocation4 + $0xbc8] sm:$0xff]
    %v2580 = vld [vmem:[#allocation4 + $0xbd0] sm:$0xff]
    %v2581 = vld [vmem:[#allocation4 + $0xbd8] sm:$0xff]
    %v2582 = vld [vmem:[#allocation4 + $0xbe0] sm:$0xff]
    %v2583 = vld [vmem:[#allocation4 + $0xbe8] sm:$0xff]
    %v2584 = vld [vmem:[#allocation4 + $0xbf0] sm:$0xff]
    %v2585 = vld [vmem:[#allocation4 + $0xbf8] sm:$0xff]
    %v2586 = vld [vmem:[#allocation4 + $0xc00] sm:$0xff]
    %v2587 = vld [vmem:[#allocation4 + $0xc08] sm:$0xff]
    %v2588 = vld [vmem:[#allocation4 + $0xc10] sm:$0xff]
    %v2589 = vld [vmem:[#allocation4 + $0xc18] sm:$0xff]
    %v2590 = vld [vmem:[#allocation4 + $0xc20] sm:$0xff]
    %v2591 = vld [vmem:[#allocation4 + $0xc28] sm:$0xff]
    %v2592 = vld [vmem:[#allocation4 + $0xc30] sm:$0xff]
    %v2593 = vld [vmem:[#allocation4 + $0xc38] sm:$0xff]
    %v2594 = vld [vmem:[#allocation4 + $0xc40] sm:$0xff]
    %v2595 = vld [vmem:[#allocation4 + $0xc48] sm:$0xff]
    %v2596 = vld [vmem:[#allocation4 + $0xc50] sm:$0xff]
    %v2597 = vld [vmem:[#allocation4 + $0xc58] sm:$0xff]
    %v2598 = vld [vmem:[#allocation4 + $0xc60] sm:$0xff]
    %v2599 = vld [vmem:[#allocation4 + $0xc68] sm:$0xff]
    %v2600 = vld [vmem:[#allocation4 + $0xc70] sm:$0xff]
    %v2601 = vld [vmem:[#allocation4 + $0xc78] sm:$0xff]
    %v2602 = vld [vmem:[#allocation4 + $0xc80] sm:$0xff]
    %v2603 = vld [vmem:[#allocation4 + $0xc88] sm:$0xff]
    %v2604 = vld [vmem:[#allocation4 + $0xc90] sm:$0xff]
    %v2605 = vld [vmem:[#allocation4 + $0xc98] sm:$0xff]
    %v2606 = vld [vmem:[#allocation4 + $0xca0] sm:$0xff]
    %v2607 = vld [vmem:[#allocation4 + $0xca8] sm:$0xff]
    %v2608 = vld [vmem:[#allocation4 + $0xcb0] sm:$0xff]
    %v2609 = vld [vmem:[#allocation4 + $0xcb8] sm:$0xff]
    %v2610 = vld [vmem:[#allocation4 + $0xcc0] sm:$0xff]
    %v2611 = vld [vmem:[#allocation4 + $0xcc8] sm:$0xff]
    %v2612 = vld [vmem:[#allocation4 + $0xcd0] sm:$0xff]
    %v2613 = vld [vmem:[#allocation4 + $0xcd8] sm:$0xff]
    %v2614 = vld [vmem:[#allocation4 + $0xce0] sm:$0xff]
    %v2615 = vld [vmem:[#allocation4 + $0xce8] sm:$0xff]
    %v2616 = vld [vmem:[#allocation4 + $0xcf0] sm:$0xff]
    %v2617 = vld [vmem:[#allocation4 + $0xcf8] sm:$0xff]
    %v2618 = vld [vmem:[#allocation4 + $0xd00] sm:$0xff]
    %v2619 = vld [vmem:[#allocation4 + $0xd08] sm:$0xff]
    %v2620 = vld [vmem:[#allocation4 + $0xd10] sm:$0xff]
    %v2621 = vld [vmem:[#allocation4 + $0xd18] sm:$0xff]
    %v2622 = vld [vmem:[#allocation4 + $0xd20] sm:$0xff]
    %v2623 = vld [vmem:[#allocation4 + $0xd28] sm:$0xff]
    %v2624 = vld [vmem:[#allocation4 + $0xd30] sm:$0xff]
    %v2625 = vld [vmem:[#allocation4 + $0xd38] sm:$0xff]
    %v2626 = vld [vmem:[#allocation4 + $0xd40] sm:$0xff]
    %v2627 = vld [vmem:[#allocation4 + $0xd48] sm:$0xff]
    %v2628 = vld [vmem:[#allocation4 + $0xd50] sm:$0xff]
    %v2629 = vld [vmem:[#allocation4 + $0xd58] sm:$0xff]
    %v2630 = vld [vmem:[#allocation4 + $0xd60] sm:$0xff]
    %v2631 = vld [vmem:[#allocation4 + $0xd68] sm:$0xff]
    %v2632 = vld [vmem:[#allocation4 + $0xd70] sm:$0xff]
    %v2633 = vld [vmem:[#allocation4 + $0xd78] sm:$0xff]
    %v2634 = vld [vmem:[#allocation4 + $0xd80] sm:$0xff]
    %v2635 = vld [vmem:[#allocation4 + $0xd88] sm:$0xff]
    %v2636 = vld [vmem:[#allocation4 + $0xd90] sm:$0xff]
    %v2637 = vld [vmem:[#allocation4 + $0xd98] sm:$0xff]
    %v2638 = vld [vmem:[#allocation4 + $0xda0] sm:$0xff]
    %v2639 = vld [vmem:[#allocation4 + $0xda8] sm:$0xff]
    %v2640 = vld [vmem:[#allocation4 + $0xdb0] sm:$0xff]
    %v2641 = vld [vmem:[#allocation4 + $0xdb8] sm:$0xff]
    %v2642 = vld [vmem:[#allocation4 + $0xdc0] sm:$0xff]
    %v2643 = vld [vmem:[#allocation4 + $0xdc8] sm:$0xff]
    %v2644 = vld [vmem:[#allocation4 + $0xdd0] sm:$0xff]
    %v2645 = vld [vmem:[#allocation4 + $0xdd8] sm:$0xff]
    %v2646 = vld [vmem:[#allocation4 + $0xde0] sm:$0xff]
    %v2647 = vld [vmem:[#allocation4 + $0xde8] sm:$0xff]
    %v2648 = vld [vmem:[#allocation4 + $0xdf0] sm:$0xff]
    %v2649 = vld [vmem:[#allocation4 + $0xdf8] sm:$0xff]
    %v2650 = vpack.c.bf16 %v2190, %v2190
    %v2651 = vpack.c.bf16 %v2191, %v2191
    %v2652 = vpack.c.bf16 %v2192, %v2192
    %v2653 = vpack.c.bf16 %v2193, %v2193
    %v2654 = vpack.c.bf16 %v2194, %v2194
    %v2655 = vpack.c.bf16 %v2195, %v2195
    %v2656 = vpack.c.bf16 %v2196, %v2196
    %v2657 = vpack.c.bf16 %v2197, %v2197
    %v2658 = vld [vmem:[#allocation28] sm:$0xff]
    %v2660 = vlaneseq
    %v2661 = vshrl.u32 %v2660, 7
    %v2662 = vsub.s32 0, %v2661
    %v2663 = vrot.slane %v2658, %v2662
    %v2664 = vlaneseq
    %v2665 = vshrl.u32 %v2664, 7
    %v2666 = vsub.s32 1, %v2665
    %v2667 = vrot.slane %v2658, %v2666
    %v2668 = vlaneseq
    %v2669 = vshrl.u32 %v2668, 7
    %v2670 = vsub.s32 2, %v2669
    %v2671 = vrot.slane %v2658, %v2670
    %v2672 = vlaneseq
    %v2673 = vshrl.u32 %v2672, 7
    %v2674 = vsub.s32 3, %v2673
    %v2675 = vrot.slane %v2658, %v2674
    %v2676 = vlaneseq
    %v2677 = vshrl.u32 %v2676, 7
    %v2678 = vsub.s32 4, %v2677
    %v2679 = vrot.slane %v2658, %v2678
    %v2680 = vlaneseq
    %v2681 = vshrl.u32 %v2680, 7
    %v2682 = vsub.s32 5, %v2681
    %v2683 = vrot.slane %v2658, %v2682
    %v2684 = vlaneseq
    %v2685 = vshrl.u32 %v2684, 7
    %v2686 = vsub.s32 6, %v2685
    %v2687 = vrot.slane %v2658, %v2686
    %2695 = vmatprep.subr.bf16.mxu0 %v2203
    %2696 = vmatpush1.bf16.msra.mxu0 %v2202
    %2697 = vmatprep.subr.bf16.mxu0 %v2210
    %2698 = vmatpush1.bf16.msra.mxu0 %v2209
    %2699 = vmatprep.subr.bf16.mxu0 %v2217
    %2700 = vmatpush1.bf16.msra.mxu0 %v2216
    %2701 = vmatprep.subr.bf16.mxu0 %v2224
    %2702 = vmatpush1.bf16.msra.mxu0 %v2223
    %2703 = vmatprep.subr.bf16.mxu0 %v2231
    %2704 = vmatpush1.bf16.msra.mxu0 %v2230
    %2705 = vmatprep.subr.bf16.mxu0 %v2238
    %2706 = vmatpush1.bf16.msra.mxu0 %v2237
    %2707 = vmatprep.subr.bf16.mxu0 %v2245
    %2708 = vmatpush1.bf16.msra.mxu0 %v2244
    %2709 = vmatprep.subr.bf16.mxu0 %v2252
    %2710 = vmatpush1.bf16.msra.mxu0 %v2251
    %2711 = vmatprep.subr.bf16.mxu0 %v2259
    %2712 = vmatpush1.bf16.msra.mxu0 %v2258
    %2713 = vmatprep.subr.bf16.mxu0 %v2266
    %2714 = vmatpush1.bf16.msra.mxu0 %v2265
    %2715 = vmatprep.subr.bf16.mxu0 %v2273
    %2716 = vmatpush1.bf16.msra.mxu0 %v2272
    %2717 = vmatprep.subr.bf16.mxu0 %v2280
    %2718 = vmatpush1.bf16.msra.mxu0 %v2279
    %2719 = vmatprep.subr.bf16.mxu0 %v2287
    %2720 = vmatpush1.bf16.msra.mxu0 %v2286
    %2721 = vmatprep.subr.bf16.mxu0 %v2294
    %2722 = vmatpush1.bf16.msra.mxu0 %v2293
    %2723 = vmatprep.subr.bf16.mxu0 %v2301
    %2724 = vmatpush1.bf16.msra.mxu0 %v2300
    %2725 = vmatprep.subr.bf16.mxu0 %v2308
    %2726 = vmatpush1.bf16.msra.mxu0 %v2307
    %2727 = vmatprep.mubr.bf16.mxu0 %v2651
    %2728 = vmatmul.mubr.bf16.gmra.mrb[0].mxu0 %v2650
    %v2729 = vpop.f32.mrb[0].mxu0
    %v2730 = vadd.f32 %v2663, %v2729
    %v2731 = vpop.f32.mrb[0].mxu0
    %v2732 = vadd.f32 %v2667, %v2731
    %v2733 = vpop.f32.mrb[0].mxu0
    %v2734 = vpop.f32.mrb[0].mxu0
    %2735 = vdwg.mxu0
    %2736 = vmatprep.subr.bf16.mxu0 %v2315
    %2737 = vmatpush1.bf16.msra.mxu0 %v2314
    %2738 = vmatprep.subr.bf16.mxu0 %v2322
    %2739 = vmatpush1.bf16.msra.mxu0 %v2321
    %2740 = vmatprep.subr.bf16.mxu0 %v2329
    %2741 = vmatpush1.bf16.msra.mxu0 %v2328
    %2742 = vmatprep.subr.bf16.mxu0 %v2336
    %2743 = vmatpush1.bf16.msra.mxu0 %v2335
    %2744 = vmatprep.subr.bf16.mxu0 %v2343
    %2745 = vmatpush1.bf16.msra.mxu0 %v2342
    %2746 = vmatprep.subr.bf16.mxu0 %v2350
    %2747 = vmatpush1.bf16.msra.mxu0 %v2349
    %2748 = vmatprep.subr.bf16.mxu0 %v2357
    %2749 = vmatpush1.bf16.msra.mxu0 %v2356
    %2750 = vmatprep.subr.bf16.mxu0 %v2364
    %2751 = vmatpush1.bf16.msra.mxu0 %v2363
    %2752 = vmatprep.subr.bf16.mxu0 %v2371
    %2753 = vmatpush1.bf16.msra.mxu0 %v2370
    %2754 = vmatprep.subr.bf16.mxu0 %v2378
    %2755 = vmatpush1.bf16.msra.mxu0 %v2377
    %2756 = vmatprep.subr.bf16.mxu0 %v2385
    %2757 = vmatpush1.bf16.msra.mxu0 %v2384
    %2758 = vmatprep.subr.bf16.mxu0 %v2392
    %2759 = vmatpush1.bf16.msra.mxu0 %v2391
    %2760 = vmatprep.subr.bf16.mxu0 %v2399
    %2761 = vmatpush1.bf16.msra.mxu0 %v2398
    %2762 = vmatprep.subr.bf16.mxu0 %v2406
    %2763 = vmatpush1.bf16.msra.mxu0 %v2405
    %2764 = vmatprep.subr.bf16.mxu0 %v2413
    %2765 = vmatpush1.bf16.msra.mxu0 %v2412
    %2766 = vmatprep.subr.bf16.mxu0 %v2420
    %2767 = vmatpush1.bf16.msra.mxu0 %v2419
    %2768 = vmatprep.mubr.bf16.mxu0 %v2653
    %2769 = vmatmul.mubr.bf16.gmra.mrb[0].mxu0 %v2652
    %v2770 = vpop.f32.mrb[0].mxu0
    %v2771 = vadd.f32 %v2730, %v2770
    %v2772 = vpop.f32.mrb[0].mxu0
    %v2773 = vadd.f32 %v2732, %v2772
    %v2774 = vpop.f32.mrb[0].mxu0
    %v2775 = vpop.f32.mrb[0].mxu0
    %2776 = vdwg.mxu0
    %2777 = vmatprep.subr.bf16.mxu0 %v2427
    %2778 = vmatpush1.bf16.msra.mxu0 %v2426
    %2779 = vmatprep.subr.bf16.mxu0 %v2434
    %2780 = vmatpush1.bf16.msra.mxu0 %v2433
    %2781 = vmatprep.subr.bf16.mxu0 %v2441
    %2782 = vmatpush1.bf16.msra.mxu0 %v2440
    %2783 = vmatprep.subr.bf16.mxu0 %v2448
    %2784 = vmatpush1.bf16.msra.mxu0 %v2447
    %2785 = vmatprep.subr.bf16.mxu0 %v2455
    %2786 = vmatpush1.bf16.msra.mxu0 %v2454
    %2787 = vmatprep.subr.bf16.mxu0 %v2462
    %2788 = vmatpush1.bf16.msra.mxu0 %v2461
    %2789 = vmatprep.subr.bf16.mxu0 %v2469
    %2790 = vmatpush1.bf16.msra.mxu0 %v2468
    %2791 = vmatprep.subr.bf16.mxu0 %v2476
    %2792 = vmatpush1.bf16.msra.mxu0 %v2475
    %2793 = vmatprep.subr.bf16.mxu0 %v2483
    %2794 = vmatpush1.bf16.msra.mxu0 %v2482
    %2795 = vmatprep.subr.bf16.mxu0 %v2490
    %2796 = vmatpush1.bf16.msra.mxu0 %v2489
    %2797 = vmatprep.subr.bf16.mxu0 %v2497
    %2798 = vmatpush1.bf16.msra.mxu0 %v2496
    %2799 = vmatprep.subr.bf16.mxu0 %v2504
    %2800 = vmatpush1.bf16.msra.mxu0 %v2503
    %2801 = vmatprep.subr.bf16.mxu0 %v2511
    %2802 = vmatpush1.bf16.msra.mxu0 %v2510
    %2803 = vmatprep.subr.bf16.mxu0 %v2518
    %2804 = vmatpush1.bf16.msra.mxu0 %v2517
    %2805 = vmatprep.subr.bf16.mxu0 %v2525
    %2806 = vmatpush1.bf16.msra.mxu0 %v2524
    %2807 = vmatprep.subr.bf16.mxu0 %v2532
    %2808 = vmatpush1.bf16.msra.mxu0 %v2531
    %2809 = vmatprep.mubr.bf16.mxu0 %v2655
    %2810 = vmatmul.mubr.bf16.gmra.mrb[0].mxu0 %v2654
    %v2811 = vpop.f32.mrb[0].mxu0
    %v2812 = vadd.f32 %v2771, %v2811
    %v2813 = vpop.f32.mrb[0].mxu0
    %v2814 = vadd.f32 %v2773, %v2813
    %v2815 = vpop.f32.mrb[0].mxu0
    %v2816 = vpop.f32.mrb[0].mxu0
    %2817 = vdwg.mxu0
    %2818 = vmatprep.subr.bf16.mxu0 %v2539
    %2819 = vmatpush1.bf16.msra.mxu0 %v2538
    %2820 = vmatprep.subr.bf16.mxu0 %v2546
    %2821 = vmatpush1.bf16.msra.mxu0 %v2545
    %2822 = vmatprep.subr.bf16.mxu0 %v2553
    %2823 = vmatpush1.bf16.msra.mxu0 %v2552
    %2824 = vmatprep.subr.bf16.mxu0 %v2560
    %2825 = vmatpush1.bf16.msra.mxu0 %v2559
    %2826 = vmatprep.subr.bf16.mxu0 %v2567
    %2827 = vmatpush1.bf16.msra.mxu0 %v2566
    %2828 = vmatprep.subr.bf16.mxu0 %v2574
    %2829 = vmatpush1.bf16.msra.mxu0 %v2573
    %2830 = vmatprep.subr.bf16.mxu0 %v2581
    %2831 = vmatpush1.bf16.msra.mxu0 %v2580
    %2832 = vmatprep.subr.bf16.mxu0 %v2588
    %2833 = vmatpush1.bf16.msra.mxu0 %v2587
    %2834 = vmatprep.subr.bf16.mxu0 %v2595
    %2835 = vmatpush1.bf16.msra.mxu0 %v2594
    %2836 = vmatprep.subr.bf16.mxu0 %v2602
    %2837 = vmatpush1.bf16.msra.mxu0 %v2601
    %2838 = vmatprep.subr.bf16.mxu0 %v2609
    %2839 = vmatpush1.bf16.msra.mxu0 %v2608
    %2840 = vmatprep.subr.bf16.mxu0 %v2616
    %2841 = vmatpush1.bf16.msra.mxu0 %v2615
    %2842 = vmatprep.subr.bf16.mxu0 %v2623
    %2843 = vmatpush1.bf16.msra.mxu0 %v2622
    %2844 = vmatprep.subr.bf16.mxu0 %v2630
    %2845 = vmatpush1.bf16.msra.mxu0 %v2629
    %2846 = vmatprep.subr.bf16.mxu0 %v2637
    %2847 = vmatpush1.bf16.msra.mxu0 %v2636
    %2848 = vmatprep.subr.bf16.mxu0 %v2644
    %2849 = vmatpush1.bf16.msra.mxu0 %v2643
    %2850 = vmatprep.mubr.bf16.mxu0 %v2657
    %2851 = vmatmul.mubr.bf16.gmra.mrb[0].mxu0 %v2656
    %v2852 = vpop.f32.mrb[0].mxu0
    %v2853 = vadd.f32 %v2812, %v2852
    %v2854 = vpop.f32.mrb[0].mxu0
    %v2855 = vadd.f32 %v2814, %v2854
    %v2856 = vpop.f32.mrb[0].mxu0
    %v2857 = vpop.f32.mrb[0].mxu0
    %2858 = vdwg.mxu0
    %2859 = vmatprep.subr.bf16.mxu0 %v2205
    %2860 = vmatpush1.bf16.msra.mxu0 %v2204
    %2861 = vmatprep.subr.bf16.mxu0 %v2212
    %2862 = vmatpush1.bf16.msra.mxu0 %v2211
    %2863 = vmatprep.subr.bf16.mxu0 %v2219
    %2864 = vmatpush1.bf16.msra.mxu0 %v2218
    %2865 = vmatprep.subr.bf16.mxu0 %v2226
    %2866 = vmatpush1.bf16.msra.mxu0 %v2225
    %2867 = vmatprep.subr.bf16.mxu0 %v2233
    %2868 = vmatpush1.bf16.msra.mxu0 %v2232
    %2869 = vmatprep.subr.bf16.mxu0 %v2240
    %2870 = vmatpush1.bf16.msra.mxu0 %v2239
    %2871 = vmatprep.subr.bf16.mxu0 %v2247
    %2872 = vmatpush1.bf16.msra.mxu0 %v2246
    %2873 = vmatprep.subr.bf16.mxu0 %v2254
    %2874 = vmatpush1.bf16.msra.mxu0 %v2253
    %2875 = vmatprep.subr.bf16.mxu0 %v2261
    %2876 = vmatpush1.bf16.msra.mxu0 %v2260
    %2877 = vmatprep.subr.bf16.mxu0 %v2268
    %2878 = vmatpush1.bf16.msra.mxu0 %v2267
    %2879 = vmatprep.subr.bf16.mxu0 %v2275
    %2880 = vmatpush1.bf16.msra.mxu0 %v2274
    %2881 = vmatprep.subr.bf16.mxu0 %v2282
    %2882 = vmatpush1.bf16.msra.mxu0 %v2281
    %2883 = vmatprep.subr.bf16.mxu0 %v2289
    %2884 = vmatpush1.bf16.msra.mxu0 %v2288
    %2885 = vmatprep.subr.bf16.mxu0 %v2296
    %2886 = vmatpush1.bf16.msra.mxu0 %v2295
    %2887 = vmatprep.subr.bf16.mxu0 %v2303
    %2888 = vmatpush1.bf16.msra.mxu0 %v2302
    %2889 = vmatprep.subr.bf16.mxu0 %v2310
    %2890 = vmatpush1.bf16.msra.mxu0 %v2309
    %2891 = vmatprep.mubr.bf16.mxu0 %v2651
    %2892 = vmatmul.mubr.bf16.gmra.mrb[0].mxu0 %v2650
    %v2893 = vpop.f32.mrb[0].mxu0
    %v2894 = vadd.f32 %v2671, %v2893
    %v2895 = vpop.f32.mrb[0].mxu0
    %v2896 = vadd.f32 %v2675, %v2895
    %v2897 = vpop.f32.mrb[0].mxu0
    %v2898 = vpop.f32.mrb[0].mxu0
    %2899 = vdwg.mxu0
    %2900 = vmatprep.subr.bf16.mxu0 %v2317
    %2901 = vmatpush1.bf16.msra.mxu0 %v2316
    %2902 = vmatprep.subr.bf16.mxu0 %v2324
    %2903 = vmatpush1.bf16.msra.mxu0 %v2323
    %2904 = vmatprep.subr.bf16.mxu0 %v2331
    %2905 = vmatpush1.bf16.msra.mxu0 %v2330
    %2906 = vmatprep.subr.bf16.mxu0 %v2338
    %2907 = vmatpush1.bf16.msra.mxu0 %v2337
    %2908 = vmatprep.subr.bf16.mxu0 %v2345
    %2909 = vmatpush1.bf16.msra.mxu0 %v2344
    %2910 = vmatprep.subr.bf16.mxu0 %v2352
    %2911 = vmatpush1.bf16.msra.mxu0 %v2351
    %2912 = vmatprep.subr.bf16.mxu0 %v2359
    %2913 = vmatpush1.bf16.msra.mxu0 %v2358
    %2914 = vmatprep.subr.bf16.mxu0 %v2366
    %2915 = vmatpush1.bf16.msra.mxu0 %v2365
    %2916 = vmatprep.subr.bf16.mxu0 %v2373
    %2917 = vmatpush1.bf16.msra.mxu0 %v2372
    %2918 = vmatprep.subr.bf16.mxu0 %v2380
    %2919 = vmatpush1.bf16.msra.mxu0 %v2379
    %2920 = vmatprep.subr.bf16.mxu0 %v2387
    %2921 = vmatpush1.bf16.msra.mxu0 %v2386
    %2922 = vmatprep.subr.bf16.mxu0 %v2394
    %2923 = vmatpush1.bf16.msra.mxu0 %v2393
    %2924 = vmatprep.subr.bf16.mxu0 %v2401
    %2925 = vmatpush1.bf16.msra.mxu0 %v2400
    %2926 = vmatprep.subr.bf16.mxu0 %v2408
    %2927 = vmatpush1.bf16.msra.mxu0 %v2407
    %2928 = vmatprep.subr.bf16.mxu0 %v2415
    %2929 = vmatpush1.bf16.msra.mxu0 %v2414
    %2930 = vmatprep.subr.bf16.mxu0 %v2422
    %2931 = vmatpush1.bf16.msra.mxu0 %v2421
    %2932 = vmatprep.mubr.bf16.mxu0 %v2653
    %2933 = vmatmul.mubr.bf16.gmra.mrb[0].mxu0 %v2652
    %v2934 = vpop.f32.mrb[0].mxu0
    %v2935 = vadd.f32 %v2894, %v2934
    %v2936 = vpop.f32.mrb[0].mxu0
    %v2937 = vadd.f32 %v2896, %v2936
    %v2938 = vpop.f32.mrb[0].mxu0
    %v2939 = vpop.f32.mrb[0].mxu0
    %2940 = vdwg.mxu0
    %2941 = vmatprep.subr.bf16.mxu0 %v2429
    %2942 = vmatpush1.bf16.msra.mxu0 %v2428
    %2943 = vmatprep.subr.bf16.mxu0 %v2436
    %2944 = vmatpush1.bf16.msra.mxu0 %v2435
    %2945 = vmatprep.subr.bf16.mxu0 %v2443
    %2946 = vmatpush1.bf16.msra.mxu0 %v2442
    %2947 = vmatprep.subr.bf16.mxu0 %v2450
    %2948 = vmatpush1.bf16.msra.mxu0 %v2449
    %2949 = vmatprep.subr.bf16.mxu0 %v2457
    %2950 = vmatpush1.bf16.msra.mxu0 %v2456
    %2951 = vmatprep.subr.bf16.mxu0 %v2464
    %2952 = vmatpush1.bf16.msra.mxu0 %v2463
    %2953 = vmatprep.subr.bf16.mxu0 %v2471
    %2954 = vmatpush1.bf16.msra.mxu0 %v2470
    %2955 = vmatprep.subr.bf16.mxu0 %v2478
    %2956 = vmatpush1.bf16.msra.mxu0 %v2477
    %2957 = vmatprep.subr.bf16.mxu0 %v2485
    %2958 = vmatpush1.bf16.msra.mxu0 %v2484
    %2959 = vmatprep.subr.bf16.mxu0 %v2492
    %2960 = vmatpush1.bf16.msra.mxu0 %v2491
    %2961 = vmatprep.subr.bf16.mxu0 %v2499
    %2962 = vmatpush1.bf16.msra.mxu0 %v2498
    %2963 = vmatprep.subr.bf16.mxu0 %v2506
    %2964 = vmatpush1.bf16.msra.mxu0 %v2505
    %2965 = vmatprep.subr.bf16.mxu0 %v2513
    %2966 = vmatpush1.bf16.msra.mxu0 %v2512
    %2967 = vmatprep.subr.bf16.mxu0 %v2520
    %2968 = vmatpush1.bf16.msra.mxu0 %v2519
    %2969 = vmatprep.subr.bf16.mxu0 %v2527
    %2970 = vmatpush1.bf16.msra.mxu0 %v2526
    %2971 = vmatprep.subr.bf16.mxu0 %v2534
    %2972 = vmatpush1.bf16.msra.mxu0 %v2533
    %2973 = vmatprep.mubr.bf16.mxu0 %v2655
    %2974 = vmatmul.mubr.bf16.gmra.mrb[0].mxu0 %v2654
    %v2975 = vpop.f32.mrb[0].mxu0
    %v2976 = vadd.f32 %v2935, %v2975
    %v2977 = vpop.f32.mrb[0].mxu0
    %v2978 = vadd.f32 %v2937, %v2977
    %v2979 = vpop.f32.mrb[0].mxu0
    %v2980 = vpop.f32.mrb[0].mxu0
    %2981 = vdwg.mxu0
    %2982 = vmatprep.subr.bf16.mxu0 %v2541
    %2983 = vmatpush1.bf16.msra.mxu0 %v2540
    %2984 = vmatprep.subr.bf16.mxu0 %v2548
    %2985 = vmatpush1.bf16.msra.mxu0 %v2547
    %2986 = vmatprep.subr.bf16.mxu0 %v2555
    %2987 = vmatpush1.bf16.msra.mxu0 %v2554
    %2988 = vmatprep.subr.bf16.mxu0 %v2562
    %2989 = vmatpush1.bf16.msra.mxu0 %v2561
    %2990 = vmatprep.subr.bf16.mxu0 %v2569
    %2991 = vmatpush1.bf16.msra.mxu0 %v2568
    %2992 = vmatprep.subr.bf16.mxu0 %v2576
    %2993 = vmatpush1.bf16.msra.mxu0 %v2575
    %2994 = vmatprep.subr.bf16.mxu0 %v2583
    %2995 = vmatpush1.bf16.msra.mxu0 %v2582
    %2996 = vmatprep.subr.bf16.mxu0 %v2590
    %2997 = vmatpush1.bf16.msra.mxu0 %v2589
    %2998 = vmatprep.subr.bf16.mxu0 %v2597
    %2999 = vmatpush1.bf16.msra.mxu0 %v2596
    %3000 = vmatprep.subr.bf16.mxu0 %v2604
    %3001 = vmatpush1.bf16.msra.mxu0 %v2603
    %3002 = vmatprep.subr.bf16.mxu0 %v2611
    %3003 = vmatpush1.bf16.msra.mxu0 %v2610
    %3004 = vmatprep.subr.bf16.mxu0 %v2618
    %3005 = vmatpush1.bf16.msra.mxu0 %v2617
    %3006 = vmatprep.subr.bf16.mxu0 %v2625
    %3007 = vmatpush1.bf16.msra.mxu0 %v2624
    %3008 = vmatprep.subr.bf16.mxu0 %v2632
    %3009 = vmatpush1.bf16.msra.mxu0 %v2631
    %3010 = vmatprep.subr.bf16.mxu0 %v2639
    %3011 = vmatpush1.bf16.msra.mxu0 %v2638
    %3012 = vmatprep.subr.bf16.mxu0 %v2646
    %3013 = vmatpush1.bf16.msra.mxu0 %v2645
    %3014 = vmatprep.mubr.bf16.mxu0 %v2657
    %3015 = vmatmul.mubr.bf16.gmra.mrb[0].mxu0 %v2656
    %v3016 = vpop.f32.mrb[0].mxu0
    %v3017 = vadd.f32 %v2976, %v3016
    %v3018 = vpop.f32.mrb[0].mxu0
    %v3019 = vadd.f32 %v2978, %v3018
    %v3020 = vpop.f32.mrb[0].mxu0
    %v3021 = vpop.f32.mrb[0].mxu0
    %3022 = vdwg.mxu0
    %3023 = vmatprep.subr.bf16.mxu0 %v2207
    %3024 = vmatpush1.bf16.msra.mxu0 %v2206
    %3025 = vmatprep.subr.bf16.mxu0 %v2214
    %3026 = vmatpush1.bf16.msra.mxu0 %v2213
    %3027 = vmatprep.subr.bf16.mxu0 %v2221
    %3028 = vmatpush1.bf16.msra.mxu0 %v2220
    %3029 = vmatprep.subr.bf16.mxu0 %v2228
    %3030 = vmatpush1.bf16.msra.mxu0 %v2227
    %3031 = vmatprep.subr.bf16.mxu0 %v2235
    %3032 = vmatpush1.bf16.msra.mxu0 %v2234
    %3033 = vmatprep.subr.bf16.mxu0 %v2242
    %3034 = vmatpush1.bf16.msra.mxu0 %v2241
    %3035 = vmatprep.subr.bf16.mxu0 %v2249
    %3036 = vmatpush1.bf16.msra.mxu0 %v2248
    %3037 = vmatprep.subr.bf16.mxu0 %v2256
    %3038 = vmatpush1.bf16.msra.mxu0 %v2255
    %3039 = vmatprep.subr.bf16.mxu0 %v2263
    %3040 = vmatpush1.bf16.msra.mxu0 %v2262
    %3041 = vmatprep.subr.bf16.mxu0 %v2270
    %3042 = vmatpush1.bf16.msra.mxu0 %v2269
    %3043 = vmatprep.subr.bf16.mxu0 %v2277
    %3044 = vmatpush1.bf16.msra.mxu0 %v2276
    %3045 = vmatprep.subr.bf16.mxu0 %v2284
    %3046 = vmatpush1.bf16.msra.mxu0 %v2283
    %3047 = vmatprep.subr.bf16.mxu0 %v2291
    %3048 = vmatpush1.bf16.msra.mxu0 %v2290
    %3049 = vmatprep.subr.bf16.mxu0 %v2298
    %3050 = vmatpush1.bf16.msra.mxu0 %v2297
    %3051 = vmatprep.subr.bf16.mxu0 %v2305
    %3052 = vmatpush1.bf16.msra.mxu0 %v2304
    %3053 = vmatprep.subr.bf16.mxu0 %v2312
    %3054 = vmatpush1.bf16.msra.mxu0 %v2311
    %3055 = vmatprep.mubr.bf16.mxu0 %v2651
    %3056 = vmatmul.mubr.bf16.gmra.mrb[0].mxu0 %v2650
    %v3057 = vpop.f32.mrb[0].mxu0
    %v3058 = vadd.f32 %v2679, %v3057
    %v3059 = vpop.f32.mrb[0].mxu0
    %v3060 = vadd.f32 %v2683, %v3059
    %v3061 = vpop.f32.mrb[0].mxu0
    %v3062 = vpop.f32.mrb[0].mxu0
    %3063 = vdwg.mxu0
    %3064 = vmatprep.subr.bf16.mxu0 %v2319
    %3065 = vmatpush1.bf16.msra.mxu0 %v2318
    %3066 = vmatprep.subr.bf16.mxu0 %v2326
    %3067 = vmatpush1.bf16.msra.mxu0 %v2325
    %3068 = vmatprep.subr.bf16.mxu0 %v2333
    %3069 = vmatpush1.bf16.msra.mxu0 %v2332
    %3070 = vmatprep.subr.bf16.mxu0 %v2340
    %3071 = vmatpush1.bf16.msra.mxu0 %v2339
    %3072 = vmatprep.subr.bf16.mxu0 %v2347
    %3073 = vmatpush1.bf16.msra.mxu0 %v2346
    %3074 = vmatprep.subr.bf16.mxu0 %v2354
    %3075 = vmatpush1.bf16.msra.mxu0 %v2353
    %3076 = vmatprep.subr.bf16.mxu0 %v2361
    %3077 = vmatpush1.bf16.msra.mxu0 %v2360
    %3078 = vmatprep.subr.bf16.mxu0 %v2368
    %3079 = vmatpush1.bf16.msra.mxu0 %v2367
    %3080 = vmatprep.subr.bf16.mxu0 %v2375
    %3081 = vmatpush1.bf16.msra.mxu0 %v2374
    %3082 = vmatprep.subr.bf16.mxu0 %v2382
    %3083 = vmatpush1.bf16.msra.mxu0 %v2381
    %3084 = vmatprep.subr.bf16.mxu0 %v2389
    %3085 = vmatpush1.bf16.msra.mxu0 %v2388
    %3086 = vmatprep.subr.bf16.mxu0 %v2396
    %3087 = vmatpush1.bf16.msra.mxu0 %v2395
    %3088 = vmatprep.subr.bf16.mxu0 %v2403
    %3089 = vmatpush1.bf16.msra.mxu0 %v2402
    %3090 = vmatprep.subr.bf16.mxu0 %v2410
    %3091 = vmatpush1.bf16.msra.mxu0 %v2409
    %3092 = vmatprep.subr.bf16.mxu0 %v2417
    %3093 = vmatpush1.bf16.msra.mxu0 %v2416
    %3094 = vmatprep.subr.bf16.mxu0 %v2424
    %3095 = vmatpush1.bf16.msra.mxu0 %v2423
    %3096 = vmatprep.mubr.bf16.mxu0 %v2653
    %3097 = vmatmul.mubr.bf16.gmra.mrb[0].mxu0 %v2652
    %v3098 = vpop.f32.mrb[0].mxu0
    %v3099 = vadd.f32 %v3058, %v3098
    %v3100 = vpop.f32.mrb[0].mxu0
    %v3101 = vadd.f32 %v3060, %v3100
    %v3102 = vpop.f32.mrb[0].mxu0
    %v3103 = vpop.f32.mrb[0].mxu0
    %3104 = vdwg.mxu0
    %3105 = vmatprep.subr.bf16.mxu0 %v2431
    %3106 = vmatpush1.bf16.msra.mxu0 %v2430
    %3107 = vmatprep.subr.bf16.mxu0 %v2438
    %3108 = vmatpush1.bf16.msra.mxu0 %v2437
    %3109 = vmatprep.subr.bf16.mxu0 %v2445
    %3110 = vmatpush1.bf16.msra.mxu0 %v2444
    %3111 = vmatprep.subr.bf16.mxu0 %v2452
    %3112 = vmatpush1.bf16.msra.mxu0 %v2451
    %3113 = vmatprep.subr.bf16.mxu0 %v2459
    %3114 = vmatpush1.bf16.msra.mxu0 %v2458
    %3115 = vmatprep.subr.bf16.mxu0 %v2466
    %3116 = vmatpush1.bf16.msra.mxu0 %v2465
    %3117 = vmatprep.subr.bf16.mxu0 %v2473
    %3118 = vmatpush1.bf16.msra.mxu0 %v2472
    %3119 = vmatprep.subr.bf16.mxu0 %v2480
    %3120 = vmatpush1.bf16.msra.mxu0 %v2479
    %3121 = vmatprep.subr.bf16.mxu0 %v2487
    %3122 = vmatpush1.bf16.msra.mxu0 %v2486
    %3123 = vmatprep.subr.bf16.mxu0 %v2494
    %3124 = vmatpush1.bf16.msra.mxu0 %v2493
    %3125 = vmatprep.subr.bf16.mxu0 %v2501
    %3126 = vmatpush1.bf16.msra.mxu0 %v2500
    %3127 = vmatprep.subr.bf16.mxu0 %v2508
    %3128 = vmatpush1.bf16.msra.mxu0 %v2507
    %3129 = vmatprep.subr.bf16.mxu0 %v2515
    %3130 = vmatpush1.bf16.msra.mxu0 %v2514
    %3131 = vmatprep.subr.bf16.mxu0 %v2522
    %3132 = vmatpush1.bf16.msra.mxu0 %v2521
    %3133 = vmatprep.subr.bf16.mxu0 %v2529
    %3134 = vmatpush1.bf16.msra.mxu0 %v2528
    %3135 = vmatprep.subr.bf16.mxu0 %v2536
    %3136 = vmatpush1.bf16.msra.mxu0 %v2535
    %3137 = vmatprep.mubr.bf16.mxu0 %v2655
    %3138 = vmatmul.mubr.bf16.gmra.mrb[0].mxu0 %v2654
    %v3139 = vpop.f32.mrb[0].mxu0
    %v3140 = vadd.f32 %v3099, %v3139
    %v3141 = vpop.f32.mrb[0].mxu0
    %v3142 = vadd.f32 %v3101, %v3141
    %v3143 = vpop.f32.mrb[0].mxu0
    %v3144 = vpop.f32.mrb[0].mxu0
    %3145 = vdwg.mxu0
    %3146 = vmatprep.subr.bf16.mxu0 %v2543
    %3147 = vmatpush1.bf16.msra.mxu0 %v2542
    %3148 = vmatprep.subr.bf16.mxu0 %v2550
    %3149 = vmatpush1.bf16.msra.mxu0 %v2549
    %3150 = vmatprep.subr.bf16.mxu0 %v2557
    %3151 = vmatpush1.bf16.msra.mxu0 %v2556
    %3152 = vmatprep.subr.bf16.mxu0 %v2564
    %3153 = vmatpush1.bf16.msra.mxu0 %v2563
    %3154 = vmatprep.subr.bf16.mxu0 %v2571
    %3155 = vmatpush1.bf16.msra.mxu0 %v2570
    %3156 = vmatprep.subr.bf16.mxu0 %v2578
    %3157 = vmatpush1.bf16.msra.mxu0 %v2577
    %3158 = vmatprep.subr.bf16.mxu0 %v2585
    %3159 = vmatpush1.bf16.msra.mxu0 %v2584
    %3160 = vmatprep.subr.bf16.mxu0 %v2592
    %3161 = vmatpush1.bf16.msra.mxu0 %v2591
    %3162 = vmatprep.subr.bf16.mxu0 %v2599
    %3163 = vmatpush1.bf16.msra.mxu0 %v2598
    %3164 = vmatprep.subr.bf16.mxu0 %v2606
    %3165 = vmatpush1.bf16.msra.mxu0 %v2605
    %3166 = vmatprep.subr.bf16.mxu0 %v2613
    %3167 = vmatpush1.bf16.msra.mxu0 %v2612
    %3168 = vmatprep.subr.bf16.mxu0 %v2620
    %3169 = vmatpush1.bf16.msra.mxu0 %v2619
    %3170 = vmatprep.subr.bf16.mxu0 %v2627
    %3171 = vmatpush1.bf16.msra.mxu0 %v2626
    %3172 = vmatprep.subr.bf16.mxu0 %v2634
    %3173 = vmatpush1.bf16.msra.mxu0 %v2633
    %3174 = vmatprep.subr.bf16.mxu0 %v2641
    %3175 = vmatpush1.bf16.msra.mxu0 %v2640
    %3176 = vmatprep.subr.bf16.mxu0 %v2648
    %3177 = vmatpush1.bf16.msra.mxu0 %v2647
    %3178 = vmatprep.mubr.bf16.mxu0 %v2657
    %3179 = vmatmul.mubr.bf16.gmra.mrb[0].mxu0 %v2656
    %v3180 = vpop.f32.mrb[0].mxu0
    %v3181 = vadd.f32 %v3140, %v3180
    %v3182 = vpop.f32.mrb[0].mxu0
    %v3183 = vadd.f32 %v3142, %v3182
    %v3184 = vpop.f32.mrb[0].mxu0
    %v3185 = vpop.f32.mrb[0].mxu0
    %3186 = vdwg.mxu0
    %3187 = vmatprep.subr.bf16.mxu0 0
    %3188 = vmatpush1.bf16.msra.mxu0 %v2208
    %3189 = vmatprep.subr.bf16.mxu0 0
    %3190 = vmatpush1.bf16.msra.mxu0 %v2215
    %3191 = vmatprep.subr.bf16.mxu0 0
    %3192 = vmatpush1.bf16.msra.mxu0 %v2222
    %3193 = vmatprep.subr.bf16.mxu0 0
    %3194 = vmatpush1.bf16.msra.mxu0 %v2229
    %3195 = vmatprep.subr.bf16.mxu0 0
    %3196 = vmatpush1.bf16.msra.mxu0 %v2236
    %3197 = vmatprep.subr.bf16.mxu0 0
    %3198 = vmatpush1.bf16.msra.mxu0 %v2243
    %3199 = vmatprep.subr.bf16.mxu0 0
    %3200 = vmatpush1.bf16.msra.mxu0 %v2250
    %3201 = vmatprep.subr.bf16.mxu0 0
    %3202 = vmatpush1.bf16.msra.mxu0 %v2257
    %3203 = vmatprep.subr.bf16.mxu0 0
    %3204 = vmatpush1.bf16.msra.mxu0 %v2264
    %3205 = vmatprep.subr.bf16.mxu0 0
    %3206 = vmatpush1.bf16.msra.mxu0 %v2271
    %3207 = vmatprep.subr.bf16.mxu0 0
    %3208 = vmatpush1.bf16.msra.mxu0 %v2278
    %3209 = vmatprep.subr.bf16.mxu0 0
    %3210 = vmatpush1.bf16.msra.mxu0 %v2285
    %3211 = vmatprep.subr.bf16.mxu0 0
    %3212 = vmatpush1.bf16.msra.mxu0 %v2292
    %3213 = vmatprep.subr.bf16.mxu0 0
    %3214 = vmatpush1.bf16.msra.mxu0 %v2299
    %3215 = vmatprep.subr.bf16.mxu0 0
    %3216 = vmatpush1.bf16.msra.mxu0 %v2306
    %3217 = vmatprep.subr.bf16.mxu0 0
    %3218 = vmatpush1.bf16.msra.mxu0 %v2313
    %3219 = vmatprep.mubr.bf16.mxu0 %v2651
    %3220 = vmatmul.mubr.bf16.gmra.mrb[0].mxu0 %v2650
    %v3221 = vpop.f32.mrb[0].mxu0
    %v3222 = vadd.f32 %v2687, %v3221
    %v3223 = vpop.f32.mrb[0].mxu0
    %v3224 = vpop.f32.mrb[0].mxu0
    %v3225 = vpop.f32.mrb[0].mxu0
    %3226 = vdwg.mxu0
    %3227 = vmatprep.subr.bf16.mxu0 0
    %3228 = vmatpush1.bf16.msra.mxu0 %v2320
    %3229 = vmatprep.subr.bf16.mxu0 0
    %3230 = vmatpush1.bf16.msra.mxu0 %v2327
    %3231 = vmatprep.subr.bf16.mxu0 0
    %3232 = vmatpush1.bf16.msra.mxu0 %v2334
    %3233 = vmatprep.subr.bf16.mxu0 0
    %3234 = vmatpush1.bf16.msra.mxu0 %v2341
    %3235 = vmatprep.subr.bf16.mxu0 0
    %3236 = vmatpush1.bf16.msra.mxu0 %v2348
    %3237 = vmatprep.subr.bf16.mxu0 0
    %3238 = vmatpush1.bf16.msra.mxu0 %v2355
    %3239 = vmatprep.subr.bf16.mxu0 0
    %3240 = vmatpush1.bf16.msra.mxu0 %v2362
    %3241 = vmatprep.subr.bf16.mxu0 0
    %3242 = vmatpush1.bf16.msra.mxu0 %v2369
    %3243 = vmatprep.subr.bf16.mxu0 0
    %3244 = vmatpush1.bf16.msra.mxu0 %v2376
    %3245 = vmatprep.subr.bf16.mxu0 0
    %3246 = vmatpush1.bf16.msra.mxu0 %v2383
    %3247 = vmatprep.subr.bf16.mxu0 0
    %3248 = vmatpush1.bf16.msra.mxu0 %v2390
    %3249 = vmatprep.subr.bf16.mxu0 0
    %3250 = vmatpush1.bf16.msra.mxu0 %v2397
    %3251 = vmatprep.subr.bf16.mxu0 0
    %3252 = vmatpush1.bf16.msra.mxu0 %v2404
    %3253 = vmatprep.subr.bf16.mxu0 0
    %3254 = vmatpush1.bf16.msra.mxu0 %v2411
    %3255 = vmatprep.subr.bf16.mxu0 0
    %3256 = vmatpush1.bf16.msra.mxu0 %v2418
    %3257 = vmatprep.subr.bf16.mxu0 0
    %3258 = vmatpush1.bf16.msra.mxu0 %v2425
    %3259 = vmatprep.mubr.bf16.mxu0 %v2653
    %3260 = vmatmul.mubr.bf16.gmra.mrb[0].mxu0 %v2652
    %v3261 = vpop.f32.mrb[0].mxu0
    %v3262 = vadd.f32 %v3222, %v3261
    %v3263 = vpop.f32.mrb[0].mxu0
    %v3264 = vpop.f32.mrb[0].mxu0
    %v3265 = vpop.f32.mrb[0].mxu0
    %3266 = vdwg.mxu0
    %3267 = vmatprep.subr.bf16.mxu0 0
    %3268 = vmatpush1.bf16.msra.mxu0 %v2432
    %3269 = vmatprep.subr.bf16.mxu0 0
    %3270 = vmatpush1.bf16.msra.mxu0 %v2439
    %3271 = vmatprep.subr.bf16.mxu0 0
    %3272 = vmatpush1.bf16.msra.mxu0 %v2446
    %3273 = vmatprep.subr.bf16.mxu0 0
    %3274 = vmatpush1.bf16.msra.mxu0 %v2453
    %3275 = vmatprep.subr.bf16.mxu0 0
    %3276 = vmatpush1.bf16.msra.mxu0 %v2460
    %3277 = vmatprep.subr.bf16.mxu0 0
    %3278 = vmatpush1.bf16.msra.mxu0 %v2467
    %3279 = vmatprep.subr.bf16.mxu0 0
    %3280 = vmatpush1.bf16.msra.mxu0 %v2474
    %3281 = vmatprep.subr.bf16.mxu0 0
    %3282 = vmatpush1.bf16.msra.mxu0 %v2481
    %3283 = vmatprep.subr.bf16.mxu0 0
    %3284 = vmatpush1.bf16.msra.mxu0 %v2488
    %3285 = vmatprep.subr.bf16.mxu0 0
    %3286 = vmatpush1.bf16.msra.mxu0 %v2495
    %3287 = vmatprep.subr.bf16.mxu0 0
    %3288 = vmatpush1.bf16.msra.mxu0 %v2502
    %3289 = vmatprep.subr.bf16.mxu0 0
    %3290 = vmatpush1.bf16.msra.mxu0 %v2509
    %3291 = vmatprep.subr.bf16.mxu0 0
    %3292 = vmatpush1.bf16.msra.mxu0 %v2516
    %3293 = vmatprep.subr.bf16.mxu0 0
    %3294 = vmatpush1.bf16.msra.mxu0 %v2523
    %3295 = vmatprep.subr.bf16.mxu0 0
    %3296 = vmatpush1.bf16.msra.mxu0 %v2530
    %3297 = vmatprep.subr.bf16.mxu0 0
    %3298 = vmatpush1.bf16.msra.mxu0 %v2537
    %3299 = vmatprep.mubr.bf16.mxu0 %v2655
    %3300 = vmatmul.mubr.bf16.gmra.mrb[0].mxu0 %v2654
    %v3301 = vpop.f32.mrb[0].mxu0
    %v3302 = vadd.f32 %v3262, %v3301
    %v3303 = vpop.f32.mrb[0].mxu0
    %v3304 = vpop.f32.mrb[0].mxu0
    %v3305 = vpop.f32.mrb[0].mxu0
    %3306 = vdwg.mxu0
    %3307 = vmatprep.subr.bf16.mxu0 0
    %3308 = vmatpush1.bf16.msra.mxu0 %v2544
    %3309 = vmatprep.subr.bf16.mxu0 0
    %3310 = vmatpush1.bf16.msra.mxu0 %v2551
    %3311 = vmatprep.subr.bf16.mxu0 0
    %3312 = vmatpush1.bf16.msra.mxu0 %v2558
    %3313 = vmatprep.subr.bf16.mxu0 0
    %3314 = vmatpush1.bf16.msra.mxu0 %v2565
    %3315 = vmatprep.subr.bf16.mxu0 0
    %3316 = vmatpush1.bf16.msra.mxu0 %v2572
    %3317 = vmatprep.subr.bf16.mxu0 0
    %3318 = vmatpush1.bf16.msra.mxu0 %v2579
    %3319 = vmatprep.subr.bf16.mxu0 0
    %3320 = vmatpush1.bf16.msra.mxu0 %v2586
    %3321 = vmatprep.subr.bf16.mxu0 0
    %3322 = vmatpush1.bf16.msra.mxu0 %v2593
    %3323 = vmatprep.subr.bf16.mxu0 0
    %3324 = vmatpush1.bf16.msra.mxu0 %v2600
    %3325 = vmatprep.subr.bf16.mxu0 0
    %3326 = vmatpush1.bf16.msra.mxu0 %v2607
    %3327 = vmatprep.subr.bf16.mxu0 0
    %3328 = vmatpush1.bf16.msra.mxu0 %v2614
    %3329 = vmatprep.subr.bf16.mxu0 0
    %3330 = vmatpush1.bf16.msra.mxu0 %v2621
    %3331 = vmatprep.subr.bf16.mxu0 0
    %3332 = vmatpush1.bf16.msra.mxu0 %v2628
    %3333 = vmatprep.subr.bf16.mxu0 0
    %3334 = vmatpush1.bf16.msra.mxu0 %v2635
    %3335 = vmatprep.subr.bf16.mxu0 0
    %3336 = vmatpush1.bf16.msra.mxu0 %v2642
    %3337 = vmatprep.subr.bf16.mxu0 0
    %3338 = vmatpush1.bf16.msra.mxu0 %v2649
    %3339 = vmatprep.mubr.bf16.mxu0 %v2657
    %3340 = vmatmul.mubr.bf16.gmra.mrb[0].mxu0 %v2656
    %v3341 = vpop.f32.mrb[0].mxu0
    %v3342 = vadd.f32 %v3302, %v3341
    %v3343 = vpop.f32.mrb[0].mxu0
    %v3344 = vpop.f32.mrb[0].mxu0
    %v3345 = vpop.f32.mrb[0].mxu0
    %3346 = vdwg.mxu0
    %v3347 = vtanh.pop %v2853
    %v3348 = vtanh.pop %v2855
    %v3349 = vtanh.pop %v3017
    %v3350 = vtanh.pop %v3019
    %v3351 = vtanh.pop %v3181
    %v3352 = vtanh.pop %v3183
    %v3353 = vtanh.pop %v3342
    %3354 = vst [vmem:[%s17] sm:$0xff] %v3347
    %3355 = vst [vmem:[%s17 + $0x8] sm:$0xff] %v3348
    %3356 = vst [vmem:[%s17 + $0x10] sm:$0xff] %v3349
    %3357 = vst [vmem:[%s17 + $0x18] sm:$0xff] %v3350
    %3358 = vst [vmem:[%s17 + $0x20] sm:$0xff] %v3351
    %3359 = vst [vmem:[%s17 + $0x28] sm:$0xff] %v3352
    %3360 = vst [vmem:[%s17 + $0x30] sm:$0xff] %v3353
    // Predicated region
    $region122: #{generator_forward.1} parent=1 // pred_check
      _
    $region123: #{generator_forward.1} parent=1 // pred_check_branch
      %3362 = sbr.rel (0) target = $region125
    $region124: #{generator_forward.1} parent=1 // pred_region
      _
    $region125: #{generator_forward.1} parent=1 // pred_fallthru
      _
    // Predicated region
    $region126: #{generator_forward.1} parent=1 // pred_check
      _
    $region127: #{generator_forward.1} parent=1 // pred_check_branch
      %3364 = sbr.rel (0) target = $region129
    $region128: #{generator_forward.1} parent=1 // pred_region
      _
    $region129: #{generator_forward.1} parent=1 // pred_fallthru
      _
    %3365 = vsyncpa [#allocation7], 1
    %3366 = vsyncpa [#allocation9], 1
    %3367 = vsyncpa [#allocation12], 1
    %3368 = vsyncpa [#allocation15], 1
    %3369 = vsyncpa [#allocation18], 1
    %3370 = vsyncpa [#allocation21], 1
    %3371 = vsyncpa [#allocation24], 1
    %3372 = vsyncpa [#allocation27], 1
  %3373 = vsyncmov [#allocation5]
  %s3374 = vpop.sfrf %3373
  %p3375 = scmp.eq.s32.totalorder %s3374, 0
  %p3376 = pneg %p3375
  %3378 = shalt.err (%p3376)
  %s3379 = scalar_lea.sflag [#allocation5], 1
  %3380 = vsyncmov %s3379
  %s3381 = vpop.sfrf %3380
  %p3382 = scmp.eq.s32.totalorder %s3381, 0
  %p3383 = pneg %p3382
  %3385 = shalt.err (%p3383)

</llo_original>
